<compile_context>
chip_gen: v7x
topology: tpu7x:2x2x1
jax: 0.10.0
libtpu: 0.0.40
codegen_flags: <defaults>
</compile_context>

<pallas_src>
import functools

import jax
import jax.numpy as jnp
from jax.experimental import pallas as pl
from jax.experimental.pallas import tpu as pltpu

EPS = 1e-5
LANE = 128


def _round_up(v, m):
    return (v + m - 1) // m * m


def _bn_add_relu_conv_kernel(x_ref, res_ref, gamma_ref, beta_ref, w_ref, o_ref,
                             *, inv_m):
    # x_ref, res_ref : (C_pad, M_pad) f32   channel-major activations
    # gamma_ref, beta_ref : (C_pad, 1) f32  BN affine params (0 in padded rows)
    # w_ref : (C_out_blk, C_pad) bf16       1x1 conv weight block
    # o_ref : (C_out_blk, M_pad) f32
    x = x_ref[...]

    # One-pass per-channel batch statistics (padded lanes are zero, so the
    # sums are exact; divide by the TRUE element count inv_m = 1/(N*H*W)).
    s1 = jnp.sum(x, axis=-1, keepdims=True)             # (C_pad, 1)
    s2 = jnp.sum(x * x, axis=-1, keepdims=True)         # (C_pad, 1)
    mean = s1 * inv_m
    var = s2 * inv_m - mean * mean                      # biased variance
    inv_std = jax.lax.rsqrt(var + EPS)
    scale = gamma_ref[...] * inv_std                    # (C_pad, 1)
    shift = beta_ref[...] - mean * scale                # (C_pad, 1)

    # BN + residual add + ReLU in a single elementwise pass over x.
    y = jnp.maximum(x * scale + shift + res_ref[...], 0.0)

    # 1x1 conv == MXU matmul, bf16 operands, f32 accumulation.
    o_ref[...] = jnp.dot(w_ref[...], y.astype(jnp.bfloat16),
                         preferred_element_type=jnp.float32)


def bn_add_relu_conv(x_nchw, res_nchw, gamma, beta, conv_w):
    """x_nchw, res_nchw: (N, C, H, W) f32; gamma, beta: (C,);
    conv_w: (C_out, C_in, 1, 1) PyTorch conv weight layout."""
    n, c, h, w = x_nchw.shape
    c_out = conv_w.shape[0]
    m = n * h * w

    # NCHW -> (C, M).  Free reshape for N == 1 (the module's case); fall back
    # to a transpose otherwise.
    if n == 1:
        x2d = x_nchw.reshape(c, m)
        r2d = res_nchw.reshape(c, m)
    else:
        x2d = jnp.transpose(x_nchw, (1, 0, 2, 3)).reshape(c, m)
        r2d = jnp.transpose(res_nchw, (1, 0, 2, 3)).reshape(c, m)

    c_pad = _round_up(c, LANE)           # 408 -> 512  (K / sublane dim)
    co_pad = _round_up(c_out, LANE)      # 408 -> 512  (output sublane dim)
    m_pad = _round_up(m, LANE)           # 196 -> 256  (lane dim, dense stores)

    x_p = jnp.pad(x2d, ((0, c_pad - c), (0, m_pad - m)))
    r_p = jnp.pad(r2d, ((0, c_pad - c), (0, m_pad - m)))
    g_p = jnp.pad(gamma, (0, c_pad - c)).reshape(c_pad, 1)
    b_p = jnp.pad(beta, (0, c_pad - c)).reshape(c_pad, 1)
    # (C_out, C_in, 1, 1) -> (C_out_pad, C_in_pad), bf16 (halves weight DMA).
    w_p = jnp.pad(conv_w.reshape(c_out, c),
                  ((0, co_pad - c_out), (0, c_pad - c))).astype(jnp.bfloat16)

    n_out_blocks = 2                     # split C_out across v7x's 2 TCs
    co_blk = co_pad // n_out_blocks

    kernel = functools.partial(_bn_add_relu_conv_kernel, inv_m=1.0 / float(m))

    out_p = pl.pallas_call(
        kernel,
        out_shape=jax.ShapeDtypeStruct((co_pad, m_pad), jnp.float32),
        grid=(n_out_blocks,),
        in_specs=[
            pl.BlockSpec((c_pad, m_pad), lambda j: (0, 0)),   # x (shared)
            pl.BlockSpec((c_pad, m_pad), lambda j: (0, 0)),   # residual
            pl.BlockSpec((c_pad, 1), lambda j: (0, 0)),       # gamma
            pl.BlockSpec((c_pad, 1), lambda j: (0, 0)),       # beta
            pl.BlockSpec((co_blk, c_pad), lambda j: (j, 0)),  # conv weight
        ],
        out_specs=pl.BlockSpec((co_blk, m_pad), lambda j: (j, 0)),
        compiler_params=pltpu.CompilerParams(
            dimension_semantics=("parallel",)),
        cost_estimate=pl.CostEstimate(
            flops=2 * m * c * c_out,
            transcendentals=c,
            bytes_accessed=(2 * m * c + c * c_out + m * c_out) * 4),
    )(x_p, r_p, g_p, b_p, w_p)

    out2d = out_p[:c_out, :m]
    if n == 1:
        return out2d.reshape(1, c_out, h, w)
    return jnp.transpose(out2d.reshape(c_out, n, h, w), (1, 0, 2, 3))


def _reference(x, r, gamma, beta, conv_w):
    mean = jnp.mean(x, axis=(0, 2, 3), keepdims=True)
    var = jnp.mean((x - mean) ** 2, axis=(0, 2, 3), keepdims=True)
    xn = (x - mean) * jax.lax.rsqrt(var + EPS)
    xn = xn * gamma.reshape(1, -1, 1, 1) + beta.reshape(1, -1, 1, 1)
    y = jnp.maximum(xn + r, 0.0)
    return jax.lax.conv_general_dilated(
        y, conv_w, window_strides=(1, 1), padding="VALID",
        dimension_numbers=("NCHW", "OIHW", "NCHW"))


if __name__ == "__main__":
    key = jax.random.PRNGKey(0)
    k_x, k_r, k_w = jax.random.split(key, 3)

    N, C, H, W = 1, 408, 14, 14          # fixed by the module (408 -> 408)
    x68 = jax.random.normal(k_x, (N, C, H, W), dtype=jnp.float32)
    x77 = jax.random.normal(k_r, (N, C, H, W), dtype=jnp.float32)

    gamma = jnp.ones((C,), dtype=jnp.float32)   # PyTorch BN defaults
    beta = jnp.zeros((C,), dtype=jnp.float32)
    conv_w = jax.random.normal(k_w, (C, C, 1, 1), dtype=jnp.float32) * 0.05

    out = jax.jit(bn_add_relu_conv)(x68, x77, gamma, beta, conv_w)
    jax.block_until_ready(out)
    assert out.shape == (N, C, H, W), out.shape

    # Loose tolerance: kernel uses bf16 MXU operands with f32 accumulation.
    ref = _reference(x68, x77, gamma, beta, conv_w)
    err = float(jnp.max(jnp.abs(out - ref)))
    assert err < 0.1, err

    print("KERNEL_OK")
</pallas_src>

<mosaic_0001>
module attributes {stable_mosaic.version = 11 : i64} {
  func.func @_bn_add_relu_conv_kernel(%arg0: i32, %arg1: memref<512x256xf32, #tpu.memory_space<vmem>>, %arg2: memref<512x256xf32, #tpu.memory_space<vmem>>, %arg3: memref<512x1xf32, #tpu.memory_space<vmem>>, %arg4: memref<512x1xf32, #tpu.memory_space<vmem>>, %arg5: memref<256x512xbf16, #tpu.memory_space<vmem>>, %arg6: memref<256x256xf32, #tpu.memory_space<vmem>>) attributes {dimension_semantics = [#tpu.dimension_semantics<parallel>], iteration_bounds = array<i64: 2>, scalar_prefetch = 0 : i64, scratch_operands = 0 : i64, tpu.core_type = #tpu.core_type<tc>, window_params = [{pipeline_mode = #tpu.pipeline_mode<synchronous>, transform_indices = @transform_0, window_bounds = array<i64: 512, 256>}, {pipeline_mode = #tpu.pipeline_mode<synchronous>, transform_indices = @transform_1, window_bounds = array<i64: 512, 256>}, {pipeline_mode = #tpu.pipeline_mode<synchronous>, transform_indices = @transform_2, window_bounds = array<i64: 512, 1>}, {pipeline_mode = #tpu.pipeline_mode<synchronous>, transform_indices = @transform_3, window_bounds = array<i64: 512, 1>}, {transform_indices = @transform_4, window_bounds = array<i64: 256, 512>}, {transform_indices = @transform_5, window_bounds = array<i64: 256, 256>}]} {
    %c0 = arith.constant 0 : index
    %c0_0 = arith.constant 0 : index
    %0 = vector.load %arg1[%c0, %c0_0] : memref<512x256xf32, #tpu.memory_space<vmem>>, vector<512x256xf32>
    %cst = arith.constant dense<0.000000e+00> : vector<512xf32>
    %1 = vector.multi_reduction <add>, %0, %cst [1] : vector<512x256xf32> to vector<512xf32>
    %2 = vector.shape_cast %1 : vector<512xf32> to vector<512x1xf32>
    %3 = arith.mulf %0, %0 : vector<512x256xf32>
    %cst_1 = arith.constant dense<0.000000e+00> : vector<512xf32>
    %4 = vector.multi_reduction <add>, %3, %cst_1 [1] : vector<512x256xf32> to vector<512xf32>
    %5 = vector.shape_cast %4 : vector<512xf32> to vector<512x1xf32>
    %cst_2 = arith.constant 0.00510204071 : f32
    %6 = vector.broadcast %cst_2 : f32 to vector<512x1xf32>
    %7 = arith.mulf %2, %6 : vector<512x1xf32>
    %cst_3 = arith.constant 0.00510204071 : f32
    %8 = vector.broadcast %cst_3 : f32 to vector<512x1xf32>
    %9 = arith.mulf %5, %8 : vector<512x1xf32>
    %10 = arith.mulf %7, %7 : vector<512x1xf32>
    %11 = arith.subf %9, %10 : vector<512x1xf32>
    %cst_4 = arith.constant 9.99999974E-6 : f32
    %12 = vector.broadcast %cst_4 : f32 to vector<512x1xf32>
    %13 = arith.addf %11, %12 : vector<512x1xf32>
    %14 = math.rsqrt %13 : vector<512x1xf32>
    %c0_5 = arith.constant 0 : index
    %c0_6 = arith.constant 0 : index
    %15 = vector.load %arg3[%c0_5, %c0_6] : memref<512x1xf32, #tpu.memory_space<vmem>>, vector<512x1xf32>
    %16 = arith.mulf %15, %14 : vector<512x1xf32>
    %c0_7 = arith.constant 0 : index
    %c0_8 = arith.constant 0 : index
    %17 = vector.load %arg4[%c0_7, %c0_8] : memref<512x1xf32, #tpu.memory_space<vmem>>, vector<512x1xf32>
    %18 = arith.mulf %7, %16 : vector<512x1xf32>
    %19 = arith.subf %17, %18 : vector<512x1xf32>
    %20 = vector.broadcast %16 : vector<512x1xf32> to vector<512x256xf32>
    %21 = arith.mulf %0, %20 : vector<512x256xf32>
    %22 = vector.broadcast %19 : vector<512x1xf32> to vector<512x256xf32>
    %23 = arith.addf %21, %22 : vector<512x256xf32>
    %c0_9 = arith.constant 0 : index
    %c0_10 = arith.constant 0 : index
    %24 = vector.load %arg2[%c0_9, %c0_10] : memref<512x256xf32, #tpu.memory_space<vmem>>, vector<512x256xf32>
    %25 = arith.addf %23, %24 : vector<512x256xf32>
    %cst_11 = arith.constant 0.000000e+00 : f32
    %26 = vector.broadcast %cst_11 : f32 to vector<512x256xf32>
    %27 = arith.maximumf %25, %26 : vector<512x256xf32>
    %c0_12 = arith.constant 0 : index
    %c0_13 = arith.constant 0 : index
    %28 = vector.load %arg5[%c0_12, %c0_13] : memref<256x512xbf16, #tpu.memory_space<vmem>>, vector<256x512xbf16>
    %29 = arith.truncf %27 : vector<512x256xf32> to vector<512x256xbf16>
    %cst_14 = arith.constant dense<0.000000e+00> : vector<256x256xf32>
    %30 = tpu.matmul %28, %29, %cst_14 {dimension_numbers = #tpu.dot_dimension_numbers<[1], [0], [0], [1], [0, 0, 1, 1], [], []>} : vector<256x512xbf16>, vector<512x256xbf16>, vector<256x256xf32> -> vector<256x256xf32>
    %c0_15 = arith.constant 0 : index
    %c0_16 = arith.constant 0 : index
    %31 = vector.load %arg6[%c0_15, %c0_16] : memref<256x256xf32, #tpu.memory_space<vmem>>, vector<256x256xf32>
    tpu.vector_store %arg6[%c0_15, %c0_16], %30 {strides = array<i32>} : memref<256x256xf32, #tpu.memory_space<vmem>>, vector<256x256xf32>,
    return
  }
  func.func @transform_0(%arg0: i32) -> (i32, i32) {
    %c0_i32 = arith.constant 0 : i32
    %c0_i32_0 = arith.constant 0 : i32
    %c0_i32_1 = arith.constant 0 : i32
    return %c0_i32, %c0_i32_0 : i32, i32
  }
  func.func @transform_1(%arg0: i32) -> (i32, i32) {
    %c0_i32 = arith.constant 0 : i32
    %c0_i32_0 = arith.constant 0 : i32
    %c0_i32_1 = arith.constant 0 : i32
    return %c0_i32, %c0_i32_0 : i32, i32
  }
  func.func @transform_2(%arg0: i32) -> (i32, i32) {
    %c0_i32 = arith.constant 0 : i32
    %c0_i32_0 = arith.constant 0 : i32
    %c0_i32_1 = arith.constant 0 : i32
    return %c0_i32, %c0_i32_0 : i32, i32
  }
  func.func @transform_3(%arg0: i32) -> (i32, i32) {
    %c0_i32 = arith.constant 0 : i32
    %c0_i32_0 = arith.constant 0 : i32
    %c0_i32_1 = arith.constant 0 : i32
    return %c0_i32, %c0_i32_0 : i32, i32
  }
  func.func @transform_4(%arg0: i32) -> (i32, i32) {
    %c0_i32 = arith.constant 0 : i32
    %c0_i32_0 = arith.constant 0 : i32
    return %arg0, %c0_i32 : i32, i32
  }
  func.func @transform_5(%arg0: i32) -> (i32, i32) {
    %c0_i32 = arith.constant 0 : i32
    %c0_i32_0 = arith.constant 0 : i32
    return %arg0, %c0_i32 : i32, i32
  }
}

</mosaic_0001>

<llo_original>
// kernel: bn_add_relu_conv.1
$region0: #{bn_add_relu_conv.1}
  #allocation0 [shape = 'u32[]', space=smem, size = 0x4, offset = 0x4, fixed_abs, tag = 'smem constant byte address 0x4 - core index']
  #allocation1 [shape = 'u32[144,128]{1,0:T(1,128)}', space=vmem, size = 0x12000, scoped, tag = 'internal scratch']
  %s0 = inlined_call_operand.vmem [shape: f32[512,256], index: 0, kind: input, shape index: {}]
  %s1 = inlined_call_operand.vmem [shape: f32[512,256], index: 1, kind: input, shape index: {}]
  %s2 = inlined_call_operand.vmem [shape: f32[512,1], index: 2, kind: input, shape index: {}]
  %s3 = inlined_call_operand.vmem [shape: f32[512,1], index: 3, kind: input, shape index: {}]
  %s4 = inlined_call_operand.vmem [shape: bf16[512,512], index: 4, kind: input, shape index: {}]
  %s5 = inlined_call_operand.vmem [shape: f32[512,256], index: 5, kind: output, shape index: {}]
  %s6 = sld [smem:[#allocation0]]
  $region53: #{bn_add_relu_conv.1} parent=0
    _
  %s8 = ssub.s32 1, %s6
  %s9 = scalar_select 0, %s8, %s6
  loop: start=0, step=1, limit=4
  $region2: #{bn_add_relu_conv.1} parent=0 // loop_pre_header
    _
  $region3: #{bn_add_relu_conv.1} parent=0 // loop_header
    %s11 = sphi 0, %s15
    %p12 = scmp.ge.s32.totalorder %s11, 4
    %s19 = sphi 0, %s19
    %s21 = sphi 0, %s19
    %s22 = sphi 0, %s21
    %s36 = sphi 0, %s22
    %s40 = sphi 0, %s40
    %s42 = sphi 0, %s40
    %s43 = sphi 0, %s42
    %s57 = sphi 0, %s43
    %s61 = sphi 0, %s61
    %s63 = sphi 0, %s61
    %s64 = sphi 0, %s63
    %s78 = sphi 0, %s64
    %s82 = sphi 0, %s82
    %s84 = sphi 0, %s82
    %s85 = sphi 0, %s84
    %s99 = sphi 0, %s85
    %s105 = sphi 0, %s107
    %s108 = sphi 0, %s105
    %s109 = sphi 0, %s108
    %s125 = sphi 0, %s109
    %s131 = sphi 0, %s133
    %s134 = sphi 0, %s131
    %s135 = sphi 0, %s134
    %s151 = sphi 0, %s135
  $region4: #{bn_add_relu_conv.1} parent=0 // loop_header_branch
    %14 = sbr.rel (%p12) target = $region8
  $region5: #{bn_add_relu_conv.1} parent=0 // loop_body
    %s16 = ssub.s32 %s11, 1
    %s17 = ssub.s32 %s11, 2
    %s18 = sadd.s32 %s11, 1
    %s20 = sadd.s32 %s19, 1
    %p23 = scmp.eq.s32.totalorder %s11, 1
    %p24 = scmp.ne.s32.totalorder %s19, %s21
    %p25 = scmp.eq.s32.totalorder %s11, 0
    %p26 = por %p24, %p25
    %p27 = scmp.ne.s32.totalorder %s19, %s21
    %p28 = scmp.eq.s32.totalorder %s16, 1
    %p29 = por %p27, %p28
    %p30 = scmp.ne.s32.totalorder %s21, %s22
    %p31 = scmp.eq.s32.totalorder %s16, 0
    %p32 = por %p30, %p31
    %p33 = scmp.ne.s32.totalorder %s21, %s22
    %p34 = scmp.eq.s32.totalorder %s17, 1
    %p35 = por %p33, %p34
    %p37 = scmp.ne.s32.totalorder %s22, %s36
    %p38 = scmp.eq.s32.totalorder %s17, 0
    %p39 = por %p37, %p38
    %s41 = sadd.s32 %s40, 1
    %p44 = scmp.eq.s32.totalorder %s11, 1
    %p45 = scmp.ne.s32.totalorder %s40, %s42
    %p46 = scmp.eq.s32.totalorder %s11, 0
    %p47 = por %p45, %p46
    %p48 = scmp.ne.s32.totalorder %s40, %s42
    %p49 = scmp.eq.s32.totalorder %s16, 1
    %p50 = por %p48, %p49
    %p51 = scmp.ne.s32.totalorder %s42, %s43
    %p52 = scmp.eq.s32.totalorder %s16, 0
    %p53 = por %p51, %p52
    %p54 = scmp.ne.s32.totalorder %s42, %s43
    %p55 = scmp.eq.s32.totalorder %s17, 1
    %p56 = por %p54, %p55
    %p58 = scmp.ne.s32.totalorder %s43, %s57
    %p59 = scmp.eq.s32.totalorder %s17, 0
    %p60 = por %p58, %p59
    %s62 = sadd.s32 %s61, 1
    %p65 = scmp.eq.s32.totalorder %s11, 1
    %p66 = scmp.ne.s32.totalorder %s61, %s63
    %p67 = scmp.eq.s32.totalorder %s11, 0
    %p68 = por %p66, %p67
    %p69 = scmp.ne.s32.totalorder %s61, %s63
    %p70 = scmp.eq.s32.totalorder %s16, 1
    %p71 = por %p69, %p70
    %p72 = scmp.ne.s32.totalorder %s63, %s64
    %p73 = scmp.eq.s32.totalorder %s16, 0
    %p74 = por %p72, %p73
    %p75 = scmp.ne.s32.totalorder %s63, %s64
    %p76 = scmp.eq.s32.totalorder %s17, 1
    %p77 = por %p75, %p76
    %p79 = scmp.ne.s32.totalorder %s64, %s78
    %p80 = scmp.eq.s32.totalorder %s17, 0
    %p81 = por %p79, %p80
    %s83 = sadd.s32 %s82, 1
    %p86 = scmp.eq.s32.totalorder %s11, 1
    %p87 = scmp.ne.s32.totalorder %s82, %s84
    %p88 = scmp.eq.s32.totalorder %s11, 0
    %p89 = por %p87, %p88
    %p90 = scmp.ne.s32.totalorder %s82, %s84
    %p91 = scmp.eq.s32.totalorder %s16, 1
    %p92 = por %p90, %p91
    %p93 = scmp.ne.s32.totalorder %s84, %s85
    %p94 = scmp.eq.s32.totalorder %s16, 0
    %p95 = por %p93, %p94
    %p96 = scmp.ne.s32.totalorder %s84, %s85
    %p97 = scmp.eq.s32.totalorder %s17, 1
    %p98 = por %p96, %p97
    %p100 = scmp.ne.s32.totalorder %s85, %s99
    %p101 = scmp.eq.s32.totalorder %s17, 0
    %p102 = por %p100, %p101
    %s103 = ssub.s32 %s11, %s18
    %p104 = scmp.eq.s32.totalorder %s103, 0
    %s106 = sadd.s32 %s105, 1
    %s107 = scalar_select %p104, %s105, %s106
    %p110 = pneg %p104
    %p111 = scmp.eq.s32.totalorder %s11, 1
    %p112 = por %p110, %p111
    %p113 = scmp.ne.s32.totalorder %s105, %s108
    %p114 = scmp.eq.s32.totalorder %s11, 0
    %p115 = por %p113, %p114
    %p116 = scmp.ne.s32.totalorder %s105, %s108
    %p117 = scmp.eq.s32.totalorder %s16, 1
    %p118 = por %p116, %p117
    %p119 = scmp.ne.s32.totalorder %s108, %s109
    %p120 = scmp.eq.s32.totalorder %s16, 0
    %p121 = por %p119, %p120
    %p122 = scmp.ne.s32.totalorder %s108, %s109
    %p123 = scmp.eq.s32.totalorder %s17, 1
    %p124 = por %p122, %p123
    %p126 = scmp.ne.s32.totalorder %s109, %s125
    %p127 = scmp.eq.s32.totalorder %s17, 0
    %p128 = por %p126, %p127
    %s129 = ssub.s32 %s11, %s18
    %p130 = scmp.eq.s32.totalorder %s129, 0
    %s132 = sadd.s32 %s131, 1
    %s133 = scalar_select %p130, %s131, %s132
    %p136 = pneg %p130
    %p137 = scmp.eq.s32.totalorder %s11, 1
    %p138 = por %p136, %p137
    %p139 = scmp.ne.s32.totalorder %s131, %s134
    %p140 = scmp.eq.s32.totalorder %s11, 0
    %p141 = por %p139, %p140
    %p142 = scmp.ne.s32.totalorder %s131, %s134
    %p143 = scmp.eq.s32.totalorder %s16, 1
    %p144 = por %p142, %p143
    %p145 = scmp.ne.s32.totalorder %s134, %s135
    %p146 = scmp.eq.s32.totalorder %s16, 0
    %p147 = por %p145, %p146
    %p148 = scmp.ne.s32.totalorder %s134, %s135
    %p149 = scmp.eq.s32.totalorder %s17, 1
    %p150 = por %p148, %p149
    %p152 = scmp.ne.s32.totalorder %s135, %s151
    %p153 = scmp.eq.s32.totalorder %s17, 0
    %p154 = por %p152, %p153
    %p155 = scmp.le.s32.totalorder 1, %s11
    %p156 = scmp.lt.s32.totalorder %s11, 3
    %p157 = pnand %p155, %p156
    %p158 = pneg %p157
    // Predicated region
    $region9: #{bn_add_relu_conv.1} parent=5 // pred_check
      _
    $region10: #{bn_add_relu_conv.1} parent=5 // pred_check_branch
      %160 = sbr.rel (%p157) target = $region12
    $region11: #{bn_add_relu_conv.1} parent=5 // pred_region
      %s161 = ssub.s32 %s11, 1
      // Predicated region
      $region13: #{bn_add_relu_conv.1} parent=11 // pred_check
        %p162 = pneg %p32
      $region14: #{bn_add_relu_conv.1} parent=11 // pred_check_branch
        %164 = sbr.rel (%p162) target = $region16
      $region15: #{bn_add_relu_conv.1} parent=11 // pred_region
        _
      $region16: #{bn_add_relu_conv.1} parent=11 // pred_fallthru
        _
      // Predicated region
      $region17: #{bn_add_relu_conv.1} parent=11 // pred_check
        %p165 = pneg %p53
      $region18: #{bn_add_relu_conv.1} parent=11 // pred_check_branch
        %167 = sbr.rel (%p165) target = $region20
      $region19: #{bn_add_relu_conv.1} parent=11 // pred_region
        _
      $region20: #{bn_add_relu_conv.1} parent=11 // pred_fallthru
        _
      // Predicated region
      $region21: #{bn_add_relu_conv.1} parent=11 // pred_check
        %p168 = pneg %p74
      $region22: #{bn_add_relu_conv.1} parent=11 // pred_check_branch
        %170 = sbr.rel (%p168) target = $region24
      $region23: #{bn_add_relu_conv.1} parent=11 // pred_region
        _
      $region24: #{bn_add_relu_conv.1} parent=11 // pred_fallthru
        _
      // Predicated region
      $region25: #{bn_add_relu_conv.1} parent=11 // pred_check
        %p171 = pneg %p95
      $region26: #{bn_add_relu_conv.1} parent=11 // pred_check_branch
        %173 = sbr.rel (%p171) target = $region28
      $region27: #{bn_add_relu_conv.1} parent=11 // pred_region
        _
      $region28: #{bn_add_relu_conv.1} parent=11 // pred_fallthru
        _
    $region12: #{bn_add_relu_conv.1} parent=5 // pred_fallthru
      _
    %p174 = scmp.lt.s32.totalorder %s11, 2
    // Predicated region
    $region29: #{bn_add_relu_conv.1} parent=5 // pred_check
      %p175 = pneg %p174
    $region30: #{bn_add_relu_conv.1} parent=5 // pred_check_branch
      %177 = sbr.rel (%p175) target = $region32
    $region31: #{bn_add_relu_conv.1} parent=5 // pred_region
      // Predicated region
      $region33: #{bn_add_relu_conv.1} parent=31 // pred_check
        %p178 = pneg %p115
      $region34: #{bn_add_relu_conv.1} parent=31 // pred_check_branch
        %180 = sbr.rel (%p178) target = $region36
      $region35: #{bn_add_relu_conv.1} parent=31 // pred_region
        %s181 = smul.u32 32, %s11
        %p182 = scmp.lt.s32.totalorder %s181, 63
        %s183 = scalar_select %p182, %s181, 63
        %s184 = smul.addr %s183, 4
        %s185 = smul.addr %s184, 4
        %s186 = scalar_lea.vmem %s4, %s185
        %s187 = smul.u32 32, %s11
      $region36: #{bn_add_relu_conv.1} parent=31 // pred_fallthru
        _
    $region32: #{bn_add_relu_conv.1} parent=5 // pred_fallthru
      _
    %p188 = scmp.le.s32.totalorder 1, %s11
    %p189 = scmp.lt.s32.totalorder %s11, 3
    %p190 = pnand %p188, %p189
    %p191 = pneg %p190
    // Predicated region
    $region37: #{bn_add_relu_conv.1} parent=5 // pred_check
      _
    $region38: #{bn_add_relu_conv.1} parent=5 // pred_check_branch
      %193 = sbr.rel (%p190) target = $region40
    $region39: #{bn_add_relu_conv.1} parent=5 // pred_region
      %s194 = ssub.s32 %s11, 1
      %p195 = pneg %p32
      %p196 = pneg %p29
      %p197 = pneg %p53
      %p198 = pneg %p50
      %p199 = pneg %p74
      %p200 = pneg %p71
      %p201 = pneg %p95
      %p202 = pneg %p92
      %s203 = smul.u32 32, %s16
      %p204 = scmp.lt.s32.totalorder %s203, 63
      %s205 = scalar_select %p204, %s203, 63
      %s206 = smul.addr %s205, 4
      %s207 = smul.addr %s206, 4
      %s208 = scalar_lea.vmem %s4, %s207
      %p209 = pneg %p121
      %p210 = pneg %p118
      %p211 = pneg %p147
      %p212 = pneg %p144
      %s213 = smul.u32 32, %s16
      %p214 = scmp.lt.s32.totalorder %s213, 63
      %s215 = scalar_select %p214, %s213, 63
      %s216 = smul.addr %s215, 2
      %s217 = smul.addr %s216, 8
      %s218 = scalar_lea.vmem %s5, %s217
      %s219 = smul.u32 32, %s16
      %p220 = scmp.lt.s32.totalorder %s219, 63
      %s221 = scalar_select %p220, %s219, 63
      %s222 = smul.addr %s221, 4
      %s223 = smul.addr %s222, 4
      %s224 = scalar_lea.vmem %s4, %s223
      %s225 = smul.u32 32, %s16
      %s226 = smul.u32 32, %s16
      %p227 = scmp.lt.s32.totalorder %s226, 63
      %s228 = scalar_select %p227, %s226, 63
      %s229 = smul.addr %s228, 2
      %s230 = smul.addr %s229, 8
      %s231 = scalar_lea.vmem %s5, %s230
      %s232 = smul.u32 32, %s16
      %v233 = vld [vmem:[%s0] sm:$0xff]
      %v234 = vld [vmem:[%s0 + $0x8] sm:$0xff]
      %v235 = vld [vmem:[%s0 + $0x10] sm:$0xff]
      %v236 = vld [vmem:[%s0 + $0x18] sm:$0xff]
      %v237 = vld [vmem:[%s0 + $0x20] sm:$0xff]
      %v238 = vld [vmem:[%s0 + $0x28] sm:$0xff]
      %v239 = vld [vmem:[%s0 + $0x30] sm:$0xff]
      %v240 = vld [vmem:[%s0 + $0x38] sm:$0xff]
      %v241 = vld [vmem:[%s0 + $0x40] sm:$0xff]
      %v242 = vld [vmem:[%s0 + $0x48] sm:$0xff]
      %v243 = vld [vmem:[%s0 + $0x50] sm:$0xff]
      %v244 = vld [vmem:[%s0 + $0x58] sm:$0xff]
      %v245 = vld [vmem:[%s0 + $0x60] sm:$0xff]
      %v246 = vld [vmem:[%s0 + $0x68] sm:$0xff]
      %v247 = vld [vmem:[%s0 + $0x70] sm:$0xff]
      %v248 = vld [vmem:[%s0 + $0x78] sm:$0xff]
      %v249 = vld [vmem:[%s0 + $0x80] sm:$0xff]
      %v250 = vld [vmem:[%s0 + $0x88] sm:$0xff]
      %v251 = vld [vmem:[%s0 + $0x90] sm:$0xff]
      %v252 = vld [vmem:[%s0 + $0x98] sm:$0xff]
      %v253 = vld [vmem:[%s0 + $0xa0] sm:$0xff]
      %v254 = vld [vmem:[%s0 + $0xa8] sm:$0xff]
      %v255 = vld [vmem:[%s0 + $0xb0] sm:$0xff]
      %v256 = vld [vmem:[%s0 + $0xb8] sm:$0xff]
      %v257 = vld [vmem:[%s0 + $0xc0] sm:$0xff]
      %v258 = vld [vmem:[%s0 + $0xc8] sm:$0xff]
      %v259 = vld [vmem:[%s0 + $0xd0] sm:$0xff]
      %v260 = vld [vmem:[%s0 + $0xd8] sm:$0xff]
      %v261 = vld [vmem:[%s0 + $0xe0] sm:$0xff]
      %v262 = vld [vmem:[%s0 + $0xe8] sm:$0xff]
      %v263 = vld [vmem:[%s0 + $0xf0] sm:$0xff]
      %v264 = vld [vmem:[%s0 + $0xf8] sm:$0xff]
      %v265 = vld [vmem:[%s0 + $0x100] sm:$0xff]
      %v266 = vld [vmem:[%s0 + $0x108] sm:$0xff]
      %v267 = vld [vmem:[%s0 + $0x110] sm:$0xff]
      %v268 = vld [vmem:[%s0 + $0x118] sm:$0xff]
      %v269 = vld [vmem:[%s0 + $0x120] sm:$0xff]
      %v270 = vld [vmem:[%s0 + $0x128] sm:$0xff]
      %v271 = vld [vmem:[%s0 + $0x130] sm:$0xff]
      %v272 = vld [vmem:[%s0 + $0x138] sm:$0xff]
      %v273 = vld [vmem:[%s0 + $0x140] sm:$0xff]
      %v274 = vld [vmem:[%s0 + $0x148] sm:$0xff]
      %v275 = vld [vmem:[%s0 + $0x150] sm:$0xff]
      %v276 = vld [vmem:[%s0 + $0x158] sm:$0xff]
      %v277 = vld [vmem:[%s0 + $0x160] sm:$0xff]
      %v278 = vld [vmem:[%s0 + $0x168] sm:$0xff]
      %v279 = vld [vmem:[%s0 + $0x170] sm:$0xff]
      %v280 = vld [vmem:[%s0 + $0x178] sm:$0xff]
      %v281 = vld [vmem:[%s0 + $0x180] sm:$0xff]
      %v282 = vld [vmem:[%s0 + $0x188] sm:$0xff]
      %v283 = vld [vmem:[%s0 + $0x190] sm:$0xff]
      %v284 = vld [vmem:[%s0 + $0x198] sm:$0xff]
      %v285 = vld [vmem:[%s0 + $0x1a0] sm:$0xff]
      %v286 = vld [vmem:[%s0 + $0x1a8] sm:$0xff]
      %v287 = vld [vmem:[%s0 + $0x1b0] sm:$0xff]
      %v288 = vld [vmem:[%s0 + $0x1b8] sm:$0xff]
      %v289 = vld [vmem:[%s0 + $0x1c0] sm:$0xff]
      %v290 = vld [vmem:[%s0 + $0x1c8] sm:$0xff]
      %v291 = vld [vmem:[%s0 + $0x1d0] sm:$0xff]
      %v292 = vld [vmem:[%s0 + $0x1d8] sm:$0xff]
      %v293 = vld [vmem:[%s0 + $0x1e0] sm:$0xff]
      %v294 = vld [vmem:[%s0 + $0x1e8] sm:$0xff]
      %v295 = vld [vmem:[%s0 + $0x1f0] sm:$0xff]
      %v296 = vld [vmem:[%s0 + $0x1f8] sm:$0xff]
      %v297 = vld [vmem:[%s0 + $0x200] sm:$0xff]
      %v298 = vld [vmem:[%s0 + $0x208] sm:$0xff]
      %v299 = vld [vmem:[%s0 + $0x210] sm:$0xff]
      %v300 = vld [vmem:[%s0 + $0x218] sm:$0xff]
      %v301 = vld [vmem:[%s0 + $0x220] sm:$0xff]
      %v302 = vld [vmem:[%s0 + $0x228] sm:$0xff]
      %v303 = vld [vmem:[%s0 + $0x230] sm:$0xff]
      %v304 = vld [vmem:[%s0 + $0x238] sm:$0xff]
      %v305 = vld [vmem:[%s0 + $0x240] sm:$0xff]
      %v306 = vld [vmem:[%s0 + $0x248] sm:$0xff]
      %v307 = vld [vmem:[%s0 + $0x250] sm:$0xff]
      %v308 = vld [vmem:[%s0 + $0x258] sm:$0xff]
      %v309 = vld [vmem:[%s0 + $0x260] sm:$0xff]
      %v310 = vld [vmem:[%s0 + $0x268] sm:$0xff]
      %v311 = vld [vmem:[%s0 + $0x270] sm:$0xff]
      %v312 = vld [vmem:[%s0 + $0x278] sm:$0xff]
      %v313 = vld [vmem:[%s0 + $0x280] sm:$0xff]
      %v314 = vld [vmem:[%s0 + $0x288] sm:$0xff]
      %v315 = vld [vmem:[%s0 + $0x290] sm:$0xff]
      %v316 = vld [vmem:[%s0 + $0x298] sm:$0xff]
      %v317 = vld [vmem:[%s0 + $0x2a0] sm:$0xff]
      %v318 = vld [vmem:[%s0 + $0x2a8] sm:$0xff]
      %v319 = vld [vmem:[%s0 + $0x2b0] sm:$0xff]
      %v320 = vld [vmem:[%s0 + $0x2b8] sm:$0xff]
      %v321 = vld [vmem:[%s0 + $0x2c0] sm:$0xff]
      %v322 = vld [vmem:[%s0 + $0x2c8] sm:$0xff]
      %v323 = vld [vmem:[%s0 + $0x2d0] sm:$0xff]
      %v324 = vld [vmem:[%s0 + $0x2d8] sm:$0xff]
      %v325 = vld [vmem:[%s0 + $0x2e0] sm:$0xff]
      %v326 = vld [vmem:[%s0 + $0x2e8] sm:$0xff]
      %v327 = vld [vmem:[%s0 + $0x2f0] sm:$0xff]
      %v328 = vld [vmem:[%s0 + $0x2f8] sm:$0xff]
      %v329 = vld [vmem:[%s0 + $0x300] sm:$0xff]
      %v330 = vld [vmem:[%s0 + $0x308] sm:$0xff]
      %v331 = vld [vmem:[%s0 + $0x310] sm:$0xff]
      %v332 = vld [vmem:[%s0 + $0x318] sm:$0xff]
      %v333 = vld [vmem:[%s0 + $0x320] sm:$0xff]
      %v334 = vld [vmem:[%s0 + $0x328] sm:$0xff]
      %v335 = vld [vmem:[%s0 + $0x330] sm:$0xff]
      %v336 = vld [vmem:[%s0 + $0x338] sm:$0xff]
      %v337 = vld [vmem:[%s0 + $0x340] sm:$0xff]
      %v338 = vld [vmem:[%s0 + $0x348] sm:$0xff]
      %v339 = vld [vmem:[%s0 + $0x350] sm:$0xff]
      %v340 = vld [vmem:[%s0 + $0x358] sm:$0xff]
      %v341 = vld [vmem:[%s0 + $0x360] sm:$0xff]
      %v342 = vld [vmem:[%s0 + $0x368] sm:$0xff]
      %v343 = vld [vmem:[%s0 + $0x370] sm:$0xff]
      %v344 = vld [vmem:[%s0 + $0x378] sm:$0xff]
      %v345 = vld [vmem:[%s0 + $0x380] sm:$0xff]
      %v346 = vld [vmem:[%s0 + $0x388] sm:$0xff]
      %v347 = vld [vmem:[%s0 + $0x390] sm:$0xff]
      %v348 = vld [vmem:[%s0 + $0x398] sm:$0xff]
      %v349 = vld [vmem:[%s0 + $0x3a0] sm:$0xff]
      %v350 = vld [vmem:[%s0 + $0x3a8] sm:$0xff]
      %v351 = vld [vmem:[%s0 + $0x3b0] sm:$0xff]
      %v352 = vld [vmem:[%s0 + $0x3b8] sm:$0xff]
      %v353 = vld [vmem:[%s0 + $0x3c0] sm:$0xff]
      %v354 = vld [vmem:[%s0 + $0x3c8] sm:$0xff]
      %v355 = vld [vmem:[%s0 + $0x3d0] sm:$0xff]
      %v356 = vld [vmem:[%s0 + $0x3d8] sm:$0xff]
      %v357 = vld [vmem:[%s0 + $0x3e0] sm:$0xff]
      %v358 = vld [vmem:[%s0 + $0x3e8] sm:$0xff]
      %v359 = vld [vmem:[%s0 + $0x3f0] sm:$0xff]
      %v360 = vld [vmem:[%s0 + $0x3f8] sm:$0xff]
      %v361 = vadd.f32 %v233, %v234
      %362 = vadd.xlane.f32.xlu0 %v361
      %v363 = vpop.xlane.xlu0 %362
      %v364 = vadd.f32 %v235, %v236
      %365 = vadd.xlane.f32.xlu0 %v364
      %v366 = vpop.xlane.xlu0 %365
      %v367 = vadd.f32 %v237, %v238
      %368 = vadd.xlane.f32.xlu0 %v367
      %v369 = vpop.xlane.xlu0 %368
      %v370 = vadd.f32 %v239, %v240
      %371 = vadd.xlane.f32.xlu0 %v370
      %v372 = vpop.xlane.xlu0 %371
      %v373 = vadd.f32 %v241, %v242
      %374 = vadd.xlane.f32.xlu0 %v373
      %v375 = vpop.xlane.xlu0 %374
      %v376 = vadd.f32 %v243, %v244
      %377 = vadd.xlane.f32.xlu0 %v376
      %v378 = vpop.xlane.xlu0 %377
      %v379 = vadd.f32 %v245, %v246
      %380 = vadd.xlane.f32.xlu0 %v379
      %v381 = vpop.xlane.xlu0 %380
      %v382 = vadd.f32 %v247, %v248
      %383 = vadd.xlane.f32.xlu0 %v382
      %v384 = vpop.xlane.xlu0 %383
      %v385 = vadd.f32 %v249, %v250
      %386 = vadd.xlane.f32.xlu0 %v385
      %v387 = vpop.xlane.xlu0 %386
      %v388 = vadd.f32 %v251, %v252
      %389 = vadd.xlane.f32.xlu0 %v388
      %v390 = vpop.xlane.xlu0 %389
      %v391 = vadd.f32 %v253, %v254
      %392 = vadd.xlane.f32.xlu0 %v391
      %v393 = vpop.xlane.xlu0 %392
      %v394 = vadd.f32 %v255, %v256
      %395 = vadd.xlane.f32.xlu0 %v394
      %v396 = vpop.xlane.xlu0 %395
      %v397 = vadd.f32 %v257, %v258
      %398 = vadd.xlane.f32.xlu0 %v397
      %v399 = vpop.xlane.xlu0 %398
      %v400 = vadd.f32 %v259, %v260
      %401 = vadd.xlane.f32.xlu0 %v400
      %v402 = vpop.xlane.xlu0 %401
      %v403 = vadd.f32 %v261, %v262
      %404 = vadd.xlane.f32.xlu0 %v403
      %v405 = vpop.xlane.xlu0 %404
      %v406 = vadd.f32 %v263, %v264
      %407 = vadd.xlane.f32.xlu0 %v406
      %v408 = vpop.xlane.xlu0 %407
      %v409 = vadd.f32 %v265, %v266
      %410 = vadd.xlane.f32.xlu0 %v409
      %v411 = vpop.xlane.xlu0 %410
      %v412 = vadd.f32 %v267, %v268
      %413 = vadd.xlane.f32.xlu0 %v412
      %v414 = vpop.xlane.xlu0 %413
      %v415 = vadd.f32 %v269, %v270
      %416 = vadd.xlane.f32.xlu0 %v415
      %v417 = vpop.xlane.xlu0 %416
      %v418 = vadd.f32 %v271, %v272
      %419 = vadd.xlane.f32.xlu0 %v418
      %v420 = vpop.xlane.xlu0 %419
      %v421 = vadd.f32 %v273, %v274
      %422 = vadd.xlane.f32.xlu0 %v421
      %v423 = vpop.xlane.xlu0 %422
      %v424 = vadd.f32 %v275, %v276
      %425 = vadd.xlane.f32.xlu0 %v424
      %v426 = vpop.xlane.xlu0 %425
      %v427 = vadd.f32 %v277, %v278
      %428 = vadd.xlane.f32.xlu0 %v427
      %v429 = vpop.xlane.xlu0 %428
      %v430 = vadd.f32 %v279, %v280
      %431 = vadd.xlane.f32.xlu0 %v430
      %v432 = vpop.xlane.xlu0 %431
      %v433 = vadd.f32 %v281, %v282
      %434 = vadd.xlane.f32.xlu0 %v433
      %v435 = vpop.xlane.xlu0 %434
      %v436 = vadd.f32 %v283, %v284
      %437 = vadd.xlane.f32.xlu0 %v436
      %v438 = vpop.xlane.xlu0 %437
      %v439 = vadd.f32 %v285, %v286
      %440 = vadd.xlane.f32.xlu0 %v439
      %v441 = vpop.xlane.xlu0 %440
      %v442 = vadd.f32 %v287, %v288
      %443 = vadd.xlane.f32.xlu0 %v442
      %v444 = vpop.xlane.xlu0 %443
      %v445 = vadd.f32 %v289, %v290
      %446 = vadd.xlane.f32.xlu0 %v445
      %v447 = vpop.xlane.xlu0 %446
      %v448 = vadd.f32 %v291, %v292
      %449 = vadd.xlane.f32.xlu0 %v448
      %v450 = vpop.xlane.xlu0 %449
      %v451 = vadd.f32 %v293, %v294
      %452 = vadd.xlane.f32.xlu0 %v451
      %v453 = vpop.xlane.xlu0 %452
      %v454 = vadd.f32 %v295, %v296
      %455 = vadd.xlane.f32.xlu0 %v454
      %v456 = vpop.xlane.xlu0 %455
      %v457 = vadd.f32 %v297, %v298
      %458 = vadd.xlane.f32.xlu0 %v457
      %v459 = vpop.xlane.xlu0 %458
      %v460 = vadd.f32 %v299, %v300
      %461 = vadd.xlane.f32.xlu0 %v460
      %v462 = vpop.xlane.xlu0 %461
      %v463 = vadd.f32 %v301, %v302
      %464 = vadd.xlane.f32.xlu0 %v463
      %v465 = vpop.xlane.xlu0 %464
      %v466 = vadd.f32 %v303, %v304
      %467 = vadd.xlane.f32.xlu0 %v466
      %v468 = vpop.xlane.xlu0 %467
      %v469 = vadd.f32 %v305, %v306
      %470 = vadd.xlane.f32.xlu0 %v469
      %v471 = vpop.xlane.xlu0 %470
      %v472 = vadd.f32 %v307, %v308
      %473 = vadd.xlane.f32.xlu0 %v472
      %v474 = vpop.xlane.xlu0 %473
      %v475 = vadd.f32 %v309, %v310
      %476 = vadd.xlane.f32.xlu0 %v475
      %v477 = vpop.xlane.xlu0 %476
      %v478 = vadd.f32 %v311, %v312
      %479 = vadd.xlane.f32.xlu0 %v478
      %v480 = vpop.xlane.xlu0 %479
      %v481 = vadd.f32 %v313, %v314
      %482 = vadd.xlane.f32.xlu0 %v481
      %v483 = vpop.xlane.xlu0 %482
      %v484 = vadd.f32 %v315, %v316
      %485 = vadd.xlane.f32.xlu0 %v484
      %v486 = vpop.xlane.xlu0 %485
      %v487 = vadd.f32 %v317, %v318
      %488 = vadd.xlane.f32.xlu0 %v487
      %v489 = vpop.xlane.xlu0 %488
      %v490 = vadd.f32 %v319, %v320
      %491 = vadd.xlane.f32.xlu0 %v490
      %v492 = vpop.xlane.xlu0 %491
      %v493 = vadd.f32 %v321, %v322
      %494 = vadd.xlane.f32.xlu0 %v493
      %v495 = vpop.xlane.xlu0 %494
      %v496 = vadd.f32 %v323, %v324
      %497 = vadd.xlane.f32.xlu0 %v496
      %v498 = vpop.xlane.xlu0 %497
      %v499 = vadd.f32 %v325, %v326
      %500 = vadd.xlane.f32.xlu0 %v499
      %v501 = vpop.xlane.xlu0 %500
      %v502 = vadd.f32 %v327, %v328
      %503 = vadd.xlane.f32.xlu0 %v502
      %v504 = vpop.xlane.xlu0 %503
      %v505 = vadd.f32 %v329, %v330
      %506 = vadd.xlane.f32.xlu0 %v505
      %v507 = vpop.xlane.xlu0 %506
      %v508 = vadd.f32 %v331, %v332
      %509 = vadd.xlane.f32.xlu0 %v508
      %v510 = vpop.xlane.xlu0 %509
      %v511 = vadd.f32 %v333, %v334
      %512 = vadd.xlane.f32.xlu0 %v511
      %v513 = vpop.xlane.xlu0 %512
      %v514 = vadd.f32 %v335, %v336
      %515 = vadd.xlane.f32.xlu0 %v514
      %v516 = vpop.xlane.xlu0 %515
      %v517 = vadd.f32 %v337, %v338
      %518 = vadd.xlane.f32.xlu0 %v517
      %v519 = vpop.xlane.xlu0 %518
      %v520 = vadd.f32 %v339, %v340
      %521 = vadd.xlane.f32.xlu0 %v520
      %v522 = vpop.xlane.xlu0 %521
      %v523 = vadd.f32 %v341, %v342
      %524 = vadd.xlane.f32.xlu0 %v523
      %v525 = vpop.xlane.xlu0 %524
      %v526 = vadd.f32 %v343, %v344
      %527 = vadd.xlane.f32.xlu0 %v526
      %v528 = vpop.xlane.xlu0 %527
      %v529 = vadd.f32 %v345, %v346
      %530 = vadd.xlane.f32.xlu0 %v529
      %v531 = vpop.xlane.xlu0 %530
      %v532 = vadd.f32 %v347, %v348
      %533 = vadd.xlane.f32.xlu0 %v532
      %v534 = vpop.xlane.xlu0 %533
      %v535 = vadd.f32 %v349, %v350
      %536 = vadd.xlane.f32.xlu0 %v535
      %v537 = vpop.xlane.xlu0 %536
      %v538 = vadd.f32 %v351, %v352
      %539 = vadd.xlane.f32.xlu0 %v538
      %v540 = vpop.xlane.xlu0 %539
      %v541 = vadd.f32 %v353, %v354
      %542 = vadd.xlane.f32.xlu0 %v541
      %v543 = vpop.xlane.xlu0 %542
      %v544 = vadd.f32 %v355, %v356
      %545 = vadd.xlane.f32.xlu0 %v544
      %v546 = vpop.xlane.xlu0 %545
      %v547 = vadd.f32 %v357, %v358
      %548 = vadd.xlane.f32.xlu0 %v547
      %v549 = vpop.xlane.xlu0 %548
      %v550 = vadd.f32 %v359, %v360
      %551 = vadd.xlane.f32.xlu0 %v550
      %v552 = vpop.xlane.xlu0 %551
      %v553 = vmul.f32 %v233, %v233
      %v554 = vmul.f32 %v234, %v234
      %v555 = vmul.f32 %v235, %v235
      %v556 = vmul.f32 %v236, %v236
      %v557 = vmul.f32 %v237, %v237
      %v558 = vmul.f32 %v238, %v238
      %v559 = vmul.f32 %v239, %v239
      %v560 = vmul.f32 %v240, %v240
      %v561 = vmul.f32 %v241, %v241
      %v562 = vmul.f32 %v242, %v242
      %v563 = vmul.f32 %v243, %v243
      %v564 = vmul.f32 %v244, %v244
      %v565 = vmul.f32 %v245, %v245
      %v566 = vmul.f32 %v246, %v246
      %v567 = vmul.f32 %v247, %v247
      %v568 = vmul.f32 %v248, %v248
      %v569 = vmul.f32 %v249, %v249
      %v570 = vmul.f32 %v250, %v250
      %v571 = vmul.f32 %v251, %v251
      %v572 = vmul.f32 %v252, %v252
      %v573 = vmul.f32 %v253, %v253
      %v574 = vmul.f32 %v254, %v254
      %v575 = vmul.f32 %v255, %v255
      %v576 = vmul.f32 %v256, %v256
      %v577 = vmul.f32 %v257, %v257
      %v578 = vmul.f32 %v258, %v258
      %v579 = vmul.f32 %v259, %v259
      %v580 = vmul.f32 %v260, %v260
      %v581 = vmul.f32 %v261, %v261
      %v582 = vmul.f32 %v262, %v262
      %v583 = vmul.f32 %v263, %v263
      %v584 = vmul.f32 %v264, %v264
      %v585 = vmul.f32 %v265, %v265
      %v586 = vmul.f32 %v266, %v266
      %v587 = vmul.f32 %v267, %v267
      %v588 = vmul.f32 %v268, %v268
      %v589 = vmul.f32 %v269, %v269
      %v590 = vmul.f32 %v270, %v270
      %v591 = vmul.f32 %v271, %v271
      %v592 = vmul.f32 %v272, %v272
      %v593 = vmul.f32 %v273, %v273
      %v594 = vmul.f32 %v274, %v274
      %v595 = vmul.f32 %v275, %v275
      %v596 = vmul.f32 %v276, %v276
      %v597 = vmul.f32 %v277, %v277
      %v598 = vmul.f32 %v278, %v278
      %v599 = vmul.f32 %v279, %v279
      %v600 = vmul.f32 %v280, %v280
      %v601 = vmul.f32 %v281, %v281
      %v602 = vmul.f32 %v282, %v282
      %v603 = vmul.f32 %v283, %v283
      %v604 = vmul.f32 %v284, %v284
      %v605 = vmul.f32 %v285, %v285
      %v606 = vmul.f32 %v286, %v286
      %v607 = vmul.f32 %v287, %v287
      %v608 = vmul.f32 %v288, %v288
      %v609 = vmul.f32 %v289, %v289
      %v610 = vmul.f32 %v290, %v290
      %v611 = vmul.f32 %v291, %v291
      %v612 = vmul.f32 %v292, %v292
      %v613 = vmul.f32 %v293, %v293
      %v614 = vmul.f32 %v294, %v294
      %v615 = vmul.f32 %v295, %v295
      %v616 = vmul.f32 %v296, %v296
      %v617 = vmul.f32 %v297, %v297
      %v618 = vmul.f32 %v298, %v298
      %v619 = vmul.f32 %v299, %v299
      %v620 = vmul.f32 %v300, %v300
      %v621 = vmul.f32 %v301, %v301
      %v622 = vmul.f32 %v302, %v302
      %v623 = vmul.f32 %v303, %v303
      %v624 = vmul.f32 %v304, %v304
      %v625 = vmul.f32 %v305, %v305
      %v626 = vmul.f32 %v306, %v306
      %v627 = vmul.f32 %v307, %v307
      %v628 = vmul.f32 %v308, %v308
      %v629 = vmul.f32 %v309, %v309
      %v630 = vmul.f32 %v310, %v310
      %v631 = vmul.f32 %v311, %v311
      %v632 = vmul.f32 %v312, %v312
      %v633 = vmul.f32 %v313, %v313
      %v634 = vmul.f32 %v314, %v314
      %v635 = vmul.f32 %v315, %v315
      %v636 = vmul.f32 %v316, %v316
      %v637 = vmul.f32 %v317, %v317
      %v638 = vmul.f32 %v318, %v318
      %v639 = vmul.f32 %v319, %v319
      %v640 = vmul.f32 %v320, %v320
      %v641 = vmul.f32 %v321, %v321
      %v642 = vmul.f32 %v322, %v322
      %v643 = vmul.f32 %v323, %v323
      %v644 = vmul.f32 %v324, %v324
      %v645 = vmul.f32 %v325, %v325
      %v646 = vmul.f32 %v326, %v326
      %v647 = vmul.f32 %v327, %v327
      %v648 = vmul.f32 %v328, %v328
      %v649 = vmul.f32 %v329, %v329
      %v650 = vmul.f32 %v330, %v330
      %v651 = vmul.f32 %v331, %v331
      %v652 = vmul.f32 %v332, %v332
      %v653 = vmul.f32 %v333, %v333
      %v654 = vmul.f32 %v334, %v334
      %v655 = vmul.f32 %v335, %v335
      %v656 = vmul.f32 %v336, %v336
      %v657 = vmul.f32 %v337, %v337
      %v658 = vmul.f32 %v338, %v338
      %v659 = vmul.f32 %v339, %v339
      %v660 = vmul.f32 %v340, %v340
      %v661 = vmul.f32 %v341, %v341
      %v662 = vmul.f32 %v342, %v342
      %v663 = vmul.f32 %v343, %v343
      %v664 = vmul.f32 %v344, %v344
      %v665 = vmul.f32 %v345, %v345
      %v666 = vmul.f32 %v346, %v346
      %v667 = vmul.f32 %v347, %v347
      %v668 = vmul.f32 %v348, %v348
      %v669 = vmul.f32 %v349, %v349
      %v670 = vmul.f32 %v350, %v350
      %v671 = vmul.f32 %v351, %v351
      %v672 = vmul.f32 %v352, %v352
      %v673 = vmul.f32 %v353, %v353
      %v674 = vmul.f32 %v354, %v354
      %v675 = vmul.f32 %v355, %v355
      %v676 = vmul.f32 %v356, %v356
      %v677 = vmul.f32 %v357, %v357
      %v678 = vmul.f32 %v358, %v358
      %v679 = vmul.f32 %v359, %v359
      %v680 = vmul.f32 %v360, %v360
      %v681 = vadd.f32 %v553, %v554
      %682 = vadd.xlane.f32.xlu0 %v681
      %v683 = vpop.xlane.xlu0 %682
      %v684 = vadd.f32 %v555, %v556
      %685 = vadd.xlane.f32.xlu0 %v684
      %v686 = vpop.xlane.xlu0 %685
      %v687 = vadd.f32 %v557, %v558
      %688 = vadd.xlane.f32.xlu0 %v687
      %v689 = vpop.xlane.xlu0 %688
      %v690 = vadd.f32 %v559, %v560
      %691 = vadd.xlane.f32.xlu0 %v690
      %v692 = vpop.xlane.xlu0 %691
      %v693 = vadd.f32 %v561, %v562
      %694 = vadd.xlane.f32.xlu0 %v693
      %v695 = vpop.xlane.xlu0 %694
      %v696 = vadd.f32 %v563, %v564
      %697 = vadd.xlane.f32.xlu0 %v696
      %v698 = vpop.xlane.xlu0 %697
      %v699 = vadd.f32 %v565, %v566
      %700 = vadd.xlane.f32.xlu0 %v699
      %v701 = vpop.xlane.xlu0 %700
      %v702 = vadd.f32 %v567, %v568
      %703 = vadd.xlane.f32.xlu0 %v702
      %v704 = vpop.xlane.xlu0 %703
      %v705 = vadd.f32 %v569, %v570
      %706 = vadd.xlane.f32.xlu0 %v705
      %v707 = vpop.xlane.xlu0 %706
      %v708 = vadd.f32 %v571, %v572
      %709 = vadd.xlane.f32.xlu0 %v708
      %v710 = vpop.xlane.xlu0 %709
      %v711 = vadd.f32 %v573, %v574
      %712 = vadd.xlane.f32.xlu0 %v711
      %v713 = vpop.xlane.xlu0 %712
      %v714 = vadd.f32 %v575, %v576
      %715 = vadd.xlane.f32.xlu0 %v714
      %v716 = vpop.xlane.xlu0 %715
      %v717 = vadd.f32 %v577, %v578
      %718 = vadd.xlane.f32.xlu0 %v717
      %v719 = vpop.xlane.xlu0 %718
      %v720 = vadd.f32 %v579, %v580
      %721 = vadd.xlane.f32.xlu0 %v720
      %v722 = vpop.xlane.xlu0 %721
      %v723 = vadd.f32 %v581, %v582
      %724 = vadd.xlane.f32.xlu0 %v723
      %v725 = vpop.xlane.xlu0 %724
      %v726 = vadd.f32 %v583, %v584
      %727 = vadd.xlane.f32.xlu0 %v726
      %v728 = vpop.xlane.xlu0 %727
      %v729 = vadd.f32 %v585, %v586
      %730 = vadd.xlane.f32.xlu0 %v729
      %v731 = vpop.xlane.xlu0 %730
      %v732 = vadd.f32 %v587, %v588
      %733 = vadd.xlane.f32.xlu0 %v732
      %v734 = vpop.xlane.xlu0 %733
      %v735 = vadd.f32 %v589, %v590
      %736 = vadd.xlane.f32.xlu0 %v735
      %v737 = vpop.xlane.xlu0 %736
      %v738 = vadd.f32 %v591, %v592
      %739 = vadd.xlane.f32.xlu0 %v738
      %v740 = vpop.xlane.xlu0 %739
      %v741 = vadd.f32 %v593, %v594
      %742 = vadd.xlane.f32.xlu0 %v741
      %v743 = vpop.xlane.xlu0 %742
      %v744 = vadd.f32 %v595, %v596
      %745 = vadd.xlane.f32.xlu0 %v744
      %v746 = vpop.xlane.xlu0 %745
      %v747 = vadd.f32 %v597, %v598
      %748 = vadd.xlane.f32.xlu0 %v747
      %v749 = vpop.xlane.xlu0 %748
      %v750 = vadd.f32 %v599, %v600
      %751 = vadd.xlane.f32.xlu0 %v750
      %v752 = vpop.xlane.xlu0 %751
      %v753 = vadd.f32 %v601, %v602
      %754 = vadd.xlane.f32.xlu0 %v753
      %v755 = vpop.xlane.xlu0 %754
      %v756 = vadd.f32 %v603, %v604
      %757 = vadd.xlane.f32.xlu0 %v756
      %v758 = vpop.xlane.xlu0 %757
      %v759 = vadd.f32 %v605, %v606
      %760 = vadd.xlane.f32.xlu0 %v759
      %v761 = vpop.xlane.xlu0 %760
      %v762 = vadd.f32 %v607, %v608
      %763 = vadd.xlane.f32.xlu0 %v762
      %v764 = vpop.xlane.xlu0 %763
      %v765 = vadd.f32 %v609, %v610
      %766 = vadd.xlane.f32.xlu0 %v765
      %v767 = vpop.xlane.xlu0 %766
      %v768 = vadd.f32 %v611, %v612
      %769 = vadd.xlane.f32.xlu0 %v768
      %v770 = vpop.xlane.xlu0 %769
      %v771 = vadd.f32 %v613, %v614
      %772 = vadd.xlane.f32.xlu0 %v771
      %v773 = vpop.xlane.xlu0 %772
      %v774 = vadd.f32 %v615, %v616
      %775 = vadd.xlane.f32.xlu0 %v774
      %v776 = vpop.xlane.xlu0 %775
      %v777 = vadd.f32 %v617, %v618
      %778 = vadd.xlane.f32.xlu0 %v777
      %v779 = vpop.xlane.xlu0 %778
      %v780 = vadd.f32 %v619, %v620
      %781 = vadd.xlane.f32.xlu0 %v780
      %v782 = vpop.xlane.xlu0 %781
      %v783 = vadd.f32 %v621, %v622
      %784 = vadd.xlane.f32.xlu0 %v783
      %v785 = vpop.xlane.xlu0 %784
      %v786 = vadd.f32 %v623, %v624
      %787 = vadd.xlane.f32.xlu0 %v786
      %v788 = vpop.xlane.xlu0 %787
      %v789 = vadd.f32 %v625, %v626
      %790 = vadd.xlane.f32.xlu0 %v789
      %v791 = vpop.xlane.xlu0 %790
      %v792 = vadd.f32 %v627, %v628
      %793 = vadd.xlane.f32.xlu0 %v792
      %v794 = vpop.xlane.xlu0 %793
      %v795 = vadd.f32 %v629, %v630
      %796 = vadd.xlane.f32.xlu0 %v795
      %v797 = vpop.xlane.xlu0 %796
      %v798 = vadd.f32 %v631, %v632
      %799 = vadd.xlane.f32.xlu0 %v798
      %v800 = vpop.xlane.xlu0 %799
      %v801 = vadd.f32 %v633, %v634
      %802 = vadd.xlane.f32.xlu0 %v801
      %v803 = vpop.xlane.xlu0 %802
      %v804 = vadd.f32 %v635, %v636
      %805 = vadd.xlane.f32.xlu0 %v804
      %v806 = vpop.xlane.xlu0 %805
      %v807 = vadd.f32 %v637, %v638
      %808 = vadd.xlane.f32.xlu0 %v807
      %v809 = vpop.xlane.xlu0 %808
      %v810 = vadd.f32 %v639, %v640
      %811 = vadd.xlane.f32.xlu0 %v810
      %v812 = vpop.xlane.xlu0 %811
      %v813 = vadd.f32 %v641, %v642
      %814 = vadd.xlane.f32.xlu0 %v813
      %v815 = vpop.xlane.xlu0 %814
      %v816 = vadd.f32 %v643, %v644
      %817 = vadd.xlane.f32.xlu0 %v816
      %v818 = vpop.xlane.xlu0 %817
      %v819 = vadd.f32 %v645, %v646
      %820 = vadd.xlane.f32.xlu0 %v819
      %v821 = vpop.xlane.xlu0 %820
      %v822 = vadd.f32 %v647, %v648
      %823 = vadd.xlane.f32.xlu0 %v822
      %v824 = vpop.xlane.xlu0 %823
      %v825 = vadd.f32 %v649, %v650
      %826 = vadd.xlane.f32.xlu0 %v825
      %v827 = vpop.xlane.xlu0 %826
      %v828 = vadd.f32 %v651, %v652
      %829 = vadd.xlane.f32.xlu0 %v828
      %v830 = vpop.xlane.xlu0 %829
      %v831 = vadd.f32 %v653, %v654
      %832 = vadd.xlane.f32.xlu0 %v831
      %v833 = vpop.xlane.xlu0 %832
      %v834 = vadd.f32 %v655, %v656
      %835 = vadd.xlane.f32.xlu0 %v834
      %v836 = vpop.xlane.xlu0 %835
      %v837 = vadd.f32 %v657, %v658
      %838 = vadd.xlane.f32.xlu0 %v837
      %v839 = vpop.xlane.xlu0 %838
      %v840 = vadd.f32 %v659, %v660
      %841 = vadd.xlane.f32.xlu0 %v840
      %v842 = vpop.xlane.xlu0 %841
      %v843 = vadd.f32 %v661, %v662
      %844 = vadd.xlane.f32.xlu0 %v843
      %v845 = vpop.xlane.xlu0 %844
      %v846 = vadd.f32 %v663, %v664
      %847 = vadd.xlane.f32.xlu0 %v846
      %v848 = vpop.xlane.xlu0 %847
      %v849 = vadd.f32 %v665, %v666
      %850 = vadd.xlane.f32.xlu0 %v849
      %v851 = vpop.xlane.xlu0 %850
      %v852 = vadd.f32 %v667, %v668
      %853 = vadd.xlane.f32.xlu0 %v852
      %v854 = vpop.xlane.xlu0 %853
      %v855 = vadd.f32 %v669, %v670
      %856 = vadd.xlane.f32.xlu0 %v855
      %v857 = vpop.xlane.xlu0 %856
      %v858 = vadd.f32 %v671, %v672
      %859 = vadd.xlane.f32.xlu0 %v858
      %v860 = vpop.xlane.xlu0 %859
      %v861 = vadd.f32 %v673, %v674
      %862 = vadd.xlane.f32.xlu0 %v861
      %v863 = vpop.xlane.xlu0 %862
      %v864 = vadd.f32 %v675, %v676
      %865 = vadd.xlane.f32.xlu0 %v864
      %v866 = vpop.xlane.xlu0 %865
      %v867 = vadd.f32 %v677, %v678
      %868 = vadd.xlane.f32.xlu0 %v867
      %v869 = vpop.xlane.xlu0 %868
      %v870 = vadd.f32 %v679, %v680
      %871 = vadd.xlane.f32.xlu0 %v870
      %v872 = vpop.xlane.xlu0 %871
      %v873 = vmul.f32 %v363, 0.0051020407
      %v874 = vmul.f32 %v366, 0.0051020407
      %v875 = vmul.f32 %v369, 0.0051020407
      %v876 = vmul.f32 %v372, 0.0051020407
      %v877 = vmul.f32 %v375, 0.0051020407
      %v878 = vmul.f32 %v378, 0.0051020407
      %v879 = vmul.f32 %v381, 0.0051020407
      %v880 = vmul.f32 %v384, 0.0051020407
      %v881 = vmul.f32 %v387, 0.0051020407
      %v882 = vmul.f32 %v390, 0.0051020407
      %v883 = vmul.f32 %v393, 0.0051020407
      %v884 = vmul.f32 %v396, 0.0051020407
      %v885 = vmul.f32 %v399, 0.0051020407
      %v886 = vmul.f32 %v402, 0.0051020407
      %v887 = vmul.f32 %v405, 0.0051020407
      %v888 = vmul.f32 %v408, 0.0051020407
      %v889 = vmul.f32 %v411, 0.0051020407
      %v890 = vmul.f32 %v414, 0.0051020407
      %v891 = vmul.f32 %v417, 0.0051020407
      %v892 = vmul.f32 %v420, 0.0051020407
      %v893 = vmul.f32 %v423, 0.0051020407
      %v894 = vmul.f32 %v426, 0.0051020407
      %v895 = vmul.f32 %v429, 0.0051020407
      %v896 = vmul.f32 %v432, 0.0051020407
      %v897 = vmul.f32 %v435, 0.0051020407
      %v898 = vmul.f32 %v438, 0.0051020407
      %v899 = vmul.f32 %v441, 0.0051020407
      %v900 = vmul.f32 %v444, 0.0051020407
      %v901 = vmul.f32 %v447, 0.0051020407
      %v902 = vmul.f32 %v450, 0.0051020407
      %v903 = vmul.f32 %v453, 0.0051020407
      %v904 = vmul.f32 %v456, 0.0051020407
      %v905 = vmul.f32 %v459, 0.0051020407
      %v906 = vmul.f32 %v462, 0.0051020407
      %v907 = vmul.f32 %v465, 0.0051020407
      %v908 = vmul.f32 %v468, 0.0051020407
      %v909 = vmul.f32 %v471, 0.0051020407
      %v910 = vmul.f32 %v474, 0.0051020407
      %v911 = vmul.f32 %v477, 0.0051020407
      %v912 = vmul.f32 %v480, 0.0051020407
      %v913 = vmul.f32 %v483, 0.0051020407
      %v914 = vmul.f32 %v486, 0.0051020407
      %v915 = vmul.f32 %v489, 0.0051020407
      %v916 = vmul.f32 %v492, 0.0051020407
      %v917 = vmul.f32 %v495, 0.0051020407
      %v918 = vmul.f32 %v498, 0.0051020407
      %v919 = vmul.f32 %v501, 0.0051020407
      %v920 = vmul.f32 %v504, 0.0051020407
      %v921 = vmul.f32 %v507, 0.0051020407
      %v922 = vmul.f32 %v510, 0.0051020407
      %v923 = vmul.f32 %v513, 0.0051020407
      %v924 = vmul.f32 %v516, 0.0051020407
      %v925 = vmul.f32 %v519, 0.0051020407
      %v926 = vmul.f32 %v522, 0.0051020407
      %v927 = vmul.f32 %v525, 0.0051020407
      %v928 = vmul.f32 %v528, 0.0051020407
      %v929 = vmul.f32 %v531, 0.0051020407
      %v930 = vmul.f32 %v534, 0.0051020407
      %v931 = vmul.f32 %v537, 0.0051020407
      %v932 = vmul.f32 %v540, 0.0051020407
      %v933 = vmul.f32 %v543, 0.0051020407
      %v934 = vmul.f32 %v546, 0.0051020407
      %v935 = vmul.f32 %v549, 0.0051020407
      %v936 = vmul.f32 %v552, 0.0051020407
      %v937 = vmul.f32 %v683, 0.0051020407
      %v938 = vmul.f32 %v686, 0.0051020407
      %v939 = vmul.f32 %v689, 0.0051020407
      %v940 = vmul.f32 %v692, 0.0051020407
      %v941 = vmul.f32 %v695, 0.0051020407
      %v942 = vmul.f32 %v698, 0.0051020407
      %v943 = vmul.f32 %v701, 0.0051020407
      %v944 = vmul.f32 %v704, 0.0051020407
      %v945 = vmul.f32 %v707, 0.0051020407
      %v946 = vmul.f32 %v710, 0.0051020407
      %v947 = vmul.f32 %v713, 0.0051020407
      %v948 = vmul.f32 %v716, 0.0051020407
      %v949 = vmul.f32 %v719, 0.0051020407
      %v950 = vmul.f32 %v722, 0.0051020407
      %v951 = vmul.f32 %v725, 0.0051020407
      %v952 = vmul.f32 %v728, 0.0051020407
      %v953 = vmul.f32 %v731, 0.0051020407
      %v954 = vmul.f32 %v734, 0.0051020407
      %v955 = vmul.f32 %v737, 0.0051020407
      %v956 = vmul.f32 %v740, 0.0051020407
      %v957 = vmul.f32 %v743, 0.0051020407
      %v958 = vmul.f32 %v746, 0.0051020407
      %v959 = vmul.f32 %v749, 0.0051020407
      %v960 = vmul.f32 %v752, 0.0051020407
      %v961 = vmul.f32 %v755, 0.0051020407
      %v962 = vmul.f32 %v758, 0.0051020407
      %v963 = vmul.f32 %v761, 0.0051020407
      %v964 = vmul.f32 %v764, 0.0051020407
      %v965 = vmul.f32 %v767, 0.0051020407
      %v966 = vmul.f32 %v770, 0.0051020407
      %v967 = vmul.f32 %v773, 0.0051020407
      %v968 = vmul.f32 %v776, 0.0051020407
      %v969 = vmul.f32 %v779, 0.0051020407
      %v970 = vmul.f32 %v782, 0.0051020407
      %v971 = vmul.f32 %v785, 0.0051020407
      %v972 = vmul.f32 %v788, 0.0051020407
      %v973 = vmul.f32 %v791, 0.0051020407
      %v974 = vmul.f32 %v794, 0.0051020407
      %v975 = vmul.f32 %v797, 0.0051020407
      %v976 = vmul.f32 %v800, 0.0051020407
      %v977 = vmul.f32 %v803, 0.0051020407
      %v978 = vmul.f32 %v806, 0.0051020407
      %v979 = vmul.f32 %v809, 0.0051020407
      %v980 = vmul.f32 %v812, 0.0051020407
      %v981 = vmul.f32 %v815, 0.0051020407
      %v982 = vmul.f32 %v818, 0.0051020407
      %v983 = vmul.f32 %v821, 0.0051020407
      %v984 = vmul.f32 %v824, 0.0051020407
      %v985 = vmul.f32 %v827, 0.0051020407
      %v986 = vmul.f32 %v830, 0.0051020407
      %v987 = vmul.f32 %v833, 0.0051020407
      %v988 = vmul.f32 %v836, 0.0051020407
      %v989 = vmul.f32 %v839, 0.0051020407
      %v990 = vmul.f32 %v842, 0.0051020407
      %v991 = vmul.f32 %v845, 0.0051020407
      %v992 = vmul.f32 %v848, 0.0051020407
      %v993 = vmul.f32 %v851, 0.0051020407
      %v994 = vmul.f32 %v854, 0.0051020407
      %v995 = vmul.f32 %v857, 0.0051020407
      %v996 = vmul.f32 %v860, 0.0051020407
      %v997 = vmul.f32 %v863, 0.0051020407
      %v998 = vmul.f32 %v866, 0.0051020407
      %v999 = vmul.f32 %v869, 0.0051020407
      %v1000 = vmul.f32 %v872, 0.0051020407
      %v1001 = vmul.f32 %v873, %v873
      %v1002 = vmul.f32 %v874, %v874
      %v1003 = vmul.f32 %v875, %v875
      %v1004 = vmul.f32 %v876, %v876
      %v1005 = vmul.f32 %v877, %v877
      %v1006 = vmul.f32 %v878, %v878
      %v1007 = vmul.f32 %v879, %v879
      %v1008 = vmul.f32 %v880, %v880
      %v1009 = vmul.f32 %v881, %v881
      %v1010 = vmul.f32 %v882, %v882
      %v1011 = vmul.f32 %v883, %v883
      %v1012 = vmul.f32 %v884, %v884
      %v1013 = vmul.f32 %v885, %v885
      %v1014 = vmul.f32 %v886, %v886
      %v1015 = vmul.f32 %v887, %v887
      %v1016 = vmul.f32 %v888, %v888
      %v1017 = vmul.f32 %v889, %v889
      %v1018 = vmul.f32 %v890, %v890
      %v1019 = vmul.f32 %v891, %v891
      %v1020 = vmul.f32 %v892, %v892
      %v1021 = vmul.f32 %v893, %v893
      %v1022 = vmul.f32 %v894, %v894
      %v1023 = vmul.f32 %v895, %v895
      %v1024 = vmul.f32 %v896, %v896
      %v1025 = vmul.f32 %v897, %v897
      %v1026 = vmul.f32 %v898, %v898
      %v1027 = vmul.f32 %v899, %v899
      %v1028 = vmul.f32 %v900, %v900
      %v1029 = vmul.f32 %v901, %v901
      %v1030 = vmul.f32 %v902, %v902
      %v1031 = vmul.f32 %v903, %v903
      %v1032 = vmul.f32 %v904, %v904
      %v1033 = vmul.f32 %v905, %v905
      %v1034 = vmul.f32 %v906, %v906
      %v1035 = vmul.f32 %v907, %v907
      %v1036 = vmul.f32 %v908, %v908
      %v1037 = vmul.f32 %v909, %v909
      %v1038 = vmul.f32 %v910, %v910
      %v1039 = vmul.f32 %v911, %v911
      %v1040 = vmul.f32 %v912, %v912
      %v1041 = vmul.f32 %v913, %v913
      %v1042 = vmul.f32 %v914, %v914
      %v1043 = vmul.f32 %v915, %v915
      %v1044 = vmul.f32 %v916, %v916
      %v1045 = vmul.f32 %v917, %v917
      %v1046 = vmul.f32 %v918, %v918
      %v1047 = vmul.f32 %v919, %v919
      %v1048 = vmul.f32 %v920, %v920
      %v1049 = vmul.f32 %v921, %v921
      %v1050 = vmul.f32 %v922, %v922
      %v1051 = vmul.f32 %v923, %v923
      %v1052 = vmul.f32 %v924, %v924
      %v1053 = vmul.f32 %v925, %v925
      %v1054 = vmul.f32 %v926, %v926
      %v1055 = vmul.f32 %v927, %v927
      %v1056 = vmul.f32 %v928, %v928
      %v1057 = vmul.f32 %v929, %v929
      %v1058 = vmul.f32 %v930, %v930
      %v1059 = vmul.f32 %v931, %v931
      %v1060 = vmul.f32 %v932, %v932
      %v1061 = vmul.f32 %v933, %v933
      %v1062 = vmul.f32 %v934, %v934
      %v1063 = vmul.f32 %v935, %v935
      %v1064 = vmul.f32 %v936, %v936
      %v1065 = vsub.f32 %v937, %v1001
      %v1066 = vsub.f32 %v938, %v1002
      %v1067 = vsub.f32 %v939, %v1003
      %v1068 = vsub.f32 %v940, %v1004
      %v1069 = vsub.f32 %v941, %v1005
      %v1070 = vsub.f32 %v942, %v1006
      %v1071 = vsub.f32 %v943, %v1007
      %v1072 = vsub.f32 %v944, %v1008
      %v1073 = vsub.f32 %v945, %v1009
      %v1074 = vsub.f32 %v946, %v1010
      %v1075 = vsub.f32 %v947, %v1011
      %v1076 = vsub.f32 %v948, %v1012
      %v1077 = vsub.f32 %v949, %v1013
      %v1078 = vsub.f32 %v950, %v1014
      %v1079 = vsub.f32 %v951, %v1015
      %v1080 = vsub.f32 %v952, %v1016
      %v1081 = vsub.f32 %v953, %v1017
      %v1082 = vsub.f32 %v954, %v1018
      %v1083 = vsub.f32 %v955, %v1019
      %v1084 = vsub.f32 %v956, %v1020
      %v1085 = vsub.f32 %v957, %v1021
      %v1086 = vsub.f32 %v958, %v1022
      %v1087 = vsub.f32 %v959, %v1023
      %v1088 = vsub.f32 %v960, %v1024
      %v1089 = vsub.f32 %v961, %v1025
      %v1090 = vsub.f32 %v962, %v1026
      %v1091 = vsub.f32 %v963, %v1027
      %v1092 = vsub.f32 %v964, %v1028
      %v1093 = vsub.f32 %v965, %v1029
      %v1094 = vsub.f32 %v966, %v1030
      %v1095 = vsub.f32 %v967, %v1031
      %v1096 = vsub.f32 %v968, %v1032
      %v1097 = vsub.f32 %v969, %v1033
      %v1098 = vsub.f32 %v970, %v1034
      %v1099 = vsub.f32 %v971, %v1035
      %v1100 = vsub.f32 %v972, %v1036
      %v1101 = vsub.f32 %v973, %v1037
      %v1102 = vsub.f32 %v974, %v1038
      %v1103 = vsub.f32 %v975, %v1039
      %v1104 = vsub.f32 %v976, %v1040
      %v1105 = vsub.f32 %v977, %v1041
      %v1106 = vsub.f32 %v978, %v1042
      %v1107 = vsub.f32 %v979, %v1043
      %v1108 = vsub.f32 %v980, %v1044
      %v1109 = vsub.f32 %v981, %v1045
      %v1110 = vsub.f32 %v982, %v1046
      %v1111 = vsub.f32 %v983, %v1047
      %v1112 = vsub.f32 %v984, %v1048
      %v1113 = vsub.f32 %v985, %v1049
      %v1114 = vsub.f32 %v986, %v1050
      %v1115 = vsub.f32 %v987, %v1051
      %v1116 = vsub.f32 %v988, %v1052
      %v1117 = vsub.f32 %v989, %v1053
      %v1118 = vsub.f32 %v990, %v1054
      %v1119 = vsub.f32 %v991, %v1055
      %v1120 = vsub.f32 %v992, %v1056
      %v1121 = vsub.f32 %v993, %v1057
      %v1122 = vsub.f32 %v994, %v1058
      %v1123 = vsub.f32 %v995, %v1059
      %v1124 = vsub.f32 %v996, %v1060
      %v1125 = vsub.f32 %v997, %v1061
      %v1126 = vsub.f32 %v998, %v1062
      %v1127 = vsub.f32 %v999, %v1063
      %v1128 = vsub.f32 %v1000, %v1064
      %v1129 = vadd.f32 %v1065, 1e-05
      %v1130 = vadd.f32 %v1066, 1e-05
      %v1131 = vadd.f32 %v1067, 1e-05
      %v1132 = vadd.f32 %v1068, 1e-05
      %v1133 = vadd.f32 %v1069, 1e-05
      %v1134 = vadd.f32 %v1070, 1e-05
      %v1135 = vadd.f32 %v1071, 1e-05
      %v1136 = vadd.f32 %v1072, 1e-05
      %v1137 = vadd.f32 %v1073, 1e-05
      %v1138 = vadd.f32 %v1074, 1e-05
      %v1139 = vadd.f32 %v1075, 1e-05
      %v1140 = vadd.f32 %v1076, 1e-05
      %v1141 = vadd.f32 %v1077, 1e-05
      %v1142 = vadd.f32 %v1078, 1e-05
      %v1143 = vadd.f32 %v1079, 1e-05
      %v1144 = vadd.f32 %v1080, 1e-05
      %v1145 = vadd.f32 %v1081, 1e-05
      %v1146 = vadd.f32 %v1082, 1e-05
      %v1147 = vadd.f32 %v1083, 1e-05
      %v1148 = vadd.f32 %v1084, 1e-05
      %v1149 = vadd.f32 %v1085, 1e-05
      %v1150 = vadd.f32 %v1086, 1e-05
      %v1151 = vadd.f32 %v1087, 1e-05
      %v1152 = vadd.f32 %v1088, 1e-05
      %v1153 = vadd.f32 %v1089, 1e-05
      %v1154 = vadd.f32 %v1090, 1e-05
      %v1155 = vadd.f32 %v1091, 1e-05
      %v1156 = vadd.f32 %v1092, 1e-05
      %v1157 = vadd.f32 %v1093, 1e-05
      %v1158 = vadd.f32 %v1094, 1e-05
      %v1159 = vadd.f32 %v1095, 1e-05
      %v1160 = vadd.f32 %v1096, 1e-05
      %v1161 = vadd.f32 %v1097, 1e-05
      %v1162 = vadd.f32 %v1098, 1e-05
      %v1163 = vadd.f32 %v1099, 1e-05
      %v1164 = vadd.f32 %v1100, 1e-05
      %v1165 = vadd.f32 %v1101, 1e-05
      %v1166 = vadd.f32 %v1102, 1e-05
      %v1167 = vadd.f32 %v1103, 1e-05
      %v1168 = vadd.f32 %v1104, 1e-05
      %v1169 = vadd.f32 %v1105, 1e-05
      %v1170 = vadd.f32 %v1106, 1e-05
      %v1171 = vadd.f32 %v1107, 1e-05
      %v1172 = vadd.f32 %v1108, 1e-05
      %v1173 = vadd.f32 %v1109, 1e-05
      %v1174 = vadd.f32 %v1110, 1e-05
      %v1175 = vadd.f32 %v1111, 1e-05
      %v1176 = vadd.f32 %v1112, 1e-05
      %v1177 = vadd.f32 %v1113, 1e-05
      %v1178 = vadd.f32 %v1114, 1e-05
      %v1179 = vadd.f32 %v1115, 1e-05
      %v1180 = vadd.f32 %v1116, 1e-05
      %v1181 = vadd.f32 %v1117, 1e-05
      %v1182 = vadd.f32 %v1118, 1e-05
      %v1183 = vadd.f32 %v1119, 1e-05
      %v1184 = vadd.f32 %v1120, 1e-05
      %v1185 = vadd.f32 %v1121, 1e-05
      %v1186 = vadd.f32 %v1122, 1e-05
      %v1187 = vadd.f32 %v1123, 1e-05
      %v1188 = vadd.f32 %v1124, 1e-05
      %v1189 = vadd.f32 %v1125, 1e-05
      %v1190 = vadd.f32 %v1126, 1e-05
      %v1191 = vadd.f32 %v1127, 1e-05
      %v1192 = vadd.f32 %v1128, 1e-05
      %v1193 = vrsqrt.pop %v1129
      %v1194 = vrsqrt.pop %v1130
      %v1195 = vrsqrt.pop %v1131
      %v1196 = vrsqrt.pop %v1132
      %v1197 = vrsqrt.pop %v1133
      %v1198 = vrsqrt.pop %v1134
      %v1199 = vrsqrt.pop %v1135
      %v1200 = vrsqrt.pop %v1136
      %v1201 = vrsqrt.pop %v1137
      %v1202 = vrsqrt.pop %v1138
      %v1203 = vrsqrt.pop %v1139
      %v1204 = vrsqrt.pop %v1140
      %v1205 = vrsqrt.pop %v1141
      %v1206 = vrsqrt.pop %v1142
      %v1207 = vrsqrt.pop %v1143
      %v1208 = vrsqrt.pop %v1144
      %v1209 = vrsqrt.pop %v1145
      %v1210 = vrsqrt.pop %v1146
      %v1211 = vrsqrt.pop %v1147
      %v1212 = vrsqrt.pop %v1148
      %v1213 = vrsqrt.pop %v1149
      %v1214 = vrsqrt.pop %v1150
      %v1215 = vrsqrt.pop %v1151
      %v1216 = vrsqrt.pop %v1152
      %v1217 = vrsqrt.pop %v1153
      %v1218 = vrsqrt.pop %v1154
      %v1219 = vrsqrt.pop %v1155
      %v1220 = vrsqrt.pop %v1156
      %v1221 = vrsqrt.pop %v1157
      %v1222 = vrsqrt.pop %v1158
      %v1223 = vrsqrt.pop %v1159
      %v1224 = vrsqrt.pop %v1160
      %v1225 = vrsqrt.pop %v1161
      %v1226 = vrsqrt.pop %v1162
      %v1227 = vrsqrt.pop %v1163
      %v1228 = vrsqrt.pop %v1164
      %v1229 = vrsqrt.pop %v1165
      %v1230 = vrsqrt.pop %v1166
      %v1231 = vrsqrt.pop %v1167
      %v1232 = vrsqrt.pop %v1168
      %v1233 = vrsqrt.pop %v1169
      %v1234 = vrsqrt.pop %v1170
      %v1235 = vrsqrt.pop %v1171
      %v1236 = vrsqrt.pop %v1172
      %v1237 = vrsqrt.pop %v1173
      %v1238 = vrsqrt.pop %v1174
      %v1239 = vrsqrt.pop %v1175
      %v1240 = vrsqrt.pop %v1176
      %v1241 = vrsqrt.pop %v1177
      %v1242 = vrsqrt.pop %v1178
      %v1243 = vrsqrt.pop %v1179
      %v1244 = vrsqrt.pop %v1180
      %v1245 = vrsqrt.pop %v1181
      %v1246 = vrsqrt.pop %v1182
      %v1247 = vrsqrt.pop %v1183
      %v1248 = vrsqrt.pop %v1184
      %v1249 = vrsqrt.pop %v1185
      %v1250 = vrsqrt.pop %v1186
      %v1251 = vrsqrt.pop %v1187
      %v1252 = vrsqrt.pop %v1188
      %v1253 = vrsqrt.pop %v1189
      %v1254 = vrsqrt.pop %v1190
      %v1255 = vrsqrt.pop %v1191
      %v1256 = vrsqrt.pop %v1192
      %v1257 = vld [vmem:[%s2] sm:$0xff]
      %v1258 = vld [vmem:[%s2 + $0x8] sm:$0xff]
      %v1259 = vld [vmem:[%s2 + $0x10] sm:$0xff]
      %v1260 = vld [vmem:[%s2 + $0x18] sm:$0xff]
      %v1261 = vld [vmem:[%s2 + $0x20] sm:$0xff]
      %v1262 = vld [vmem:[%s2 + $0x28] sm:$0xff]
      %v1263 = vld [vmem:[%s2 + $0x30] sm:$0xff]
      %v1264 = vld [vmem:[%s2 + $0x38] sm:$0xff]
      %v1265 = vld [vmem:[%s2 + $0x40] sm:$0xff]
      %v1266 = vld [vmem:[%s2 + $0x48] sm:$0xff]
      %v1267 = vld [vmem:[%s2 + $0x50] sm:$0xff]
      %v1268 = vld [vmem:[%s2 + $0x58] sm:$0xff]
      %v1269 = vld [vmem:[%s2 + $0x60] sm:$0xff]
      %v1270 = vld [vmem:[%s2 + $0x68] sm:$0xff]
      %v1271 = vld [vmem:[%s2 + $0x70] sm:$0xff]
      %v1272 = vld [vmem:[%s2 + $0x78] sm:$0xff]
      %v1273 = vld [vmem:[%s2 + $0x80] sm:$0xff]
      %v1274 = vld [vmem:[%s2 + $0x88] sm:$0xff]
      %v1275 = vld [vmem:[%s2 + $0x90] sm:$0xff]
      %v1276 = vld [vmem:[%s2 + $0x98] sm:$0xff]
      %v1277 = vld [vmem:[%s2 + $0xa0] sm:$0xff]
      %v1278 = vld [vmem:[%s2 + $0xa8] sm:$0xff]
      %v1279 = vld [vmem:[%s2 + $0xb0] sm:$0xff]
      %v1280 = vld [vmem:[%s2 + $0xb8] sm:$0xff]
      %v1281 = vld [vmem:[%s2 + $0xc0] sm:$0xff]
      %v1282 = vld [vmem:[%s2 + $0xc8] sm:$0xff]
      %v1283 = vld [vmem:[%s2 + $0xd0] sm:$0xff]
      %v1284 = vld [vmem:[%s2 + $0xd8] sm:$0xff]
      %v1285 = vld [vmem:[%s2 + $0xe0] sm:$0xff]
      %v1286 = vld [vmem:[%s2 + $0xe8] sm:$0xff]
      %v1287 = vld [vmem:[%s2 + $0xf0] sm:$0xff]
      %v1288 = vld [vmem:[%s2 + $0xf8] sm:$0xff]
      %v1289 = vld [vmem:[%s2 + $0x100] sm:$0xff]
      %v1290 = vld [vmem:[%s2 + $0x108] sm:$0xff]
      %v1291 = vld [vmem:[%s2 + $0x110] sm:$0xff]
      %v1292 = vld [vmem:[%s2 + $0x118] sm:$0xff]
      %v1293 = vld [vmem:[%s2 + $0x120] sm:$0xff]
      %v1294 = vld [vmem:[%s2 + $0x128] sm:$0xff]
      %v1295 = vld [vmem:[%s2 + $0x130] sm:$0xff]
      %v1296 = vld [vmem:[%s2 + $0x138] sm:$0xff]
      %v1297 = vld [vmem:[%s2 + $0x140] sm:$0xff]
      %v1298 = vld [vmem:[%s2 + $0x148] sm:$0xff]
      %v1299 = vld [vmem:[%s2 + $0x150] sm:$0xff]
      %v1300 = vld [vmem:[%s2 + $0x158] sm:$0xff]
      %v1301 = vld [vmem:[%s2 + $0x160] sm:$0xff]
      %v1302 = vld [vmem:[%s2 + $0x168] sm:$0xff]
      %v1303 = vld [vmem:[%s2 + $0x170] sm:$0xff]
      %v1304 = vld [vmem:[%s2 + $0x178] sm:$0xff]
      %v1305 = vld [vmem:[%s2 + $0x180] sm:$0xff]
      %v1306 = vld [vmem:[%s2 + $0x188] sm:$0xff]
      %v1307 = vld [vmem:[%s2 + $0x190] sm:$0xff]
      %v1308 = vld [vmem:[%s2 + $0x198] sm:$0xff]
      %v1309 = vld [vmem:[%s2 + $0x1a0] sm:$0xff]
      %v1310 = vld [vmem:[%s2 + $0x1a8] sm:$0xff]
      %v1311 = vld [vmem:[%s2 + $0x1b0] sm:$0xff]
      %v1312 = vld [vmem:[%s2 + $0x1b8] sm:$0xff]
      %v1313 = vld [vmem:[%s2 + $0x1c0] sm:$0xff]
      %v1314 = vld [vmem:[%s2 + $0x1c8] sm:$0xff]
      %v1315 = vld [vmem:[%s2 + $0x1d0] sm:$0xff]
      %v1316 = vld [vmem:[%s2 + $0x1d8] sm:$0xff]
      %v1317 = vld [vmem:[%s2 + $0x1e0] sm:$0xff]
      %v1318 = vld [vmem:[%s2 + $0x1e8] sm:$0xff]
      %v1319 = vld [vmem:[%s2 + $0x1f0] sm:$0xff]
      %v1320 = vld [vmem:[%s2 + $0x1f8] sm:$0xff]
      %v1321 = vmul.f32 %v1257, %v1193
      %v1322 = vmul.f32 %v1258, %v1194
      %v1323 = vmul.f32 %v1259, %v1195
      %v1324 = vmul.f32 %v1260, %v1196
      %v1325 = vmul.f32 %v1261, %v1197
      %v1326 = vmul.f32 %v1262, %v1198
      %v1327 = vmul.f32 %v1263, %v1199
      %v1328 = vmul.f32 %v1264, %v1200
      %v1329 = vmul.f32 %v1265, %v1201
      %v1330 = vmul.f32 %v1266, %v1202
      %v1331 = vmul.f32 %v1267, %v1203
      %v1332 = vmul.f32 %v1268, %v1204
      %v1333 = vmul.f32 %v1269, %v1205
      %v1334 = vmul.f32 %v1270, %v1206
      %v1335 = vmul.f32 %v1271, %v1207
      %v1336 = vmul.f32 %v1272, %v1208
      %v1337 = vmul.f32 %v1273, %v1209
      %v1338 = vmul.f32 %v1274, %v1210
      %v1339 = vmul.f32 %v1275, %v1211
      %v1340 = vmul.f32 %v1276, %v1212
      %v1341 = vmul.f32 %v1277, %v1213
      %v1342 = vmul.f32 %v1278, %v1214
      %v1343 = vmul.f32 %v1279, %v1215
      %v1344 = vmul.f32 %v1280, %v1216
      %v1345 = vmul.f32 %v1281, %v1217
      %v1346 = vmul.f32 %v1282, %v1218
      %v1347 = vmul.f32 %v1283, %v1219
      %v1348 = vmul.f32 %v1284, %v1220
      %v1349 = vmul.f32 %v1285, %v1221
      %v1350 = vmul.f32 %v1286, %v1222
      %v1351 = vmul.f32 %v1287, %v1223
      %v1352 = vmul.f32 %v1288, %v1224
      %v1353 = vmul.f32 %v1289, %v1225
      %v1354 = vmul.f32 %v1290, %v1226
      %v1355 = vmul.f32 %v1291, %v1227
      %v1356 = vmul.f32 %v1292, %v1228
      %v1357 = vmul.f32 %v1293, %v1229
      %v1358 = vmul.f32 %v1294, %v1230
      %v1359 = vmul.f32 %v1295, %v1231
      %v1360 = vmul.f32 %v1296, %v1232
      %v1361 = vmul.f32 %v1297, %v1233
      %v1362 = vmul.f32 %v1298, %v1234
      %v1363 = vmul.f32 %v1299, %v1235
      %v1364 = vmul.f32 %v1300, %v1236
      %v1365 = vmul.f32 %v1301, %v1237
      %v1366 = vmul.f32 %v1302, %v1238
      %v1367 = vmul.f32 %v1303, %v1239
      %v1368 = vmul.f32 %v1304, %v1240
      %v1369 = vmul.f32 %v1305, %v1241
      %v1370 = vmul.f32 %v1306, %v1242
      %v1371 = vmul.f32 %v1307, %v1243
      %v1372 = vmul.f32 %v1308, %v1244
      %v1373 = vmul.f32 %v1309, %v1245
      %v1374 = vmul.f32 %v1310, %v1246
      %v1375 = vmul.f32 %v1311, %v1247
      %v1376 = vmul.f32 %v1312, %v1248
      %v1377 = vmul.f32 %v1313, %v1249
      %v1378 = vmul.f32 %v1314, %v1250
      %v1379 = vmul.f32 %v1315, %v1251
      %v1380 = vmul.f32 %v1316, %v1252
      %v1381 = vmul.f32 %v1317, %v1253
      %v1382 = vmul.f32 %v1318, %v1254
      %v1383 = vmul.f32 %v1319, %v1255
      %v1384 = vmul.f32 %v1320, %v1256
      %v1385 = vld [vmem:[%s3] sm:$0xff]
      %v1386 = vld [vmem:[%s3 + $0x8] sm:$0xff]
      %v1387 = vld [vmem:[%s3 + $0x10] sm:$0xff]
      %v1388 = vld [vmem:[%s3 + $0x18] sm:$0xff]
      %v1389 = vld [vmem:[%s3 + $0x20] sm:$0xff]
      %v1390 = vld [vmem:[%s3 + $0x28] sm:$0xff]
      %v1391 = vld [vmem:[%s3 + $0x30] sm:$0xff]
      %v1392 = vld [vmem:[%s3 + $0x38] sm:$0xff]
      %v1393 = vld [vmem:[%s3 + $0x40] sm:$0xff]
      %v1394 = vld [vmem:[%s3 + $0x48] sm:$0xff]
      %v1395 = vld [vmem:[%s3 + $0x50] sm:$0xff]
      %v1396 = vld [vmem:[%s3 + $0x58] sm:$0xff]
      %v1397 = vld [vmem:[%s3 + $0x60] sm:$0xff]
      %v1398 = vld [vmem:[%s3 + $0x68] sm:$0xff]
      %v1399 = vld [vmem:[%s3 + $0x70] sm:$0xff]
      %v1400 = vld [vmem:[%s3 + $0x78] sm:$0xff]
      %v1401 = vld [vmem:[%s3 + $0x80] sm:$0xff]
      %v1402 = vld [vmem:[%s3 + $0x88] sm:$0xff]
      %v1403 = vld [vmem:[%s3 + $0x90] sm:$0xff]
      %v1404 = vld [vmem:[%s3 + $0x98] sm:$0xff]
      %v1405 = vld [vmem:[%s3 + $0xa0] sm:$0xff]
      %v1406 = vld [vmem:[%s3 + $0xa8] sm:$0xff]
      %v1407 = vld [vmem:[%s3 + $0xb0] sm:$0xff]
      %v1408 = vld [vmem:[%s3 + $0xb8] sm:$0xff]
      %v1409 = vld [vmem:[%s3 + $0xc0] sm:$0xff]
      %v1410 = vld [vmem:[%s3 + $0xc8] sm:$0xff]
      %v1411 = vld [vmem:[%s3 + $0xd0] sm:$0xff]
      %v1412 = vld [vmem:[%s3 + $0xd8] sm:$0xff]
      %v1413 = vld [vmem:[%s3 + $0xe0] sm:$0xff]
      %v1414 = vld [vmem:[%s3 + $0xe8] sm:$0xff]
      %v1415 = vld [vmem:[%s3 + $0xf0] sm:$0xff]
      %v1416 = vld [vmem:[%s3 + $0xf8] sm:$0xff]
      %v1417 = vld [vmem:[%s3 + $0x100] sm:$0xff]
      %v1418 = vld [vmem:[%s3 + $0x108] sm:$0xff]
      %v1419 = vld [vmem:[%s3 + $0x110] sm:$0xff]
      %v1420 = vld [vmem:[%s3 + $0x118] sm:$0xff]
      %v1421 = vld [vmem:[%s3 + $0x120] sm:$0xff]
      %v1422 = vld [vmem:[%s3 + $0x128] sm:$0xff]
      %v1423 = vld [vmem:[%s3 + $0x130] sm:$0xff]
      %v1424 = vld [vmem:[%s3 + $0x138] sm:$0xff]
      %v1425 = vld [vmem:[%s3 + $0x140] sm:$0xff]
      %v1426 = vld [vmem:[%s3 + $0x148] sm:$0xff]
      %v1427 = vld [vmem:[%s3 + $0x150] sm:$0xff]
      %v1428 = vld [vmem:[%s3 + $0x158] sm:$0xff]
      %v1429 = vld [vmem:[%s3 + $0x160] sm:$0xff]
      %v1430 = vld [vmem:[%s3 + $0x168] sm:$0xff]
      %v1431 = vld [vmem:[%s3 + $0x170] sm:$0xff]
      %v1432 = vld [vmem:[%s3 + $0x178] sm:$0xff]
      %v1433 = vld [vmem:[%s3 + $0x180] sm:$0xff]
      %v1434 = vld [vmem:[%s3 + $0x188] sm:$0xff]
      %v1435 = vld [vmem:[%s3 + $0x190] sm:$0xff]
      %v1436 = vld [vmem:[%s3 + $0x198] sm:$0xff]
      %v1437 = vld [vmem:[%s3 + $0x1a0] sm:$0xff]
      %v1438 = vld [vmem:[%s3 + $0x1a8] sm:$0xff]
      %v1439 = vld [vmem:[%s3 + $0x1b0] sm:$0xff]
      %v1440 = vld [vmem:[%s3 + $0x1b8] sm:$0xff]
      %v1441 = vld [vmem:[%s3 + $0x1c0] sm:$0xff]
      %v1442 = vld [vmem:[%s3 + $0x1c8] sm:$0xff]
      %v1443 = vld [vmem:[%s3 + $0x1d0] sm:$0xff]
      %v1444 = vld [vmem:[%s3 + $0x1d8] sm:$0xff]
      %v1445 = vld [vmem:[%s3 + $0x1e0] sm:$0xff]
      %v1446 = vld [vmem:[%s3 + $0x1e8] sm:$0xff]
      %v1447 = vld [vmem:[%s3 + $0x1f0] sm:$0xff]
      %v1448 = vld [vmem:[%s3 + $0x1f8] sm:$0xff]
      %v1449 = vmul.f32 %v873, %v1321
      %v1450 = vmul.f32 %v874, %v1322
      %v1451 = vmul.f32 %v875, %v1323
      %v1452 = vmul.f32 %v876, %v1324
      %v1453 = vmul.f32 %v877, %v1325
      %v1454 = vmul.f32 %v878, %v1326
      %v1455 = vmul.f32 %v879, %v1327
      %v1456 = vmul.f32 %v880, %v1328
      %v1457 = vmul.f32 %v881, %v1329
      %v1458 = vmul.f32 %v882, %v1330
      %v1459 = vmul.f32 %v883, %v1331
      %v1460 = vmul.f32 %v884, %v1332
      %v1461 = vmul.f32 %v885, %v1333
      %v1462 = vmul.f32 %v886, %v1334
      %v1463 = vmul.f32 %v887, %v1335
      %v1464 = vmul.f32 %v888, %v1336
      %v1465 = vmul.f32 %v889, %v1337
      %v1466 = vmul.f32 %v890, %v1338
      %v1467 = vmul.f32 %v891, %v1339
      %v1468 = vmul.f32 %v892, %v1340
      %v1469 = vmul.f32 %v893, %v1341
      %v1470 = vmul.f32 %v894, %v1342
      %v1471 = vmul.f32 %v895, %v1343
      %v1472 = vmul.f32 %v896, %v1344
      %v1473 = vmul.f32 %v897, %v1345
      %v1474 = vmul.f32 %v898, %v1346
      %v1475 = vmul.f32 %v899, %v1347
      %v1476 = vmul.f32 %v900, %v1348
      %v1477 = vmul.f32 %v901, %v1349
      %v1478 = vmul.f32 %v902, %v1350
      %v1479 = vmul.f32 %v903, %v1351
      %v1480 = vmul.f32 %v904, %v1352
      %v1481 = vmul.f32 %v905, %v1353
      %v1482 = vmul.f32 %v906, %v1354
      %v1483 = vmul.f32 %v907, %v1355
      %v1484 = vmul.f32 %v908, %v1356
      %v1485 = vmul.f32 %v909, %v1357
      %v1486 = vmul.f32 %v910, %v1358
      %v1487 = vmul.f32 %v911, %v1359
      %v1488 = vmul.f32 %v912, %v1360
      %v1489 = vmul.f32 %v913, %v1361
      %v1490 = vmul.f32 %v914, %v1362
      %v1491 = vmul.f32 %v915, %v1363
      %v1492 = vmul.f32 %v916, %v1364
      %v1493 = vmul.f32 %v917, %v1365
      %v1494 = vmul.f32 %v918, %v1366
      %v1495 = vmul.f32 %v919, %v1367
      %v1496 = vmul.f32 %v920, %v1368
      %v1497 = vmul.f32 %v921, %v1369
      %v1498 = vmul.f32 %v922, %v1370
      %v1499 = vmul.f32 %v923, %v1371
      %v1500 = vmul.f32 %v924, %v1372
      %v1501 = vmul.f32 %v925, %v1373
      %v1502 = vmul.f32 %v926, %v1374
      %v1503 = vmul.f32 %v927, %v1375
      %v1504 = vmul.f32 %v928, %v1376
      %v1505 = vmul.f32 %v929, %v1377
      %v1506 = vmul.f32 %v930, %v1378
      %v1507 = vmul.f32 %v931, %v1379
      %v1508 = vmul.f32 %v932, %v1380
      %v1509 = vmul.f32 %v933, %v1381
      %v1510 = vmul.f32 %v934, %v1382
      %v1511 = vmul.f32 %v935, %v1383
      %v1512 = vmul.f32 %v936, %v1384
      %v1513 = vsub.f32 %v1385, %v1449
      %v1514 = vsub.f32 %v1386, %v1450
      %v1515 = vsub.f32 %v1387, %v1451
      %v1516 = vsub.f32 %v1388, %v1452
      %v1517 = vsub.f32 %v1389, %v1453
      %v1518 = vsub.f32 %v1390, %v1454
      %v1519 = vsub.f32 %v1391, %v1455
      %v1520 = vsub.f32 %v1392, %v1456
      %v1521 = vsub.f32 %v1393, %v1457
      %v1522 = vsub.f32 %v1394, %v1458
      %v1523 = vsub.f32 %v1395, %v1459
      %v1524 = vsub.f32 %v1396, %v1460
      %v1525 = vsub.f32 %v1397, %v1461
      %v1526 = vsub.f32 %v1398, %v1462
      %v1527 = vsub.f32 %v1399, %v1463
      %v1528 = vsub.f32 %v1400, %v1464
      %v1529 = vsub.f32 %v1401, %v1465
      %v1530 = vsub.f32 %v1402, %v1466
      %v1531 = vsub.f32 %v1403, %v1467
      %v1532 = vsub.f32 %v1404, %v1468
      %v1533 = vsub.f32 %v1405, %v1469
      %v1534 = vsub.f32 %v1406, %v1470
      %v1535 = vsub.f32 %v1407, %v1471
      %v1536 = vsub.f32 %v1408, %v1472
      %v1537 = vsub.f32 %v1409, %v1473
      %v1538 = vsub.f32 %v1410, %v1474
      %v1539 = vsub.f32 %v1411, %v1475
      %v1540 = vsub.f32 %v1412, %v1476
      %v1541 = vsub.f32 %v1413, %v1477
      %v1542 = vsub.f32 %v1414, %v1478
      %v1543 = vsub.f32 %v1415, %v1479
      %v1544 = vsub.f32 %v1416, %v1480
      %v1545 = vsub.f32 %v1417, %v1481
      %v1546 = vsub.f32 %v1418, %v1482
      %v1547 = vsub.f32 %v1419, %v1483
      %v1548 = vsub.f32 %v1420, %v1484
      %v1549 = vsub.f32 %v1421, %v1485
      %v1550 = vsub.f32 %v1422, %v1486
      %v1551 = vsub.f32 %v1423, %v1487
      %v1552 = vsub.f32 %v1424, %v1488
      %v1553 = vsub.f32 %v1425, %v1489
      %v1554 = vsub.f32 %v1426, %v1490
      %v1555 = vsub.f32 %v1427, %v1491
      %v1556 = vsub.f32 %v1428, %v1492
      %v1557 = vsub.f32 %v1429, %v1493
      %v1558 = vsub.f32 %v1430, %v1494
      %v1559 = vsub.f32 %v1431, %v1495
      %v1560 = vsub.f32 %v1432, %v1496
      %v1561 = vsub.f32 %v1433, %v1497
      %v1562 = vsub.f32 %v1434, %v1498
      %v1563 = vsub.f32 %v1435, %v1499
      %v1564 = vsub.f32 %v1436, %v1500
      %v1565 = vsub.f32 %v1437, %v1501
      %v1566 = vsub.f32 %v1438, %v1502
      %v1567 = vsub.f32 %v1439, %v1503
      %v1568 = vsub.f32 %v1440, %v1504
      %v1569 = vsub.f32 %v1441, %v1505
      %v1570 = vsub.f32 %v1442, %v1506
      %v1571 = vsub.f32 %v1443, %v1507
      %v1572 = vsub.f32 %v1444, %v1508
      %v1573 = vsub.f32 %v1445, %v1509
      %v1574 = vsub.f32 %v1446, %v1510
      %v1575 = vsub.f32 %v1447, %v1511
      %v1576 = vsub.f32 %v1448, %v1512
      %1578 = vset.pattern.permute.xlu0 0
      %1579 = vperm.xlu0 %1578, %v1321
      %v1580 = vpop.permute.xlu0 %1579
      %1583 = vset.pattern.permute.xlu0 0
      %1584 = vperm.xlu0 %1583, %v1322
      %v1585 = vpop.permute.xlu0 %1584
      %1588 = vset.pattern.permute.xlu0 0
      %1589 = vperm.xlu0 %1588, %v1323
      %v1590 = vpop.permute.xlu0 %1589
      %1593 = vset.pattern.permute.xlu0 0
      %1594 = vperm.xlu0 %1593, %v1324
      %v1595 = vpop.permute.xlu0 %1594
      %1598 = vset.pattern.permute.xlu0 0
      %1599 = vperm.xlu0 %1598, %v1325
      %v1600 = vpop.permute.xlu0 %1599
      %1603 = vset.pattern.permute.xlu0 0
      %1604 = vperm.xlu0 %1603, %v1326
      %v1605 = vpop.permute.xlu0 %1604
      %1608 = vset.pattern.permute.xlu0 0
      %1609 = vperm.xlu0 %1608, %v1327
      %v1610 = vpop.permute.xlu0 %1609
      %1613 = vset.pattern.permute.xlu0 0
      %1614 = vperm.xlu0 %1613, %v1328
      %v1615 = vpop.permute.xlu0 %1614
      %1618 = vset.pattern.permute.xlu0 0
      %1619 = vperm.xlu0 %1618, %v1329
      %v1620 = vpop.permute.xlu0 %1619
      %1623 = vset.pattern.permute.xlu0 0
      %1624 = vperm.xlu0 %1623, %v1330
      %v1625 = vpop.permute.xlu0 %1624
      %1628 = vset.pattern.permute.xlu0 0
      %1629 = vperm.xlu0 %1628, %v1331
      %v1630 = vpop.permute.xlu0 %1629
      %1633 = vset.pattern.permute.xlu0 0
      %1634 = vperm.xlu0 %1633, %v1332
      %v1635 = vpop.permute.xlu0 %1634
      %1638 = vset.pattern.permute.xlu0 0
      %1639 = vperm.xlu0 %1638, %v1333
      %v1640 = vpop.permute.xlu0 %1639
      %1643 = vset.pattern.permute.xlu0 0
      %1644 = vperm.xlu0 %1643, %v1334
      %v1645 = vpop.permute.xlu0 %1644
      %1648 = vset.pattern.permute.xlu0 0
      %1649 = vperm.xlu0 %1648, %v1335
      %v1650 = vpop.permute.xlu0 %1649
      %1653 = vset.pattern.permute.xlu0 0
      %1654 = vperm.xlu0 %1653, %v1336
      %v1655 = vpop.permute.xlu0 %1654
      %1658 = vset.pattern.permute.xlu0 0
      %1659 = vperm.xlu0 %1658, %v1337
      %v1660 = vpop.permute.xlu0 %1659
      %1663 = vset.pattern.permute.xlu0 0
      %1664 = vperm.xlu0 %1663, %v1338
      %v1665 = vpop.permute.xlu0 %1664
      %1668 = vset.pattern.permute.xlu0 0
      %1669 = vperm.xlu0 %1668, %v1339
      %v1670 = vpop.permute.xlu0 %1669
      %1673 = vset.pattern.permute.xlu0 0
      %1674 = vperm.xlu0 %1673, %v1340
      %v1675 = vpop.permute.xlu0 %1674
      %1678 = vset.pattern.permute.xlu0 0
      %1679 = vperm.xlu0 %1678, %v1341
      %v1680 = vpop.permute.xlu0 %1679
      %1683 = vset.pattern.permute.xlu0 0
      %1684 = vperm.xlu0 %1683, %v1342
      %v1685 = vpop.permute.xlu0 %1684
      %1688 = vset.pattern.permute.xlu0 0
      %1689 = vperm.xlu0 %1688, %v1343
      %v1690 = vpop.permute.xlu0 %1689
      %1693 = vset.pattern.permute.xlu0 0
      %1694 = vperm.xlu0 %1693, %v1344
      %v1695 = vpop.permute.xlu0 %1694
      %1698 = vset.pattern.permute.xlu0 0
      %1699 = vperm.xlu0 %1698, %v1345
      %v1700 = vpop.permute.xlu0 %1699
      %1703 = vset.pattern.permute.xlu0 0
      %1704 = vperm.xlu0 %1703, %v1346
      %v1705 = vpop.permute.xlu0 %1704
      %1708 = vset.pattern.permute.xlu0 0
      %1709 = vperm.xlu0 %1708, %v1347
      %v1710 = vpop.permute.xlu0 %1709
      %1713 = vset.pattern.permute.xlu0 0
      %1714 = vperm.xlu0 %1713, %v1348
      %v1715 = vpop.permute.xlu0 %1714
      %1718 = vset.pattern.permute.xlu0 0
      %1719 = vperm.xlu0 %1718, %v1349
      %v1720 = vpop.permute.xlu0 %1719
      %1723 = vset.pattern.permute.xlu0 0
      %1724 = vperm.xlu0 %1723, %v1350
      %v1725 = vpop.permute.xlu0 %1724
      %1728 = vset.pattern.permute.xlu0 0
      %1729 = vperm.xlu0 %1728, %v1351
      %v1730 = vpop.permute.xlu0 %1729
      %1733 = vset.pattern.permute.xlu0 0
      %1734 = vperm.xlu0 %1733, %v1352
      %v1735 = vpop.permute.xlu0 %1734
      %1738 = vset.pattern.permute.xlu0 0
      %1739 = vperm.xlu0 %1738, %v1353
      %v1740 = vpop.permute.xlu0 %1739
      %1743 = vset.pattern.permute.xlu0 0
      %1744 = vperm.xlu0 %1743, %v1354
      %v1745 = vpop.permute.xlu0 %1744
      %1748 = vset.pattern.permute.xlu0 0
      %1749 = vperm.xlu0 %1748, %v1355
      %v1750 = vpop.permute.xlu0 %1749
      %1753 = vset.pattern.permute.xlu0 0
      %1754 = vperm.xlu0 %1753, %v1356
      %v1755 = vpop.permute.xlu0 %1754
      %1758 = vset.pattern.permute.xlu0 0
      %1759 = vperm.xlu0 %1758, %v1357
      %v1760 = vpop.permute.xlu0 %1759
      %1763 = vset.pattern.permute.xlu0 0
      %1764 = vperm.xlu0 %1763, %v1358
      %v1765 = vpop.permute.xlu0 %1764
      %1768 = vset.pattern.permute.xlu0 0
      %1769 = vperm.xlu0 %1768, %v1359
      %v1770 = vpop.permute.xlu0 %1769
      %1773 = vset.pattern.permute.xlu0 0
      %1774 = vperm.xlu0 %1773, %v1360
      %v1775 = vpop.permute.xlu0 %1774
      %1778 = vset.pattern.permute.xlu0 0
      %1779 = vperm.xlu0 %1778, %v1361
      %v1780 = vpop.permute.xlu0 %1779
      %1783 = vset.pattern.permute.xlu0 0
      %1784 = vperm.xlu0 %1783, %v1362
      %v1785 = vpop.permute.xlu0 %1784
      %1788 = vset.pattern.permute.xlu0 0
      %1789 = vperm.xlu0 %1788, %v1363
      %v1790 = vpop.permute.xlu0 %1789
      %1793 = vset.pattern.permute.xlu0 0
      %1794 = vperm.xlu0 %1793, %v1364
      %v1795 = vpop.permute.xlu0 %1794
      %1798 = vset.pattern.permute.xlu0 0
      %1799 = vperm.xlu0 %1798, %v1365
      %v1800 = vpop.permute.xlu0 %1799
      %1803 = vset.pattern.permute.xlu0 0
      %1804 = vperm.xlu0 %1803, %v1366
      %v1805 = vpop.permute.xlu0 %1804
      %1808 = vset.pattern.permute.xlu0 0
      %1809 = vperm.xlu0 %1808, %v1367
      %v1810 = vpop.permute.xlu0 %1809
      %1813 = vset.pattern.permute.xlu0 0
      %1814 = vperm.xlu0 %1813, %v1368
      %v1815 = vpop.permute.xlu0 %1814
      %1818 = vset.pattern.permute.xlu0 0
      %1819 = vperm.xlu0 %1818, %v1369
      %v1820 = vpop.permute.xlu0 %1819
      %1823 = vset.pattern.permute.xlu0 0
      %1824 = vperm.xlu0 %1823, %v1370
      %v1825 = vpop.permute.xlu0 %1824
      %1828 = vset.pattern.permute.xlu0 0
      %1829 = vperm.xlu0 %1828, %v1371
      %v1830 = vpop.permute.xlu0 %1829
      %1833 = vset.pattern.permute.xlu0 0
      %1834 = vperm.xlu0 %1833, %v1372
      %v1835 = vpop.permute.xlu0 %1834
      %1838 = vset.pattern.permute.xlu0 0
      %1839 = vperm.xlu0 %1838, %v1373
      %v1840 = vpop.permute.xlu0 %1839
      %1843 = vset.pattern.permute.xlu0 0
      %1844 = vperm.xlu0 %1843, %v1374
      %v1845 = vpop.permute.xlu0 %1844
      %1848 = vset.pattern.permute.xlu0 0
      %1849 = vperm.xlu0 %1848, %v1375
      %v1850 = vpop.permute.xlu0 %1849
      %1853 = vset.pattern.permute.xlu0 0
      %1854 = vperm.xlu0 %1853, %v1376
      %v1855 = vpop.permute.xlu0 %1854
      %1858 = vset.pattern.permute.xlu0 0
      %1859 = vperm.xlu0 %1858, %v1377
      %v1860 = vpop.permute.xlu0 %1859
      %1863 = vset.pattern.permute.xlu0 0
      %1864 = vperm.xlu0 %1863, %v1378
      %v1865 = vpop.permute.xlu0 %1864
      %1868 = vset.pattern.permute.xlu0 0
      %1869 = vperm.xlu0 %1868, %v1379
      %v1870 = vpop.permute.xlu0 %1869
      %1873 = vset.pattern.permute.xlu0 0
      %1874 = vperm.xlu0 %1873, %v1380
      %v1875 = vpop.permute.xlu0 %1874
      %1878 = vset.pattern.permute.xlu0 0
      %1879 = vperm.xlu0 %1878, %v1381
      %v1880 = vpop.permute.xlu0 %1879
      %1883 = vset.pattern.permute.xlu0 0
      %1884 = vperm.xlu0 %1883, %v1382
      %v1885 = vpop.permute.xlu0 %1884
      %1888 = vset.pattern.permute.xlu0 0
      %1889 = vperm.xlu0 %1888, %v1383
      %v1890 = vpop.permute.xlu0 %1889
      %1893 = vset.pattern.permute.xlu0 0
      %1894 = vperm.xlu0 %1893, %v1384
      %v1895 = vpop.permute.xlu0 %1894
      %v1897 = vmul.f32 %v233, %v1580
      %v1898 = vmul.f32 %v234, %v1580
      %v1899 = vmul.f32 %v235, %v1585
      %v1900 = vmul.f32 %v236, %v1585
      %v1901 = vmul.f32 %v237, %v1590
      %v1902 = vmul.f32 %v238, %v1590
      %v1903 = vmul.f32 %v239, %v1595
      %v1904 = vmul.f32 %v240, %v1595
      %v1905 = vmul.f32 %v241, %v1600
      %v1906 = vmul.f32 %v242, %v1600
      %v1907 = vmul.f32 %v243, %v1605
      %v1908 = vmul.f32 %v244, %v1605
      %v1909 = vmul.f32 %v245, %v1610
      %v1910 = vmul.f32 %v246, %v1610
      %v1911 = vmul.f32 %v247, %v1615
      %v1912 = vmul.f32 %v248, %v1615
      %v1913 = vmul.f32 %v249, %v1620
      %v1914 = vmul.f32 %v250, %v1620
      %v1915 = vmul.f32 %v251, %v1625
      %v1916 = vmul.f32 %v252, %v1625
      %v1917 = vmul.f32 %v253, %v1630
      %v1918 = vmul.f32 %v254, %v1630
      %v1919 = vmul.f32 %v255, %v1635
      %v1920 = vmul.f32 %v256, %v1635
      %v1921 = vmul.f32 %v257, %v1640
      %v1922 = vmul.f32 %v258, %v1640
      %v1923 = vmul.f32 %v259, %v1645
      %v1924 = vmul.f32 %v260, %v1645
      %v1925 = vmul.f32 %v261, %v1650
      %v1926 = vmul.f32 %v262, %v1650
      %v1927 = vmul.f32 %v263, %v1655
      %v1928 = vmul.f32 %v264, %v1655
      %v1929 = vmul.f32 %v265, %v1660
      %v1930 = vmul.f32 %v266, %v1660
      %v1931 = vmul.f32 %v267, %v1665
      %v1932 = vmul.f32 %v268, %v1665
      %v1933 = vmul.f32 %v269, %v1670
      %v1934 = vmul.f32 %v270, %v1670
      %v1935 = vmul.f32 %v271, %v1675
      %v1936 = vmul.f32 %v272, %v1675
      %v1937 = vmul.f32 %v273, %v1680
      %v1938 = vmul.f32 %v274, %v1680
      %v1939 = vmul.f32 %v275, %v1685
      %v1940 = vmul.f32 %v276, %v1685
      %v1941 = vmul.f32 %v277, %v1690
      %v1942 = vmul.f32 %v278, %v1690
      %v1943 = vmul.f32 %v279, %v1695
      %v1944 = vmul.f32 %v280, %v1695
      %v1945 = vmul.f32 %v281, %v1700
      %v1946 = vmul.f32 %v282, %v1700
      %v1947 = vmul.f32 %v283, %v1705
      %v1948 = vmul.f32 %v284, %v1705
      %v1949 = vmul.f32 %v285, %v1710
      %v1950 = vmul.f32 %v286, %v1710
      %v1951 = vmul.f32 %v287, %v1715
      %v1952 = vmul.f32 %v288, %v1715
      %v1953 = vmul.f32 %v289, %v1720
      %v1954 = vmul.f32 %v290, %v1720
      %v1955 = vmul.f32 %v291, %v1725
      %v1956 = vmul.f32 %v292, %v1725
      %v1957 = vmul.f32 %v293, %v1730
      %v1958 = vmul.f32 %v294, %v1730
      %v1959 = vmul.f32 %v295, %v1735
      %v1960 = vmul.f32 %v296, %v1735
      %v1961 = vmul.f32 %v297, %v1740
      %v1962 = vmul.f32 %v298, %v1740
      %v1963 = vmul.f32 %v299, %v1745
      %v1964 = vmul.f32 %v300, %v1745
      %v1965 = vmul.f32 %v301, %v1750
      %v1966 = vmul.f32 %v302, %v1750
      %v1967 = vmul.f32 %v303, %v1755
      %v1968 = vmul.f32 %v304, %v1755
      %v1969 = vmul.f32 %v305, %v1760
      %v1970 = vmul.f32 %v306, %v1760
      %v1971 = vmul.f32 %v307, %v1765
      %v1972 = vmul.f32 %v308, %v1765
      %v1973 = vmul.f32 %v309, %v1770
      %v1974 = vmul.f32 %v310, %v1770
      %v1975 = vmul.f32 %v311, %v1775
      %v1976 = vmul.f32 %v312, %v1775
      %v1977 = vmul.f32 %v313, %v1780
      %v1978 = vmul.f32 %v314, %v1780
      %v1979 = vmul.f32 %v315, %v1785
      %v1980 = vmul.f32 %v316, %v1785
      %v1981 = vmul.f32 %v317, %v1790
      %v1982 = vmul.f32 %v318, %v1790
      %v1983 = vmul.f32 %v319, %v1795
      %v1984 = vmul.f32 %v320, %v1795
      %v1985 = vmul.f32 %v321, %v1800
      %v1986 = vmul.f32 %v322, %v1800
      %v1987 = vmul.f32 %v323, %v1805
      %v1988 = vmul.f32 %v324, %v1805
      %v1989 = vmul.f32 %v325, %v1810
      %v1990 = vmul.f32 %v326, %v1810
      %v1991 = vmul.f32 %v327, %v1815
      %v1992 = vmul.f32 %v328, %v1815
      %v1993 = vmul.f32 %v329, %v1820
      %v1994 = vmul.f32 %v330, %v1820
      %v1995 = vmul.f32 %v331, %v1825
      %v1996 = vmul.f32 %v332, %v1825
      %v1997 = vmul.f32 %v333, %v1830
      %v1998 = vmul.f32 %v334, %v1830
      %v1999 = vmul.f32 %v335, %v1835
      %v2000 = vmul.f32 %v336, %v1835
      %v2001 = vmul.f32 %v337, %v1840
      %v2002 = vmul.f32 %v338, %v1840
      %v2003 = vmul.f32 %v339, %v1845
      %v2004 = vmul.f32 %v340, %v1845
      %v2005 = vmul.f32 %v341, %v1850
      %v2006 = vmul.f32 %v342, %v1850
      %v2007 = vmul.f32 %v343, %v1855
      %v2008 = vmul.f32 %v344, %v1855
      %v2009 = vmul.f32 %v345, %v1860
      %v2010 = vmul.f32 %v346, %v1860
      %v2011 = vmul.f32 %v347, %v1865
      %v2012 = vmul.f32 %v348, %v1865
      %v2013 = vmul.f32 %v349, %v1870
      %v2014 = vmul.f32 %v350, %v1870
      %v2015 = vmul.f32 %v351, %v1875
      %v2016 = vmul.f32 %v352, %v1875
      %v2017 = vmul.f32 %v353, %v1880
      %v2018 = vmul.f32 %v354, %v1880
      %v2019 = vmul.f32 %v355, %v1885
      %v2020 = vmul.f32 %v356, %v1885
      %v2021 = vmul.f32 %v357, %v1890
      %v2022 = vmul.f32 %v358, %v1890
      %v2023 = vmul.f32 %v359, %v1895
      %v2024 = vmul.f32 %v360, %v1895
      %2026 = vset.pattern.permute.xlu0 0
      %2027 = vperm.xlu0 %2026, %v1513
      %v2028 = vpop.permute.xlu0 %2027
      %2031 = vset.pattern.permute.xlu0 0
      %2032 = vperm.xlu0 %2031, %v1514
      %v2033 = vpop.permute.xlu0 %2032
      %2036 = vset.pattern.permute.xlu0 0
      %2037 = vperm.xlu0 %2036, %v1515
      %v2038 = vpop.permute.xlu0 %2037
      %2041 = vset.pattern.permute.xlu0 0
      %2042 = vperm.xlu0 %2041, %v1516
      %v2043 = vpop.permute.xlu0 %2042
      %2046 = vset.pattern.permute.xlu0 0
      %2047 = vperm.xlu0 %2046, %v1517
      %v2048 = vpop.permute.xlu0 %2047
      %2051 = vset.pattern.permute.xlu0 0
      %2052 = vperm.xlu0 %2051, %v1518
      %v2053 = vpop.permute.xlu0 %2052
      %2056 = vset.pattern.permute.xlu0 0
      %2057 = vperm.xlu0 %2056, %v1519
      %v2058 = vpop.permute.xlu0 %2057
      %2061 = vset.pattern.permute.xlu0 0
      %2062 = vperm.xlu0 %2061, %v1520
      %v2063 = vpop.permute.xlu0 %2062
      %2066 = vset.pattern.permute.xlu0 0
      %2067 = vperm.xlu0 %2066, %v1521
      %v2068 = vpop.permute.xlu0 %2067
      %2071 = vset.pattern.permute.xlu0 0
      %2072 = vperm.xlu0 %2071, %v1522
      %v2073 = vpop.permute.xlu0 %2072
      %2076 = vset.pattern.permute.xlu0 0
      %2077 = vperm.xlu0 %2076, %v1523
      %v2078 = vpop.permute.xlu0 %2077
      %2081 = vset.pattern.permute.xlu0 0
      %2082 = vperm.xlu0 %2081, %v1524
      %v2083 = vpop.permute.xlu0 %2082
      %2086 = vset.pattern.permute.xlu0 0
      %2087 = vperm.xlu0 %2086, %v1525
      %v2088 = vpop.permute.xlu0 %2087
      %2091 = vset.pattern.permute.xlu0 0
      %2092 = vperm.xlu0 %2091, %v1526
      %v2093 = vpop.permute.xlu0 %2092
      %2096 = vset.pattern.permute.xlu0 0
      %2097 = vperm.xlu0 %2096, %v1527
      %v2098 = vpop.permute.xlu0 %2097
      %2101 = vset.pattern.permute.xlu0 0
      %2102 = vperm.xlu0 %2101, %v1528
      %v2103 = vpop.permute.xlu0 %2102
      %2106 = vset.pattern.permute.xlu0 0
      %2107 = vperm.xlu0 %2106, %v1529
      %v2108 = vpop.permute.xlu0 %2107
      %2111 = vset.pattern.permute.xlu0 0
      %2112 = vperm.xlu0 %2111, %v1530
      %v2113 = vpop.permute.xlu0 %2112
      %2116 = vset.pattern.permute.xlu0 0
      %2117 = vperm.xlu0 %2116, %v1531
      %v2118 = vpop.permute.xlu0 %2117
      %2121 = vset.pattern.permute.xlu0 0
      %2122 = vperm.xlu0 %2121, %v1532
      %v2123 = vpop.permute.xlu0 %2122
      %2126 = vset.pattern.permute.xlu0 0
      %2127 = vperm.xlu0 %2126, %v1533
      %v2128 = vpop.permute.xlu0 %2127
      %2131 = vset.pattern.permute.xlu0 0
      %2132 = vperm.xlu0 %2131, %v1534
      %v2133 = vpop.permute.xlu0 %2132
      %2136 = vset.pattern.permute.xlu0 0
      %2137 = vperm.xlu0 %2136, %v1535
      %v2138 = vpop.permute.xlu0 %2137
      %2141 = vset.pattern.permute.xlu0 0
      %2142 = vperm.xlu0 %2141, %v1536
      %v2143 = vpop.permute.xlu0 %2142
      %2146 = vset.pattern.permute.xlu0 0
      %2147 = vperm.xlu0 %2146, %v1537
      %v2148 = vpop.permute.xlu0 %2147
      %2151 = vset.pattern.permute.xlu0 0
      %2152 = vperm.xlu0 %2151, %v1538
      %v2153 = vpop.permute.xlu0 %2152
      %2156 = vset.pattern.permute.xlu0 0
      %2157 = vperm.xlu0 %2156, %v1539
      %v2158 = vpop.permute.xlu0 %2157
      %2161 = vset.pattern.permute.xlu0 0
      %2162 = vperm.xlu0 %2161, %v1540
      %v2163 = vpop.permute.xlu0 %2162
      %2166 = vset.pattern.permute.xlu0 0
      %2167 = vperm.xlu0 %2166, %v1541
      %v2168 = vpop.permute.xlu0 %2167
      %2171 = vset.pattern.permute.xlu0 0
      %2172 = vperm.xlu0 %2171, %v1542
      %v2173 = vpop.permute.xlu0 %2172
      %2176 = vset.pattern.permute.xlu0 0
      %2177 = vperm.xlu0 %2176, %v1543
      %v2178 = vpop.permute.xlu0 %2177
      %2181 = vset.pattern.permute.xlu0 0
      %2182 = vperm.xlu0 %2181, %v1544
      %v2183 = vpop.permute.xlu0 %2182
      %2186 = vset.pattern.permute.xlu0 0
      %2187 = vperm.xlu0 %2186, %v1545
      %v2188 = vpop.permute.xlu0 %2187
      %2191 = vset.pattern.permute.xlu0 0
      %2192 = vperm.xlu0 %2191, %v1546
      %v2193 = vpop.permute.xlu0 %2192
      %2196 = vset.pattern.permute.xlu0 0
      %2197 = vperm.xlu0 %2196, %v1547
      %v2198 = vpop.permute.xlu0 %2197
      %2201 = vset.pattern.permute.xlu0 0
      %2202 = vperm.xlu0 %2201, %v1548
      %v2203 = vpop.permute.xlu0 %2202
      %2206 = vset.pattern.permute.xlu0 0
      %2207 = vperm.xlu0 %2206, %v1549
      %v2208 = vpop.permute.xlu0 %2207
      %2211 = vset.pattern.permute.xlu0 0
      %2212 = vperm.xlu0 %2211, %v1550
      %v2213 = vpop.permute.xlu0 %2212
      %2216 = vset.pattern.permute.xlu0 0
      %2217 = vperm.xlu0 %2216, %v1551
      %v2218 = vpop.permute.xlu0 %2217
      %2221 = vset.pattern.permute.xlu0 0
      %2222 = vperm.xlu0 %2221, %v1552
      %v2223 = vpop.permute.xlu0 %2222
      %2226 = vset.pattern.permute.xlu0 0
      %2227 = vperm.xlu0 %2226, %v1553
      %v2228 = vpop.permute.xlu0 %2227
      %2231 = vset.pattern.permute.xlu0 0
      %2232 = vperm.xlu0 %2231, %v1554
      %v2233 = vpop.permute.xlu0 %2232
      %2236 = vset.pattern.permute.xlu0 0
      %2237 = vperm.xlu0 %2236, %v1555
      %v2238 = vpop.permute.xlu0 %2237
      %2241 = vset.pattern.permute.xlu0 0
      %2242 = vperm.xlu0 %2241, %v1556
      %v2243 = vpop.permute.xlu0 %2242
      %2246 = vset.pattern.permute.xlu0 0
      %2247 = vperm.xlu0 %2246, %v1557
      %v2248 = vpop.permute.xlu0 %2247
      %2251 = vset.pattern.permute.xlu0 0
      %2252 = vperm.xlu0 %2251, %v1558
      %v2253 = vpop.permute.xlu0 %2252
      %2256 = vset.pattern.permute.xlu0 0
      %2257 = vperm.xlu0 %2256, %v1559
      %v2258 = vpop.permute.xlu0 %2257
      %2261 = vset.pattern.permute.xlu0 0
      %2262 = vperm.xlu0 %2261, %v1560
      %v2263 = vpop.permute.xlu0 %2262
      %2266 = vset.pattern.permute.xlu0 0
      %2267 = vperm.xlu0 %2266, %v1561
      %v2268 = vpop.permute.xlu0 %2267
      %2271 = vset.pattern.permute.xlu0 0
      %2272 = vperm.xlu0 %2271, %v1562
      %v2273 = vpop.permute.xlu0 %2272
      %2276 = vset.pattern.permute.xlu0 0
      %2277 = vperm.xlu0 %2276, %v1563
      %v2278 = vpop.permute.xlu0 %2277
      %2281 = vset.pattern.permute.xlu0 0
      %2282 = vperm.xlu0 %2281, %v1564
      %v2283 = vpop.permute.xlu0 %2282
      %2286 = vset.pattern.permute.xlu0 0
      %2287 = vperm.xlu0 %2286, %v1565
      %v2288 = vpop.permute.xlu0 %2287
      %2291 = vset.pattern.permute.xlu0 0
      %2292 = vperm.xlu0 %2291, %v1566
      %v2293 = vpop.permute.xlu0 %2292
      %2296 = vset.pattern.permute.xlu0 0
      %2297 = vperm.xlu0 %2296, %v1567
      %v2298 = vpop.permute.xlu0 %2297
      %2301 = vset.pattern.permute.xlu0 0
      %2302 = vperm.xlu0 %2301, %v1568
      %v2303 = vpop.permute.xlu0 %2302
      %2306 = vset.pattern.permute.xlu0 0
      %2307 = vperm.xlu0 %2306, %v1569
      %v2308 = vpop.permute.xlu0 %2307
      %2311 = vset.pattern.permute.xlu0 0
      %2312 = vperm.xlu0 %2311, %v1570
      %v2313 = vpop.permute.xlu0 %2312
      %2316 = vset.pattern.permute.xlu0 0
      %2317 = vperm.xlu0 %2316, %v1571
      %v2318 = vpop.permute.xlu0 %2317
      %2321 = vset.pattern.permute.xlu0 0
      %2322 = vperm.xlu0 %2321, %v1572
      %v2323 = vpop.permute.xlu0 %2322
      %2326 = vset.pattern.permute.xlu0 0
      %2327 = vperm.xlu0 %2326, %v1573
      %v2328 = vpop.permute.xlu0 %2327
      %2331 = vset.pattern.permute.xlu0 0
      %2332 = vperm.xlu0 %2331, %v1574
      %v2333 = vpop.permute.xlu0 %2332
      %2336 = vset.pattern.permute.xlu0 0
      %2337 = vperm.xlu0 %2336, %v1575
      %v2338 = vpop.permute.xlu0 %2337
      %2341 = vset.pattern.permute.xlu0 0
      %2342 = vperm.xlu0 %2341, %v1576
      %v2343 = vpop.permute.xlu0 %2342
      %v2345 = vadd.f32 %v1897, %v2028
      %v2346 = vadd.f32 %v1898, %v2028
      %v2347 = vadd.f32 %v1899, %v2033
      %v2348 = vadd.f32 %v1900, %v2033
      %v2349 = vadd.f32 %v1901, %v2038
      %v2350 = vadd.f32 %v1902, %v2038
      %v2351 = vadd.f32 %v1903, %v2043
      %v2352 = vadd.f32 %v1904, %v2043
      %v2353 = vadd.f32 %v1905, %v2048
      %v2354 = vadd.f32 %v1906, %v2048
      %v2355 = vadd.f32 %v1907, %v2053
      %v2356 = vadd.f32 %v1908, %v2053
      %v2357 = vadd.f32 %v1909, %v2058
      %v2358 = vadd.f32 %v1910, %v2058
      %v2359 = vadd.f32 %v1911, %v2063
      %v2360 = vadd.f32 %v1912, %v2063
      %v2361 = vadd.f32 %v1913, %v2068
      %v2362 = vadd.f32 %v1914, %v2068
      %v2363 = vadd.f32 %v1915, %v2073
      %v2364 = vadd.f32 %v1916, %v2073
      %v2365 = vadd.f32 %v1917, %v2078
      %v2366 = vadd.f32 %v1918, %v2078
      %v2367 = vadd.f32 %v1919, %v2083
      %v2368 = vadd.f32 %v1920, %v2083
      %v2369 = vadd.f32 %v1921, %v2088
      %v2370 = vadd.f32 %v1922, %v2088
      %v2371 = vadd.f32 %v1923, %v2093
      %v2372 = vadd.f32 %v1924, %v2093
      %v2373 = vadd.f32 %v1925, %v2098
      %v2374 = vadd.f32 %v1926, %v2098
      %v2375 = vadd.f32 %v1927, %v2103
      %v2376 = vadd.f32 %v1928, %v2103
      %v2377 = vadd.f32 %v1929, %v2108
      %v2378 = vadd.f32 %v1930, %v2108
      %v2379 = vadd.f32 %v1931, %v2113
      %v2380 = vadd.f32 %v1932, %v2113
      %v2381 = vadd.f32 %v1933, %v2118
      %v2382 = vadd.f32 %v1934, %v2118
      %v2383 = vadd.f32 %v1935, %v2123
      %v2384 = vadd.f32 %v1936, %v2123
      %v2385 = vadd.f32 %v1937, %v2128
      %v2386 = vadd.f32 %v1938, %v2128
      %v2387 = vadd.f32 %v1939, %v2133
      %v2388 = vadd.f32 %v1940, %v2133
      %v2389 = vadd.f32 %v1941, %v2138
      %v2390 = vadd.f32 %v1942, %v2138
      %v2391 = vadd.f32 %v1943, %v2143
      %v2392 = vadd.f32 %v1944, %v2143
      %v2393 = vadd.f32 %v1945, %v2148
      %v2394 = vadd.f32 %v1946, %v2148
      %v2395 = vadd.f32 %v1947, %v2153
      %v2396 = vadd.f32 %v1948, %v2153
      %v2397 = vadd.f32 %v1949, %v2158
      %v2398 = vadd.f32 %v1950, %v2158
      %v2399 = vadd.f32 %v1951, %v2163
      %v2400 = vadd.f32 %v1952, %v2163
      %v2401 = vadd.f32 %v1953, %v2168
      %v2402 = vadd.f32 %v1954, %v2168
      %v2403 = vadd.f32 %v1955, %v2173
      %v2404 = vadd.f32 %v1956, %v2173
      %v2405 = vadd.f32 %v1957, %v2178
      %v2406 = vadd.f32 %v1958, %v2178
      %v2407 = vadd.f32 %v1959, %v2183
      %v2408 = vadd.f32 %v1960, %v2183
      %v2409 = vadd.f32 %v1961, %v2188
      %v2410 = vadd.f32 %v1962, %v2188
      %v2411 = vadd.f32 %v1963, %v2193
      %v2412 = vadd.f32 %v1964, %v2193
      %v2413 = vadd.f32 %v1965, %v2198
      %v2414 = vadd.f32 %v1966, %v2198
      %v2415 = vadd.f32 %v1967, %v2203
      %v2416 = vadd.f32 %v1968, %v2203
      %v2417 = vadd.f32 %v1969, %v2208
      %v2418 = vadd.f32 %v1970, %v2208
      %v2419 = vadd.f32 %v1971, %v2213
      %v2420 = vadd.f32 %v1972, %v2213
      %v2421 = vadd.f32 %v1973, %v2218
      %v2422 = vadd.f32 %v1974, %v2218
      %v2423 = vadd.f32 %v1975, %v2223
      %v2424 = vadd.f32 %v1976, %v2223
      %v2425 = vadd.f32 %v1977, %v2228
      %v2426 = vadd.f32 %v1978, %v2228
      %v2427 = vadd.f32 %v1979, %v2233
      %v2428 = vadd.f32 %v1980, %v2233
      %v2429 = vadd.f32 %v1981, %v2238
      %v2430 = vadd.f32 %v1982, %v2238
      %v2431 = vadd.f32 %v1983, %v2243
      %v2432 = vadd.f32 %v1984, %v2243
      %v2433 = vadd.f32 %v1985, %v2248
      %v2434 = vadd.f32 %v1986, %v2248
      %v2435 = vadd.f32 %v1987, %v2253
      %v2436 = vadd.f32 %v1988, %v2253
      %v2437 = vadd.f32 %v1989, %v2258
      %v2438 = vadd.f32 %v1990, %v2258
      %v2439 = vadd.f32 %v1991, %v2263
      %v2440 = vadd.f32 %v1992, %v2263
      %v2441 = vadd.f32 %v1993, %v2268
      %v2442 = vadd.f32 %v1994, %v2268
      %v2443 = vadd.f32 %v1995, %v2273
      %v2444 = vadd.f32 %v1996, %v2273
      %v2445 = vadd.f32 %v1997, %v2278
      %v2446 = vadd.f32 %v1998, %v2278
      %v2447 = vadd.f32 %v1999, %v2283
      %v2448 = vadd.f32 %v2000, %v2283
      %v2449 = vadd.f32 %v2001, %v2288
      %v2450 = vadd.f32 %v2002, %v2288
      %v2451 = vadd.f32 %v2003, %v2293
      %v2452 = vadd.f32 %v2004, %v2293
      %v2453 = vadd.f32 %v2005, %v2298
      %v2454 = vadd.f32 %v2006, %v2298
      %v2455 = vadd.f32 %v2007, %v2303
      %v2456 = vadd.f32 %v2008, %v2303
      %v2457 = vadd.f32 %v2009, %v2308
      %v2458 = vadd.f32 %v2010, %v2308
      %v2459 = vadd.f32 %v2011, %v2313
      %v2460 = vadd.f32 %v2012, %v2313
      %v2461 = vadd.f32 %v2013, %v2318
      %v2462 = vadd.f32 %v2014, %v2318
      %v2463 = vadd.f32 %v2015, %v2323
      %v2464 = vadd.f32 %v2016, %v2323
      %v2465 = vadd.f32 %v2017, %v2328
      %v2466 = vadd.f32 %v2018, %v2328
      %v2467 = vadd.f32 %v2019, %v2333
      %v2468 = vadd.f32 %v2020, %v2333
      %v2469 = vadd.f32 %v2021, %v2338
      %v2470 = vadd.f32 %v2022, %v2338
      %v2471 = vadd.f32 %v2023, %v2343
      %v2472 = vadd.f32 %v2024, %v2343
      %v2473 = vld [vmem:[%s1] sm:$0xff]
      %v2474 = vld [vmem:[%s1 + $0x8] sm:$0xff]
      %v2475 = vld [vmem:[%s1 + $0x10] sm:$0xff]
      %v2476 = vld [vmem:[%s1 + $0x18] sm:$0xff]
      %v2477 = vld [vmem:[%s1 + $0x20] sm:$0xff]
      %v2478 = vld [vmem:[%s1 + $0x28] sm:$0xff]
      %v2479 = vld [vmem:[%s1 + $0x30] sm:$0xff]
      %v2480 = vld [vmem:[%s1 + $0x38] sm:$0xff]
      %v2481 = vld [vmem:[%s1 + $0x40] sm:$0xff]
      %v2482 = vld [vmem:[%s1 + $0x48] sm:$0xff]
      %v2483 = vld [vmem:[%s1 + $0x50] sm:$0xff]
      %v2484 = vld [vmem:[%s1 + $0x58] sm:$0xff]
      %v2485 = vld [vmem:[%s1 + $0x60] sm:$0xff]
      %v2486 = vld [vmem:[%s1 + $0x68] sm:$0xff]
      %v2487 = vld [vmem:[%s1 + $0x70] sm:$0xff]
      %v2488 = vld [vmem:[%s1 + $0x78] sm:$0xff]
      %v2489 = vld [vmem:[%s1 + $0x80] sm:$0xff]
      %v2490 = vld [vmem:[%s1 + $0x88] sm:$0xff]
      %v2491 = vld [vmem:[%s1 + $0x90] sm:$0xff]
      %v2492 = vld [vmem:[%s1 + $0x98] sm:$0xff]
      %v2493 = vld [vmem:[%s1 + $0xa0] sm:$0xff]
      %v2494 = vld [vmem:[%s1 + $0xa8] sm:$0xff]
      %v2495 = vld [vmem:[%s1 + $0xb0] sm:$0xff]
      %v2496 = vld [vmem:[%s1 + $0xb8] sm:$0xff]
      %v2497 = vld [vmem:[%s1 + $0xc0] sm:$0xff]
      %v2498 = vld [vmem:[%s1 + $0xc8] sm:$0xff]
      %v2499 = vld [vmem:[%s1 + $0xd0] sm:$0xff]
      %v2500 = vld [vmem:[%s1 + $0xd8] sm:$0xff]
      %v2501 = vld [vmem:[%s1 + $0xe0] sm:$0xff]
      %v2502 = vld [vmem:[%s1 + $0xe8] sm:$0xff]
      %v2503 = vld [vmem:[%s1 + $0xf0] sm:$0xff]
      %v2504 = vld [vmem:[%s1 + $0xf8] sm:$0xff]
      %v2505 = vld [vmem:[%s1 + $0x100] sm:$0xff]
      %v2506 = vld [vmem:[%s1 + $0x108] sm:$0xff]
      %v2507 = vld [vmem:[%s1 + $0x110] sm:$0xff]
      %v2508 = vld [vmem:[%s1 + $0x118] sm:$0xff]
      %v2509 = vld [vmem:[%s1 + $0x120] sm:$0xff]
      %v2510 = vld [vmem:[%s1 + $0x128] sm:$0xff]
      %v2511 = vld [vmem:[%s1 + $0x130] sm:$0xff]
      %v2512 = vld [vmem:[%s1 + $0x138] sm:$0xff]
      %v2513 = vld [vmem:[%s1 + $0x140] sm:$0xff]
      %v2514 = vld [vmem:[%s1 + $0x148] sm:$0xff]
      %v2515 = vld [vmem:[%s1 + $0x150] sm:$0xff]
      %v2516 = vld [vmem:[%s1 + $0x158] sm:$0xff]
      %v2517 = vld [vmem:[%s1 + $0x160] sm:$0xff]
      %v2518 = vld [vmem:[%s1 + $0x168] sm:$0xff]
      %v2519 = vld [vmem:[%s1 + $0x170] sm:$0xff]
      %v2520 = vld [vmem:[%s1 + $0x178] sm:$0xff]
      %v2521 = vld [vmem:[%s1 + $0x180] sm:$0xff]
      %v2522 = vld [vmem:[%s1 + $0x188] sm:$0xff]
      %v2523 = vld [vmem:[%s1 + $0x190] sm:$0xff]
      %v2524 = vld [vmem:[%s1 + $0x198] sm:$0xff]
      %v2525 = vld [vmem:[%s1 + $0x1a0] sm:$0xff]
      %v2526 = vld [vmem:[%s1 + $0x1a8] sm:$0xff]
      %v2527 = vld [vmem:[%s1 + $0x1b0] sm:$0xff]
      %v2528 = vld [vmem:[%s1 + $0x1b8] sm:$0xff]
      %v2529 = vld [vmem:[%s1 + $0x1c0] sm:$0xff]
      %v2530 = vld [vmem:[%s1 + $0x1c8] sm:$0xff]
      %v2531 = vld [vmem:[%s1 + $0x1d0] sm:$0xff]
      %v2532 = vld [vmem:[%s1 + $0x1d8] sm:$0xff]
      %v2533 = vld [vmem:[%s1 + $0x1e0] sm:$0xff]
      %v2534 = vld [vmem:[%s1 + $0x1e8] sm:$0xff]
      %v2535 = vld [vmem:[%s1 + $0x1f0] sm:$0xff]
      %v2536 = vld [vmem:[%s1 + $0x1f8] sm:$0xff]
      %v2537 = vld [vmem:[%s1 + $0x200] sm:$0xff]
      %v2538 = vld [vmem:[%s1 + $0x208] sm:$0xff]
      %v2539 = vld [vmem:[%s1 + $0x210] sm:$0xff]
      %v2540 = vld [vmem:[%s1 + $0x218] sm:$0xff]
      %v2541 = vld [vmem:[%s1 + $0x220] sm:$0xff]
      %v2542 = vld [vmem:[%s1 + $0x228] sm:$0xff]
      %v2543 = vld [vmem:[%s1 + $0x230] sm:$0xff]
      %v2544 = vld [vmem:[%s1 + $0x238] sm:$0xff]
      %v2545 = vld [vmem:[%s1 + $0x240] sm:$0xff]
      %v2546 = vld [vmem:[%s1 + $0x248] sm:$0xff]
      %v2547 = vld [vmem:[%s1 + $0x250] sm:$0xff]
      %v2548 = vld [vmem:[%s1 + $0x258] sm:$0xff]
      %v2549 = vld [vmem:[%s1 + $0x260] sm:$0xff]
      %v2550 = vld [vmem:[%s1 + $0x268] sm:$0xff]
      %v2551 = vld [vmem:[%s1 + $0x270] sm:$0xff]
      %v2552 = vld [vmem:[%s1 + $0x278] sm:$0xff]
      %v2553 = vld [vmem:[%s1 + $0x280] sm:$0xff]
      %v2554 = vld [vmem:[%s1 + $0x288] sm:$0xff]
      %v2555 = vld [vmem:[%s1 + $0x290] sm:$0xff]
      %v2556 = vld [vmem:[%s1 + $0x298] sm:$0xff]
      %v2557 = vld [vmem:[%s1 + $0x2a0] sm:$0xff]
      %v2558 = vld [vmem:[%s1 + $0x2a8] sm:$0xff]
      %v2559 = vld [vmem:[%s1 + $0x2b0] sm:$0xff]
      %v2560 = vld [vmem:[%s1 + $0x2b8] sm:$0xff]
      %v2561 = vld [vmem:[%s1 + $0x2c0] sm:$0xff]
      %v2562 = vld [vmem:[%s1 + $0x2c8] sm:$0xff]
      %v2563 = vld [vmem:[%s1 + $0x2d0] sm:$0xff]
      %v2564 = vld [vmem:[%s1 + $0x2d8] sm:$0xff]
      %v2565 = vld [vmem:[%s1 + $0x2e0] sm:$0xff]
      %v2566 = vld [vmem:[%s1 + $0x2e8] sm:$0xff]
      %v2567 = vld [vmem:[%s1 + $0x2f0] sm:$0xff]
      %v2568 = vld [vmem:[%s1 + $0x2f8] sm:$0xff]
      %v2569 = vld [vmem:[%s1 + $0x300] sm:$0xff]
      %v2570 = vld [vmem:[%s1 + $0x308] sm:$0xff]
      %v2571 = vld [vmem:[%s1 + $0x310] sm:$0xff]
      %v2572 = vld [vmem:[%s1 + $0x318] sm:$0xff]
      %v2573 = vld [vmem:[%s1 + $0x320] sm:$0xff]
      %v2574 = vld [vmem:[%s1 + $0x328] sm:$0xff]
      %v2575 = vld [vmem:[%s1 + $0x330] sm:$0xff]
      %v2576 = vld [vmem:[%s1 + $0x338] sm:$0xff]
      %v2577 = vld [vmem:[%s1 + $0x340] sm:$0xff]
      %v2578 = vld [vmem:[%s1 + $0x348] sm:$0xff]
      %v2579 = vld [vmem:[%s1 + $0x350] sm:$0xff]
      %v2580 = vld [vmem:[%s1 + $0x358] sm:$0xff]
      %v2581 = vld [vmem:[%s1 + $0x360] sm:$0xff]
      %v2582 = vld [vmem:[%s1 + $0x368] sm:$0xff]
      %v2583 = vld [vmem:[%s1 + $0x370] sm:$0xff]
      %v2584 = vld [vmem:[%s1 + $0x378] sm:$0xff]
      %v2585 = vld [vmem:[%s1 + $0x380] sm:$0xff]
      %v2586 = vld [vmem:[%s1 + $0x388] sm:$0xff]
      %v2587 = vld [vmem:[%s1 + $0x390] sm:$0xff]
      %v2588 = vld [vmem:[%s1 + $0x398] sm:$0xff]
      %v2589 = vld [vmem:[%s1 + $0x3a0] sm:$0xff]
      %v2590 = vld [vmem:[%s1 + $0x3a8] sm:$0xff]
      %v2591 = vld [vmem:[%s1 + $0x3b0] sm:$0xff]
      %v2592 = vld [vmem:[%s1 + $0x3b8] sm:$0xff]
      %v2593 = vld [vmem:[%s1 + $0x3c0] sm:$0xff]
      %v2594 = vld [vmem:[%s1 + $0x3c8] sm:$0xff]
      %v2595 = vld [vmem:[%s1 + $0x3d0] sm:$0xff]
      %v2596 = vld [vmem:[%s1 + $0x3d8] sm:$0xff]
      %v2597 = vld [vmem:[%s1 + $0x3e0] sm:$0xff]
      %v2598 = vld [vmem:[%s1 + $0x3e8] sm:$0xff]
      %v2599 = vld [vmem:[%s1 + $0x3f0] sm:$0xff]
      %v2600 = vld [vmem:[%s1 + $0x3f8] sm:$0xff]
      %v2601 = vadd.f32 %v2345, %v2473
      %v2602 = vadd.f32 %v2346, %v2474
      %v2603 = vadd.f32 %v2347, %v2475
      %v2604 = vadd.f32 %v2348, %v2476
      %v2605 = vadd.f32 %v2349, %v2477
      %v2606 = vadd.f32 %v2350, %v2478
      %v2607 = vadd.f32 %v2351, %v2479
      %v2608 = vadd.f32 %v2352, %v2480
      %v2609 = vadd.f32 %v2353, %v2481
      %v2610 = vadd.f32 %v2354, %v2482
      %v2611 = vadd.f32 %v2355, %v2483
      %v2612 = vadd.f32 %v2356, %v2484
      %v2613 = vadd.f32 %v2357, %v2485
      %v2614 = vadd.f32 %v2358, %v2486
      %v2615 = vadd.f32 %v2359, %v2487
      %v2616 = vadd.f32 %v2360, %v2488
      %v2617 = vadd.f32 %v2361, %v2489
      %v2618 = vadd.f32 %v2362, %v2490
      %v2619 = vadd.f32 %v2363, %v2491
      %v2620 = vadd.f32 %v2364, %v2492
      %v2621 = vadd.f32 %v2365, %v2493
      %v2622 = vadd.f32 %v2366, %v2494
      %v2623 = vadd.f32 %v2367, %v2495
      %v2624 = vadd.f32 %v2368, %v2496
      %v2625 = vadd.f32 %v2369, %v2497
      %v2626 = vadd.f32 %v2370, %v2498
      %v2627 = vadd.f32 %v2371, %v2499
      %v2628 = vadd.f32 %v2372, %v2500
      %v2629 = vadd.f32 %v2373, %v2501
      %v2630 = vadd.f32 %v2374, %v2502
      %v2631 = vadd.f32 %v2375, %v2503
      %v2632 = vadd.f32 %v2376, %v2504
      %v2633 = vadd.f32 %v2377, %v2505
      %v2634 = vadd.f32 %v2378, %v2506
      %v2635 = vadd.f32 %v2379, %v2507
      %v2636 = vadd.f32 %v2380, %v2508
      %v2637 = vadd.f32 %v2381, %v2509
      %v2638 = vadd.f32 %v2382, %v2510
      %v2639 = vadd.f32 %v2383, %v2511
      %v2640 = vadd.f32 %v2384, %v2512
      %v2641 = vadd.f32 %v2385, %v2513
      %v2642 = vadd.f32 %v2386, %v2514
      %v2643 = vadd.f32 %v2387, %v2515
      %v2644 = vadd.f32 %v2388, %v2516
      %v2645 = vadd.f32 %v2389, %v2517
      %v2646 = vadd.f32 %v2390, %v2518
      %v2647 = vadd.f32 %v2391, %v2519
      %v2648 = vadd.f32 %v2392, %v2520
      %v2649 = vadd.f32 %v2393, %v2521
      %v2650 = vadd.f32 %v2394, %v2522
      %v2651 = vadd.f32 %v2395, %v2523
      %v2652 = vadd.f32 %v2396, %v2524
      %v2653 = vadd.f32 %v2397, %v2525
      %v2654 = vadd.f32 %v2398, %v2526
      %v2655 = vadd.f32 %v2399, %v2527
      %v2656 = vadd.f32 %v2400, %v2528
      %v2657 = vadd.f32 %v2401, %v2529
      %v2658 = vadd.f32 %v2402, %v2530
      %v2659 = vadd.f32 %v2403, %v2531
      %v2660 = vadd.f32 %v2404, %v2532
      %v2661 = vadd.f32 %v2405, %v2533
      %v2662 = vadd.f32 %v2406, %v2534
      %v2663 = vadd.f32 %v2407, %v2535
      %v2664 = vadd.f32 %v2408, %v2536
      %v2665 = vadd.f32 %v2409, %v2537
      %v2666 = vadd.f32 %v2410, %v2538
      %v2667 = vadd.f32 %v2411, %v2539
      %v2668 = vadd.f32 %v2412, %v2540
      %v2669 = vadd.f32 %v2413, %v2541
      %v2670 = vadd.f32 %v2414, %v2542
      %v2671 = vadd.f32 %v2415, %v2543
      %v2672 = vadd.f32 %v2416, %v2544
      %v2673 = vadd.f32 %v2417, %v2545
      %v2674 = vadd.f32 %v2418, %v2546
      %v2675 = vadd.f32 %v2419, %v2547
      %v2676 = vadd.f32 %v2420, %v2548
      %v2677 = vadd.f32 %v2421, %v2549
      %v2678 = vadd.f32 %v2422, %v2550
      %v2679 = vadd.f32 %v2423, %v2551
      %v2680 = vadd.f32 %v2424, %v2552
      %v2681 = vadd.f32 %v2425, %v2553
      %v2682 = vadd.f32 %v2426, %v2554
      %v2683 = vadd.f32 %v2427, %v2555
      %v2684 = vadd.f32 %v2428, %v2556
      %v2685 = vadd.f32 %v2429, %v2557
      %v2686 = vadd.f32 %v2430, %v2558
      %v2687 = vadd.f32 %v2431, %v2559
      %v2688 = vadd.f32 %v2432, %v2560
      %v2689 = vadd.f32 %v2433, %v2561
      %v2690 = vadd.f32 %v2434, %v2562
      %v2691 = vadd.f32 %v2435, %v2563
      %v2692 = vadd.f32 %v2436, %v2564
      %v2693 = vadd.f32 %v2437, %v2565
      %v2694 = vadd.f32 %v2438, %v2566
      %v2695 = vadd.f32 %v2439, %v2567
      %v2696 = vadd.f32 %v2440, %v2568
      %v2697 = vadd.f32 %v2441, %v2569
      %v2698 = vadd.f32 %v2442, %v2570
      %v2699 = vadd.f32 %v2443, %v2571
      %v2700 = vadd.f32 %v2444, %v2572
      %v2701 = vadd.f32 %v2445, %v2573
      %v2702 = vadd.f32 %v2446, %v2574
      %v2703 = vadd.f32 %v2447, %v2575
      %v2704 = vadd.f32 %v2448, %v2576
      %v2705 = vadd.f32 %v2449, %v2577
      %v2706 = vadd.f32 %v2450, %v2578
      %v2707 = vadd.f32 %v2451, %v2579
      %v2708 = vadd.f32 %v2452, %v2580
      %v2709 = vadd.f32 %v2453, %v2581
      %v2710 = vadd.f32 %v2454, %v2582
      %v2711 = vadd.f32 %v2455, %v2583
      %v2712 = vadd.f32 %v2456, %v2584
      %v2713 = vadd.f32 %v2457, %v2585
      %v2714 = vadd.f32 %v2458, %v2586
      %v2715 = vadd.f32 %v2459, %v2587
      %v2716 = vadd.f32 %v2460, %v2588
      %v2717 = vadd.f32 %v2461, %v2589
      %v2718 = vadd.f32 %v2462, %v2590
      %v2719 = vadd.f32 %v2463, %v2591
      %v2720 = vadd.f32 %v2464, %v2592
      %v2721 = vadd.f32 %v2465, %v2593
      %v2722 = vadd.f32 %v2466, %v2594
      %v2723 = vadd.f32 %v2467, %v2595
      %v2724 = vadd.f32 %v2468, %v2596
      %v2725 = vadd.f32 %v2469, %v2597
      %v2726 = vadd.f32 %v2470, %v2598
      %v2727 = vadd.f32 %v2471, %v2599
      %v2728 = vadd.f32 %v2472, %v2600
      %v2729 = vmax.f32 %v2601, 0.0
      %v2730 = vmax.f32 %v2602, 0.0
      %v2731 = vmax.f32 %v2603, 0.0
      %v2732 = vmax.f32 %v2604, 0.0
      %v2733 = vmax.f32 %v2605, 0.0
      %v2734 = vmax.f32 %v2606, 0.0
      %v2735 = vmax.f32 %v2607, 0.0
      %v2736 = vmax.f32 %v2608, 0.0
      %v2737 = vmax.f32 %v2609, 0.0
      %v2738 = vmax.f32 %v2610, 0.0
      %v2739 = vmax.f32 %v2611, 0.0
      %v2740 = vmax.f32 %v2612, 0.0
      %v2741 = vmax.f32 %v2613, 0.0
      %v2742 = vmax.f32 %v2614, 0.0
      %v2743 = vmax.f32 %v2615, 0.0
      %v2744 = vmax.f32 %v2616, 0.0
      %v2745 = vmax.f32 %v2617, 0.0
      %v2746 = vmax.f32 %v2618, 0.0
      %v2747 = vmax.f32 %v2619, 0.0
      %v2748 = vmax.f32 %v2620, 0.0
      %v2749 = vmax.f32 %v2621, 0.0
      %v2750 = vmax.f32 %v2622, 0.0
      %v2751 = vmax.f32 %v2623, 0.0
      %v2752 = vmax.f32 %v2624, 0.0
      %v2753 = vmax.f32 %v2625, 0.0
      %v2754 = vmax.f32 %v2626, 0.0
      %v2755 = vmax.f32 %v2627, 0.0
      %v2756 = vmax.f32 %v2628, 0.0
      %v2757 = vmax.f32 %v2629, 0.0
      %v2758 = vmax.f32 %v2630, 0.0
      %v2759 = vmax.f32 %v2631, 0.0
      %v2760 = vmax.f32 %v2632, 0.0
      %v2761 = vmax.f32 %v2633, 0.0
      %v2762 = vmax.f32 %v2634, 0.0
      %v2763 = vmax.f32 %v2635, 0.0
      %v2764 = vmax.f32 %v2636, 0.0
      %v2765 = vmax.f32 %v2637, 0.0
      %v2766 = vmax.f32 %v2638, 0.0
      %v2767 = vmax.f32 %v2639, 0.0
      %v2768 = vmax.f32 %v2640, 0.0
      %v2769 = vmax.f32 %v2641, 0.0
      %v2770 = vmax.f32 %v2642, 0.0
      %v2771 = vmax.f32 %v2643, 0.0
      %v2772 = vmax.f32 %v2644, 0.0
      %v2773 = vmax.f32 %v2645, 0.0
      %v2774 = vmax.f32 %v2646, 0.0
      %v2775 = vmax.f32 %v2647, 0.0
      %v2776 = vmax.f32 %v2648, 0.0
      %v2777 = vmax.f32 %v2649, 0.0
      %v2778 = vmax.f32 %v2650, 0.0
      %v2779 = vmax.f32 %v2651, 0.0
      %v2780 = vmax.f32 %v2652, 0.0
      %v2781 = vmax.f32 %v2653, 0.0
      %v2782 = vmax.f32 %v2654, 0.0
      %v2783 = vmax.f32 %v2655, 0.0
      %v2784 = vmax.f32 %v2656, 0.0
      %v2785 = vmax.f32 %v2657, 0.0
      %v2786 = vmax.f32 %v2658, 0.0
      %v2787 = vmax.f32 %v2659, 0.0
      %v2788 = vmax.f32 %v2660, 0.0
      %v2789 = vmax.f32 %v2661, 0.0
      %v2790 = vmax.f32 %v2662, 0.0
      %v2791 = vmax.f32 %v2663, 0.0
      %v2792 = vmax.f32 %v2664, 0.0
      %v2793 = vmax.f32 %v2665, 0.0
      %v2794 = vmax.f32 %v2666, 0.0
      %v2795 = vmax.f32 %v2667, 0.0
      %v2796 = vmax.f32 %v2668, 0.0
      %v2797 = vmax.f32 %v2669, 0.0
      %v2798 = vmax.f32 %v2670, 0.0
      %v2799 = vmax.f32 %v2671, 0.0
      %v2800 = vmax.f32 %v2672, 0.0
      %v2801 = vmax.f32 %v2673, 0.0
      %v2802 = vmax.f32 %v2674, 0.0
      %v2803 = vmax.f32 %v2675, 0.0
      %v2804 = vmax.f32 %v2676, 0.0
      %v2805 = vmax.f32 %v2677, 0.0
      %v2806 = vmax.f32 %v2678, 0.0
      %v2807 = vmax.f32 %v2679, 0.0
      %v2808 = vmax.f32 %v2680, 0.0
      %v2809 = vmax.f32 %v2681, 0.0
      %v2810 = vmax.f32 %v2682, 0.0
      %v2811 = vmax.f32 %v2683, 0.0
      %v2812 = vmax.f32 %v2684, 0.0
      %v2813 = vmax.f32 %v2685, 0.0
      %v2814 = vmax.f32 %v2686, 0.0
      %v2815 = vmax.f32 %v2687, 0.0
      %v2816 = vmax.f32 %v2688, 0.0
      %v2817 = vmax.f32 %v2689, 0.0
      %v2818 = vmax.f32 %v2690, 0.0
      %v2819 = vmax.f32 %v2691, 0.0
      %v2820 = vmax.f32 %v2692, 0.0
      %v2821 = vmax.f32 %v2693, 0.0
      %v2822 = vmax.f32 %v2694, 0.0
      %v2823 = vmax.f32 %v2695, 0.0
      %v2824 = vmax.f32 %v2696, 0.0
      %v2825 = vmax.f32 %v2697, 0.0
      %v2826 = vmax.f32 %v2698, 0.0
      %v2827 = vmax.f32 %v2699, 0.0
      %v2828 = vmax.f32 %v2700, 0.0
      %v2829 = vmax.f32 %v2701, 0.0
      %v2830 = vmax.f32 %v2702, 0.0
      %v2831 = vmax.f32 %v2703, 0.0
      %v2832 = vmax.f32 %v2704, 0.0
      %v2833 = vmax.f32 %v2705, 0.0
      %v2834 = vmax.f32 %v2706, 0.0
      %v2835 = vmax.f32 %v2707, 0.0
      %v2836 = vmax.f32 %v2708, 0.0
      %v2837 = vmax.f32 %v2709, 0.0
      %v2838 = vmax.f32 %v2710, 0.0
      %v2839 = vmax.f32 %v2711, 0.0
      %v2840 = vmax.f32 %v2712, 0.0
      %v2841 = vmax.f32 %v2713, 0.0
      %v2842 = vmax.f32 %v2714, 0.0
      %v2843 = vmax.f32 %v2715, 0.0
      %v2844 = vmax.f32 %v2716, 0.0
      %v2845 = vmax.f32 %v2717, 0.0
      %v2846 = vmax.f32 %v2718, 0.0
      %v2847 = vmax.f32 %v2719, 0.0
      %v2848 = vmax.f32 %v2720, 0.0
      %v2849 = vmax.f32 %v2721, 0.0
      %v2850 = vmax.f32 %v2722, 0.0
      %v2851 = vmax.f32 %v2723, 0.0
      %v2852 = vmax.f32 %v2724, 0.0
      %v2853 = vmax.f32 %v2725, 0.0
      %v2854 = vmax.f32 %v2726, 0.0
      %v2855 = vmax.f32 %v2727, 0.0
      %v2856 = vmax.f32 %v2728, 0.0
      %v2857 = vld [vmem:[%s224] sm:$0xff]
      %v2858 = vld [vmem:[%s224 + $0x8] sm:$0xff]
      %v2859 = vld [vmem:[%s224 + $0x10] sm:$0xff]
      %v2860 = vld [vmem:[%s224 + $0x18] sm:$0xff]
      %v2861 = vld [vmem:[%s224 + $0x20] sm:$0xff]
      %v2862 = vld [vmem:[%s224 + $0x28] sm:$0xff]
      %v2863 = vld [vmem:[%s224 + $0x30] sm:$0xff]
      %v2864 = vld [vmem:[%s224 + $0x38] sm:$0xff]
      %v2865 = vld [vmem:[%s224 + $0x40] sm:$0xff]
      %v2866 = vld [vmem:[%s224 + $0x48] sm:$0xff]
      %v2867 = vld [vmem:[%s224 + $0x50] sm:$0xff]
      %v2868 = vld [vmem:[%s224 + $0x58] sm:$0xff]
      %v2869 = vld [vmem:[%s224 + $0x60] sm:$0xff]
      %v2870 = vld [vmem:[%s224 + $0x68] sm:$0xff]
      %v2871 = vld [vmem:[%s224 + $0x70] sm:$0xff]
      %v2872 = vld [vmem:[%s224 + $0x78] sm:$0xff]
      %v2873 = vld [vmem:[%s224 + $0x80] sm:$0xff]
      %v2874 = vld [vmem:[%s224 + $0x88] sm:$0xff]
      %v2875 = vld [vmem:[%s224 + $0x90] sm:$0xff]
      %v2876 = vld [vmem:[%s224 + $0x98] sm:$0xff]
      %v2877 = vld [vmem:[%s224 + $0xa0] sm:$0xff]
      %v2878 = vld [vmem:[%s224 + $0xa8] sm:$0xff]
      %v2879 = vld [vmem:[%s224 + $0xb0] sm:$0xff]
      %v2880 = vld [vmem:[%s224 + $0xb8] sm:$0xff]
      %v2881 = vld [vmem:[%s224 + $0xc0] sm:$0xff]
      %v2882 = vld [vmem:[%s224 + $0xc8] sm:$0xff]
      %v2883 = vld [vmem:[%s224 + $0xd0] sm:$0xff]
      %v2884 = vld [vmem:[%s224 + $0xd8] sm:$0xff]
      %v2885 = vld [vmem:[%s224 + $0xe0] sm:$0xff]
      %v2886 = vld [vmem:[%s224 + $0xe8] sm:$0xff]
      %v2887 = vld [vmem:[%s224 + $0xf0] sm:$0xff]
      %v2888 = vld [vmem:[%s224 + $0xf8] sm:$0xff]
      %v2889 = vld [vmem:[%s224 + $0x100] sm:$0xff]
      %v2890 = vld [vmem:[%s224 + $0x108] sm:$0xff]
      %v2891 = vld [vmem:[%s224 + $0x110] sm:$0xff]
      %v2892 = vld [vmem:[%s224 + $0x118] sm:$0xff]
      %v2893 = vld [vmem:[%s224 + $0x120] sm:$0xff]
      %v2894 = vld [vmem:[%s224 + $0x128] sm:$0xff]
      %v2895 = vld [vmem:[%s224 + $0x130] sm:$0xff]
      %v2896 = vld [vmem:[%s224 + $0x138] sm:$0xff]
      %v2897 = vld [vmem:[%s224 + $0x140] sm:$0xff]
      %v2898 = vld [vmem:[%s224 + $0x148] sm:$0xff]
      %v2899 = vld [vmem:[%s224 + $0x150] sm:$0xff]
      %v2900 = vld [vmem:[%s224 + $0x158] sm:$0xff]
      %v2901 = vld [vmem:[%s224 + $0x160] sm:$0xff]
      %v2902 = vld [vmem:[%s224 + $0x168] sm:$0xff]
      %v2903 = vld [vmem:[%s224 + $0x170] sm:$0xff]
      %v2904 = vld [vmem:[%s224 + $0x178] sm:$0xff]
      %v2905 = vld [vmem:[%s224 + $0x180] sm:$0xff]
      %v2906 = vld [vmem:[%s224 + $0x188] sm:$0xff]
      %v2907 = vld [vmem:[%s224 + $0x190] sm:$0xff]
      %v2908 = vld [vmem:[%s224 + $0x198] sm:$0xff]
      %v2909 = vld [vmem:[%s224 + $0x1a0] sm:$0xff]
      %v2910 = vld [vmem:[%s224 + $0x1a8] sm:$0xff]
      %v2911 = vld [vmem:[%s224 + $0x1b0] sm:$0xff]
      %v2912 = vld [vmem:[%s224 + $0x1b8] sm:$0xff]
      %v2913 = vld [vmem:[%s224 + $0x1c0] sm:$0xff]
      %v2914 = vld [vmem:[%s224 + $0x1c8] sm:$0xff]
      %v2915 = vld [vmem:[%s224 + $0x1d0] sm:$0xff]
      %v2916 = vld [vmem:[%s224 + $0x1d8] sm:$0xff]
      %v2917 = vld [vmem:[%s224 + $0x1e0] sm:$0xff]
      %v2918 = vld [vmem:[%s224 + $0x1e8] sm:$0xff]
      %v2919 = vld [vmem:[%s224 + $0x1f0] sm:$0xff]
      %v2920 = vld [vmem:[%s224 + $0x1f8] sm:$0xff]
      %v2921 = vpack.c.bf16 %v2731, %v2729
      %v2922 = vpack.c.bf16 %v2732, %v2730
      %v2923 = vpack.c.bf16 %v2735, %v2733
      %v2924 = vpack.c.bf16 %v2736, %v2734
      %v2925 = vpack.c.bf16 %v2739, %v2737
      %v2926 = vpack.c.bf16 %v2740, %v2738
      %v2927 = vpack.c.bf16 %v2743, %v2741
      %v2928 = vpack.c.bf16 %v2744, %v2742
      %v2929 = vpack.c.bf16 %v2747, %v2745
      %v2930 = vpack.c.bf16 %v2748, %v2746
      %v2931 = vpack.c.bf16 %v2751, %v2749
      %v2932 = vpack.c.bf16 %v2752, %v2750
      %v2933 = vpack.c.bf16 %v2755, %v2753
      %v2934 = vpack.c.bf16 %v2756, %v2754
      %v2935 = vpack.c.bf16 %v2759, %v2757
      %v2936 = vpack.c.bf16 %v2760, %v2758
      %v2937 = vpack.c.bf16 %v2763, %v2761
      %v2938 = vpack.c.bf16 %v2764, %v2762
      %v2939 = vpack.c.bf16 %v2767, %v2765
      %v2940 = vpack.c.bf16 %v2768, %v2766
      %v2941 = vpack.c.bf16 %v2771, %v2769
      %v2942 = vpack.c.bf16 %v2772, %v2770
      %v2943 = vpack.c.bf16 %v2775, %v2773
      %v2944 = vpack.c.bf16 %v2776, %v2774
      %v2945 = vpack.c.bf16 %v2779, %v2777
      %v2946 = vpack.c.bf16 %v2780, %v2778
      %v2947 = vpack.c.bf16 %v2783, %v2781
      %v2948 = vpack.c.bf16 %v2784, %v2782
      %v2949 = vpack.c.bf16 %v2787, %v2785
      %v2950 = vpack.c.bf16 %v2788, %v2786
      %v2951 = vpack.c.bf16 %v2791, %v2789
      %v2952 = vpack.c.bf16 %v2792, %v2790
      %v2953 = vpack.c.bf16 %v2795, %v2793
      %v2954 = vpack.c.bf16 %v2796, %v2794
      %v2955 = vpack.c.bf16 %v2799, %v2797
      %v2956 = vpack.c.bf16 %v2800, %v2798
      %v2957 = vpack.c.bf16 %v2803, %v2801
      %v2958 = vpack.c.bf16 %v2804, %v2802
      %v2959 = vpack.c.bf16 %v2807, %v2805
      %v2960 = vpack.c.bf16 %v2808, %v2806
      %v2961 = vpack.c.bf16 %v2811, %v2809
      %v2962 = vpack.c.bf16 %v2812, %v2810
      %v2963 = vpack.c.bf16 %v2815, %v2813
      %v2964 = vpack.c.bf16 %v2816, %v2814
      %v2965 = vpack.c.bf16 %v2819, %v2817
      %v2966 = vpack.c.bf16 %v2820, %v2818
      %v2967 = vpack.c.bf16 %v2823, %v2821
      %v2968 = vpack.c.bf16 %v2824, %v2822
      %v2969 = vpack.c.bf16 %v2827, %v2825
      %v2970 = vpack.c.bf16 %v2828, %v2826
      %v2971 = vpack.c.bf16 %v2831, %v2829
      %v2972 = vpack.c.bf16 %v2832, %v2830
      %v2973 = vpack.c.bf16 %v2835, %v2833
      %v2974 = vpack.c.bf16 %v2836, %v2834
      %v2975 = vpack.c.bf16 %v2839, %v2837
      %v2976 = vpack.c.bf16 %v2840, %v2838
      %v2977 = vpack.c.bf16 %v2843, %v2841
      %v2978 = vpack.c.bf16 %v2844, %v2842
      %v2979 = vpack.c.bf16 %v2847, %v2845
      %v2980 = vpack.c.bf16 %v2848, %v2846
      %v2981 = vpack.c.bf16 %v2851, %v2849
      %v2982 = vpack.c.bf16 %v2852, %v2850
      %v2983 = vpack.c.bf16 %v2855, %v2853
      %v2984 = vpack.c.bf16 %v2856, %v2854
      %v3049 = vunpack.c.l.b16 %v2857
      %v3050 = vunpack.c.h.b16 %v2857
      %v3051 = vunpack.c.l.b16 %v2858
      %v3052 = vunpack.c.h.b16 %v2858
      %v3053 = vunpack.c.l.b16 %v2859
      %v3054 = vunpack.c.h.b16 %v2859
      %v3055 = vunpack.c.l.b16 %v2860
      %v3056 = vunpack.c.h.b16 %v2860
      %v3057 = vunpack.c.l.b16 %v2861
      %v3058 = vunpack.c.h.b16 %v2861
      %v3059 = vunpack.c.l.b16 %v2862
      %v3060 = vunpack.c.h.b16 %v2862
      %v3061 = vunpack.c.l.b16 %v2863
      %v3062 = vunpack.c.h.b16 %v2863
      %v3063 = vunpack.c.l.b16 %v2864
      %v3064 = vunpack.c.h.b16 %v2864
      %v3065 = vunpack.c.l.b16 %v2865
      %v3066 = vunpack.c.h.b16 %v2865
      %v3067 = vunpack.c.l.b16 %v2866
      %v3068 = vunpack.c.h.b16 %v2866
      %v3069 = vunpack.c.l.b16 %v2867
      %v3070 = vunpack.c.h.b16 %v2867
      %v3071 = vunpack.c.l.b16 %v2868
      %v3072 = vunpack.c.h.b16 %v2868
      %v3073 = vunpack.c.l.b16 %v2869
      %v3074 = vunpack.c.h.b16 %v2869
      %v3075 = vunpack.c.l.b16 %v2870
      %v3076 = vunpack.c.h.b16 %v2870
      %v3077 = vunpack.c.l.b16 %v2871
      %v3078 = vunpack.c.h.b16 %v2871
      %v3079 = vunpack.c.l.b16 %v2872
      %v3080 = vunpack.c.h.b16 %v2872
      %v3081 = vunpack.c.l.b16 %v2873
      %v3082 = vunpack.c.h.b16 %v2873
      %v3083 = vunpack.c.l.b16 %v2874
      %v3084 = vunpack.c.h.b16 %v2874
      %v3085 = vunpack.c.l.b16 %v2875
      %v3086 = vunpack.c.h.b16 %v2875
      %v3087 = vunpack.c.l.b16 %v2876
      %v3088 = vunpack.c.h.b16 %v2876
      %v3089 = vunpack.c.l.b16 %v2877
      %v3090 = vunpack.c.h.b16 %v2877
      %v3091 = vunpack.c.l.b16 %v2878
      %v3092 = vunpack.c.h.b16 %v2878
      %v3093 = vunpack.c.l.b16 %v2879
      %v3094 = vunpack.c.h.b16 %v2879
      %v3095 = vunpack.c.l.b16 %v2880
      %v3096 = vunpack.c.h.b16 %v2880
      %v3097 = vunpack.c.l.b16 %v2881
      %v3098 = vunpack.c.h.b16 %v2881
      %v3099 = vunpack.c.l.b16 %v2882
      %v3100 = vunpack.c.h.b16 %v2882
      %v3101 = vunpack.c.l.b16 %v2883
      %v3102 = vunpack.c.h.b16 %v2883
      %v3103 = vunpack.c.l.b16 %v2884
      %v3104 = vunpack.c.h.b16 %v2884
      %v3105 = vunpack.c.l.b16 %v2885
      %v3106 = vunpack.c.h.b16 %v2885
      %v3107 = vunpack.c.l.b16 %v2886
      %v3108 = vunpack.c.h.b16 %v2886
      %v3109 = vunpack.c.l.b16 %v2887
      %v3110 = vunpack.c.h.b16 %v2887
      %v3111 = vunpack.c.l.b16 %v2888
      %v3112 = vunpack.c.h.b16 %v2888
      %v3113 = vunpack.c.l.b16 %v2889
      %v3114 = vunpack.c.h.b16 %v2889
      %v3115 = vunpack.c.l.b16 %v2890
      %v3116 = vunpack.c.h.b16 %v2890
      %v3117 = vunpack.c.l.b16 %v2891
      %v3118 = vunpack.c.h.b16 %v2891
      %v3119 = vunpack.c.l.b16 %v2892
      %v3120 = vunpack.c.h.b16 %v2892
      %v3121 = vunpack.c.l.b16 %v2893
      %v3122 = vunpack.c.h.b16 %v2893
      %v3123 = vunpack.c.l.b16 %v2894
      %v3124 = vunpack.c.h.b16 %v2894
      %v3125 = vunpack.c.l.b16 %v2895
      %v3126 = vunpack.c.h.b16 %v2895
      %v3127 = vunpack.c.l.b16 %v2896
      %v3128 = vunpack.c.h.b16 %v2896
      %v3129 = vunpack.c.l.b16 %v2897
      %v3130 = vunpack.c.h.b16 %v2897
      %v3131 = vunpack.c.l.b16 %v2898
      %v3132 = vunpack.c.h.b16 %v2898
      %v3133 = vunpack.c.l.b16 %v2899
      %v3134 = vunpack.c.h.b16 %v2899
      %v3135 = vunpack.c.l.b16 %v2900
      %v3136 = vunpack.c.h.b16 %v2900
      %v3137 = vunpack.c.l.b16 %v2901
      %v3138 = vunpack.c.h.b16 %v2901
      %v3139 = vunpack.c.l.b16 %v2902
      %v3140 = vunpack.c.h.b16 %v2902
      %v3141 = vunpack.c.l.b16 %v2903
      %v3142 = vunpack.c.h.b16 %v2903
      %v3143 = vunpack.c.l.b16 %v2904
      %v3144 = vunpack.c.h.b16 %v2904
      %v3145 = vunpack.c.l.b16 %v2905
      %v3146 = vunpack.c.h.b16 %v2905
      %v3147 = vunpack.c.l.b16 %v2906
      %v3148 = vunpack.c.h.b16 %v2906
      %v3149 = vunpack.c.l.b16 %v2907
      %v3150 = vunpack.c.h.b16 %v2907
      %v3151 = vunpack.c.l.b16 %v2908
      %v3152 = vunpack.c.h.b16 %v2908
      %v3153 = vunpack.c.l.b16 %v2909
      %v3154 = vunpack.c.h.b16 %v2909
      %v3155 = vunpack.c.l.b16 %v2910
      %v3156 = vunpack.c.h.b16 %v2910
      %v3157 = vunpack.c.l.b16 %v2911
      %v3158 = vunpack.c.h.b16 %v2911
      %v3159 = vunpack.c.l.b16 %v2912
      %v3160 = vunpack.c.h.b16 %v2912
      %v3161 = vunpack.c.l.b16 %v2913
      %v3162 = vunpack.c.h.b16 %v2913
      %v3163 = vunpack.c.l.b16 %v2914
      %v3164 = vunpack.c.h.b16 %v2914
      %v3165 = vunpack.c.l.b16 %v2915
      %v3166 = vunpack.c.h.b16 %v2915
      %v3167 = vunpack.c.l.b16 %v2916
      %v3168 = vunpack.c.h.b16 %v2916
      %v3169 = vunpack.c.l.b16 %v2917
      %v3170 = vunpack.c.h.b16 %v2917
      %v3171 = vunpack.c.l.b16 %v2918
      %v3172 = vunpack.c.h.b16 %v2918
      %v3173 = vunpack.c.l.b16 %v2919
      %v3174 = vunpack.c.h.b16 %v2919
      %v3175 = vunpack.c.l.b16 %v2920
      %v3176 = vunpack.c.h.b16 %v2920
      %v3177 = vpack.c.b16 %v3053, %v3049
      %v3178 = vpack.c.b16 %v3054, %v3050
      %v3179 = vpack.c.b16 %v3055, %v3051
      %v3180 = vpack.c.b16 %v3056, %v3052
      %v3181 = vpack.c.b16 %v3061, %v3057
      %v3182 = vpack.c.b16 %v3062, %v3058
      %v3183 = vpack.c.b16 %v3063, %v3059
      %v3184 = vpack.c.b16 %v3064, %v3060
      %v3185 = vpack.c.b16 %v3069, %v3065
      %v3186 = vpack.c.b16 %v3070, %v3066
      %v3187 = vpack.c.b16 %v3071, %v3067
      %v3188 = vpack.c.b16 %v3072, %v3068
      %v3189 = vpack.c.b16 %v3077, %v3073
      %v3190 = vpack.c.b16 %v3078, %v3074
      %v3191 = vpack.c.b16 %v3079, %v3075
      %v3192 = vpack.c.b16 %v3080, %v3076
      %v3193 = vpack.c.b16 %v3085, %v3081
      %v3194 = vpack.c.b16 %v3086, %v3082
      %v3195 = vpack.c.b16 %v3087, %v3083
      %v3196 = vpack.c.b16 %v3088, %v3084
      %v3197 = vpack.c.b16 %v3093, %v3089
      %v3198 = vpack.c.b16 %v3094, %v3090
      %v3199 = vpack.c.b16 %v3095, %v3091
      %v3200 = vpack.c.b16 %v3096, %v3092
      %v3201 = vpack.c.b16 %v3101, %v3097
      %v3202 = vpack.c.b16 %v3102, %v3098
      %v3203 = vpack.c.b16 %v3103, %v3099
      %v3204 = vpack.c.b16 %v3104, %v3100
      %v3205 = vpack.c.b16 %v3109, %v3105
      %v3206 = vpack.c.b16 %v3110, %v3106
      %v3207 = vpack.c.b16 %v3111, %v3107
      %v3208 = vpack.c.b16 %v3112, %v3108
      %v3209 = vpack.c.b16 %v3117, %v3113
      %v3210 = vpack.c.b16 %v3118, %v3114
      %v3211 = vpack.c.b16 %v3119, %v3115
      %v3212 = vpack.c.b16 %v3120, %v3116
      %v3213 = vpack.c.b16 %v3125, %v3121
      %v3214 = vpack.c.b16 %v3126, %v3122
      %v3215 = vpack.c.b16 %v3127, %v3123
      %v3216 = vpack.c.b16 %v3128, %v3124
      %v3217 = vpack.c.b16 %v3133, %v3129
      %v3218 = vpack.c.b16 %v3134, %v3130
      %v3219 = vpack.c.b16 %v3135, %v3131
      %v3220 = vpack.c.b16 %v3136, %v3132
      %v3221 = vpack.c.b16 %v3141, %v3137
      %v3222 = vpack.c.b16 %v3142, %v3138
      %v3223 = vpack.c.b16 %v3143, %v3139
      %v3224 = vpack.c.b16 %v3144, %v3140
      %v3225 = vpack.c.b16 %v3149, %v3145
      %v3226 = vpack.c.b16 %v3150, %v3146
      %v3227 = vpack.c.b16 %v3151, %v3147
      %v3228 = vpack.c.b16 %v3152, %v3148
      %v3229 = vpack.c.b16 %v3157, %v3153
      %v3230 = vpack.c.b16 %v3158, %v3154
      %v3231 = vpack.c.b16 %v3159, %v3155
      %v3232 = vpack.c.b16 %v3160, %v3156
      %v3233 = vpack.c.b16 %v3165, %v3161
      %v3234 = vpack.c.b16 %v3166, %v3162
      %v3235 = vpack.c.b16 %v3167, %v3163
      %v3236 = vpack.c.b16 %v3168, %v3164
      %v3237 = vpack.c.b16 %v3173, %v3169
      %v3238 = vpack.c.b16 %v3174, %v3170
      %v3239 = vpack.c.b16 %v3175, %v3171
      %v3240 = vpack.c.b16 %v3176, %v3172
      %3305 = vmatprep.subr.bf16.mxu0 %v2922
      %3306 = vmatpush1.bf16.msra.mxu0 %v2921
      %3307 = vmatprep.subr.bf16.mxu0 %v2924
      %3308 = vmatpush1.bf16.msra.mxu0 %v2923
      %3309 = vmatprep.subr.bf16.mxu0 %v2926
      %3310 = vmatpush1.bf16.msra.mxu0 %v2925
      %3311 = vmatprep.subr.bf16.mxu0 %v2928
      %3312 = vmatpush1.bf16.msra.mxu0 %v2927
      %3313 = vmatprep.subr.bf16.mxu0 %v2930
      %3314 = vmatpush1.bf16.msra.mxu0 %v2929
      %3315 = vmatprep.subr.bf16.mxu0 %v2932
      %3316 = vmatpush1.bf16.msra.mxu0 %v2931
      %3317 = vmatprep.subr.bf16.mxu0 %v2934
      %3318 = vmatpush1.bf16.msra.mxu0 %v2933
      %3319 = vmatprep.subr.bf16.mxu0 %v2936
      %3320 = vmatpush1.bf16.msra.mxu0 %v2935
      %3321 = vmatprep.subr.bf16.mxu0 %v2938
      %3322 = vmatpush1.bf16.msra.mxu0 %v2937
      %3323 = vmatprep.subr.bf16.mxu0 %v2940
      %3324 = vmatpush1.bf16.msra.mxu0 %v2939
      %3325 = vmatprep.subr.bf16.mxu0 %v2942
      %3326 = vmatpush1.bf16.msra.mxu0 %v2941
      %3327 = vmatprep.subr.bf16.mxu0 %v2944
      %3328 = vmatpush1.bf16.msra.mxu0 %v2943
      %3329 = vmatprep.subr.bf16.mxu0 %v2946
      %3330 = vmatpush1.bf16.msra.mxu0 %v2945
      %3331 = vmatprep.subr.bf16.mxu0 %v2948
      %3332 = vmatpush1.bf16.msra.mxu0 %v2947
      %3333 = vmatprep.subr.bf16.mxu0 %v2950
      %3334 = vmatpush1.bf16.msra.mxu0 %v2949
      %3335 = vmatprep.subr.bf16.mxu0 %v2952
      %3336 = vmatpush1.bf16.msra.mxu0 %v2951
      %3337 = vmatprep.mubr.bf16.mxu0 %v3178
      %3338 = vmatmul.mubr.bf16.gmra.mrb[0].mxu0 %v3177
      %v3339 = vpop.f32.mrb[0].mxu0
      %v3340 = vadd.f32 0.0, %v3339
      %v3341 = vpop.f32.mrb[0].mxu0
      %v3342 = vadd.f32 0.0, %v3341
      %v3343 = vpop.f32.mrb[0].mxu0
      %v3344 = vadd.f32 0.0, %v3343
      %v3345 = vpop.f32.mrb[0].mxu0
      %v3346 = vadd.f32 0.0, %v3345
      %3347 = vmatprep.mubr.bf16.mxu0 %v3182
      %3348 = vmatmul.mubr.bf16.gmra.mrb[0].mxu0 %v3181
      %v3349 = vpop.f32.mrb[0].mxu0
      %v3350 = vadd.f32 0.0, %v3349
      %v3351 = vpop.f32.mrb[0].mxu0
      %v3352 = vadd.f32 0.0, %v3351
      %v3353 = vpop.f32.mrb[0].mxu0
      %v3354 = vadd.f32 0.0, %v3353
      %v3355 = vpop.f32.mrb[0].mxu0
      %v3356 = vadd.f32 0.0, %v3355
      %3357 = vmatprep.mubr.bf16.mxu0 %v3186
      %3358 = vmatmul.mubr.bf16.gmra.mrb[0].mxu0 %v3185
      %v3359 = vpop.f32.mrb[0].mxu0
      %v3360 = vadd.f32 0.0, %v3359
      %v3361 = vpop.f32.mrb[0].mxu0
      %v3362 = vadd.f32 0.0, %v3361
      %v3363 = vpop.f32.mrb[0].mxu0
      %v3364 = vadd.f32 0.0, %v3363
      %v3365 = vpop.f32.mrb[0].mxu0
      %v3366 = vadd.f32 0.0, %v3365
      %3367 = vmatprep.mubr.bf16.mxu0 %v3190
      %3368 = vmatmul.mubr.bf16.gmra.mrb[0].mxu0 %v3189
      %v3369 = vpop.f32.mrb[0].mxu0
      %v3370 = vadd.f32 0.0, %v3369
      %v3371 = vpop.f32.mrb[0].mxu0
      %v3372 = vadd.f32 0.0, %v3371
      %v3373 = vpop.f32.mrb[0].mxu0
      %v3374 = vadd.f32 0.0, %v3373
      %v3375 = vpop.f32.mrb[0].mxu0
      %v3376 = vadd.f32 0.0, %v3375
      %3377 = vmatprep.mubr.bf16.mxu0 %v3194
      %3378 = vmatmul.mubr.bf16.gmra.mrb[0].mxu0 %v3193
      %v3379 = vpop.f32.mrb[0].mxu0
      %v3380 = vadd.f32 0.0, %v3379
      %v3381 = vpop.f32.mrb[0].mxu0
      %v3382 = vadd.f32 0.0, %v3381
      %v3383 = vpop.f32.mrb[0].mxu0
      %v3384 = vadd.f32 0.0, %v3383
      %v3385 = vpop.f32.mrb[0].mxu0
      %v3386 = vadd.f32 0.0, %v3385
      %3387 = vmatprep.mubr.bf16.mxu0 %v3198
      %3388 = vmatmul.mubr.bf16.gmra.mrb[0].mxu0 %v3197
      %v3389 = vpop.f32.mrb[0].mxu0
      %v3390 = vadd.f32 0.0, %v3389
      %v3391 = vpop.f32.mrb[0].mxu0
      %v3392 = vadd.f32 0.0, %v3391
      %v3393 = vpop.f32.mrb[0].mxu0
      %v3394 = vadd.f32 0.0, %v3393
      %v3395 = vpop.f32.mrb[0].mxu0
      %v3396 = vadd.f32 0.0, %v3395
      %3397 = vmatprep.mubr.bf16.mxu0 %v3202
      %3398 = vmatmul.mubr.bf16.gmra.mrb[0].mxu0 %v3201
      %v3399 = vpop.f32.mrb[0].mxu0
      %v3400 = vadd.f32 0.0, %v3399
      %v3401 = vpop.f32.mrb[0].mxu0
      %v3402 = vadd.f32 0.0, %v3401
      %v3403 = vpop.f32.mrb[0].mxu0
      %v3404 = vadd.f32 0.0, %v3403
      %v3405 = vpop.f32.mrb[0].mxu0
      %v3406 = vadd.f32 0.0, %v3405
      %3407 = vmatprep.mubr.bf16.mxu0 %v3206
      %3408 = vmatmul.mubr.bf16.gmra.mrb[0].mxu0 %v3205
      %v3409 = vpop.f32.mrb[0].mxu0
      %v3410 = vadd.f32 0.0, %v3409
      %v3411 = vpop.f32.mrb[0].mxu0
      %v3412 = vadd.f32 0.0, %v3411
      %v3413 = vpop.f32.mrb[0].mxu0
      %v3414 = vadd.f32 0.0, %v3413
      %v3415 = vpop.f32.mrb[0].mxu0
      %v3416 = vadd.f32 0.0, %v3415
      %3417 = vmatprep.mubr.bf16.mxu0 %v3210
      %3418 = vmatmul.mubr.bf16.gmra.mrb[0].mxu0 %v3209
      %v3419 = vpop.f32.mrb[0].mxu0
      %v3420 = vadd.f32 0.0, %v3419
      %v3421 = vpop.f32.mrb[0].mxu0
      %v3422 = vadd.f32 0.0, %v3421
      %v3423 = vpop.f32.mrb[0].mxu0
      %v3424 = vadd.f32 0.0, %v3423
      %v3425 = vpop.f32.mrb[0].mxu0
      %v3426 = vadd.f32 0.0, %v3425
      %3427 = vmatprep.mubr.bf16.mxu0 %v3214
      %3428 = vmatmul.mubr.bf16.gmra.mrb[0].mxu0 %v3213
      %v3429 = vpop.f32.mrb[0].mxu0
      %v3430 = vadd.f32 0.0, %v3429
      %v3431 = vpop.f32.mrb[0].mxu0
      %v3432 = vadd.f32 0.0, %v3431
      %v3433 = vpop.f32.mrb[0].mxu0
      %v3434 = vadd.f32 0.0, %v3433
      %v3435 = vpop.f32.mrb[0].mxu0
      %v3436 = vadd.f32 0.0, %v3435
      %3437 = vmatprep.mubr.bf16.mxu0 %v3218
      %3438 = vmatmul.mubr.bf16.gmra.mrb[0].mxu0 %v3217
      %v3439 = vpop.f32.mrb[0].mxu0
      %v3440 = vadd.f32 0.0, %v3439
      %v3441 = vpop.f32.mrb[0].mxu0
      %v3442 = vadd.f32 0.0, %v3441
      %v3443 = vpop.f32.mrb[0].mxu0
      %v3444 = vadd.f32 0.0, %v3443
      %v3445 = vpop.f32.mrb[0].mxu0
      %v3446 = vadd.f32 0.0, %v3445
      %3447 = vmatprep.mubr.bf16.mxu0 %v3222
      %3448 = vmatmul.mubr.bf16.gmra.mrb[0].mxu0 %v3221
      %v3449 = vpop.f32.mrb[0].mxu0
      %v3450 = vadd.f32 0.0, %v3449
      %v3451 = vpop.f32.mrb[0].mxu0
      %v3452 = vadd.f32 0.0, %v3451
      %v3453 = vpop.f32.mrb[0].mxu0
      %v3454 = vadd.f32 0.0, %v3453
      %v3455 = vpop.f32.mrb[0].mxu0
      %v3456 = vadd.f32 0.0, %v3455
      %3457 = vmatprep.mubr.bf16.mxu0 %v3226
      %3458 = vmatmul.mubr.bf16.gmra.mrb[0].mxu0 %v3225
      %v3459 = vpop.f32.mrb[0].mxu0
      %v3460 = vadd.f32 0.0, %v3459
      %v3461 = vpop.f32.mrb[0].mxu0
      %v3462 = vadd.f32 0.0, %v3461
      %v3463 = vpop.f32.mrb[0].mxu0
      %v3464 = vadd.f32 0.0, %v3463
      %v3465 = vpop.f32.mrb[0].mxu0
      %v3466 = vadd.f32 0.0, %v3465
      %3467 = vmatprep.mubr.bf16.mxu0 %v3230
      %3468 = vmatmul.mubr.bf16.gmra.mrb[0].mxu0 %v3229
      %v3469 = vpop.f32.mrb[0].mxu0
      %v3470 = vadd.f32 0.0, %v3469
      %v3471 = vpop.f32.mrb[0].mxu0
      %v3472 = vadd.f32 0.0, %v3471
      %v3473 = vpop.f32.mrb[0].mxu0
      %v3474 = vadd.f32 0.0, %v3473
      %v3475 = vpop.f32.mrb[0].mxu0
      %v3476 = vadd.f32 0.0, %v3475
      %3477 = vmatprep.mubr.bf16.mxu0 %v3234
      %3478 = vmatmul.mubr.bf16.gmra.mrb[0].mxu0 %v3233
      %v3479 = vpop.f32.mrb[0].mxu0
      %v3480 = vadd.f32 0.0, %v3479
      %v3481 = vpop.f32.mrb[0].mxu0
      %v3482 = vadd.f32 0.0, %v3481
      %v3483 = vpop.f32.mrb[0].mxu0
      %v3484 = vadd.f32 0.0, %v3483
      %v3485 = vpop.f32.mrb[0].mxu0
      %v3486 = vadd.f32 0.0, %v3485
      %3487 = vmatprep.mubr.bf16.mxu0 %v3238
      %3488 = vmatmul.mubr.bf16.gmra.mrb[0].mxu0 %v3237
      %v3489 = vpop.f32.mrb[0].mxu0
      %v3490 = vadd.f32 0.0, %v3489
      %v3491 = vpop.f32.mrb[0].mxu0
      %v3492 = vadd.f32 0.0, %v3491
      %v3493 = vpop.f32.mrb[0].mxu0
      %v3494 = vadd.f32 0.0, %v3493
      %v3495 = vpop.f32.mrb[0].mxu0
      %v3496 = vadd.f32 0.0, %v3495
      %3497 = vdwg.mxu0
      %3498 = vmatprep.subr.bf16.mxu0 %v2954
      %3499 = vmatpush1.bf16.msra.mxu0 %v2953
      %3500 = vmatprep.subr.bf16.mxu0 %v2956
      %3501 = vmatpush1.bf16.msra.mxu0 %v2955
      %3502 = vmatprep.subr.bf16.mxu0 %v2958
      %3503 = vmatpush1.bf16.msra.mxu0 %v2957
      %3504 = vmatprep.subr.bf16.mxu0 %v2960
      %3505 = vmatpush1.bf16.msra.mxu0 %v2959
      %3506 = vmatprep.subr.bf16.mxu0 %v2962
      %3507 = vmatpush1.bf16.msra.mxu0 %v2961
      %3508 = vmatprep.subr.bf16.mxu0 %v2964
      %3509 = vmatpush1.bf16.msra.mxu0 %v2963
      %3510 = vmatprep.subr.bf16.mxu0 %v2966
      %3511 = vmatpush1.bf16.msra.mxu0 %v2965
      %3512 = vmatprep.subr.bf16.mxu0 %v2968
      %3513 = vmatpush1.bf16.msra.mxu0 %v2967
      %3514 = vmatprep.subr.bf16.mxu0 %v2970
      %3515 = vmatpush1.bf16.msra.mxu0 %v2969
      %3516 = vmatprep.subr.bf16.mxu0 %v2972
      %3517 = vmatpush1.bf16.msra.mxu0 %v2971
      %3518 = vmatprep.subr.bf16.mxu0 %v2974
      %3519 = vmatpush1.bf16.msra.mxu0 %v2973
      %3520 = vmatprep.subr.bf16.mxu0 %v2976
      %3521 = vmatpush1.bf16.msra.mxu0 %v2975
      %3522 = vmatprep.subr.bf16.mxu0 %v2978
      %3523 = vmatpush1.bf16.msra.mxu0 %v2977
      %3524 = vmatprep.subr.bf16.mxu0 %v2980
      %3525 = vmatpush1.bf16.msra.mxu0 %v2979
      %3526 = vmatprep.subr.bf16.mxu0 %v2982
      %3527 = vmatpush1.bf16.msra.mxu0 %v2981
      %3528 = vmatprep.subr.bf16.mxu0 %v2984
      %3529 = vmatpush1.bf16.msra.mxu0 %v2983
      %3530 = vmatprep.mubr.bf16.mxu0 %v3180
      %3531 = vmatmul.mubr.bf16.gmra.mrb[0].mxu0 %v3179
      %v3532 = vpop.f32.mrb[0].mxu0
      %v3533 = vadd.f32 %v3340, %v3532
      %v3534 = vpop.f32.mrb[0].mxu0
      %v3535 = vadd.f32 %v3342, %v3534
      %v3536 = vpop.f32.mrb[0].mxu0
      %v3537 = vadd.f32 %v3344, %v3536
      %v3538 = vpop.f32.mrb[0].mxu0
      %v3539 = vadd.f32 %v3346, %v3538
      %3540 = vmatprep.mubr.bf16.mxu0 %v3184
      %3541 = vmatmul.mubr.bf16.gmra.mrb[0].mxu0 %v3183
      %v3542 = vpop.f32.mrb[0].mxu0
      %v3543 = vadd.f32 %v3350, %v3542
      %v3544 = vpop.f32.mrb[0].mxu0
      %v3545 = vadd.f32 %v3352, %v3544
      %v3546 = vpop.f32.mrb[0].mxu0
      %v3547 = vadd.f32 %v3354, %v3546
      %v3548 = vpop.f32.mrb[0].mxu0
      %v3549 = vadd.f32 %v3356, %v3548
      %3550 = vmatprep.mubr.bf16.mxu0 %v3188
      %3551 = vmatmul.mubr.bf16.gmra.mrb[0].mxu0 %v3187
      %v3552 = vpop.f32.mrb[0].mxu0
      %v3553 = vadd.f32 %v3360, %v3552
      %v3554 = vpop.f32.mrb[0].mxu0
      %v3555 = vadd.f32 %v3362, %v3554
      %v3556 = vpop.f32.mrb[0].mxu0
      %v3557 = vadd.f32 %v3364, %v3556
      %v3558 = vpop.f32.mrb[0].mxu0
      %v3559 = vadd.f32 %v3366, %v3558
      %3560 = vmatprep.mubr.bf16.mxu0 %v3192
      %3561 = vmatmul.mubr.bf16.gmra.mrb[0].mxu0 %v3191
      %v3562 = vpop.f32.mrb[0].mxu0
      %v3563 = vadd.f32 %v3370, %v3562
      %v3564 = vpop.f32.mrb[0].mxu0
      %v3565 = vadd.f32 %v3372, %v3564
      %v3566 = vpop.f32.mrb[0].mxu0
      %v3567 = vadd.f32 %v3374, %v3566
      %v3568 = vpop.f32.mrb[0].mxu0
      %v3569 = vadd.f32 %v3376, %v3568
      %3570 = vmatprep.mubr.bf16.mxu0 %v3196
      %3571 = vmatmul.mubr.bf16.gmra.mrb[0].mxu0 %v3195
      %v3572 = vpop.f32.mrb[0].mxu0
      %v3573 = vadd.f32 %v3380, %v3572
      %v3574 = vpop.f32.mrb[0].mxu0
      %v3575 = vadd.f32 %v3382, %v3574
      %v3576 = vpop.f32.mrb[0].mxu0
      %v3577 = vadd.f32 %v3384, %v3576
      %v3578 = vpop.f32.mrb[0].mxu0
      %v3579 = vadd.f32 %v3386, %v3578
      %3580 = vmatprep.mubr.bf16.mxu0 %v3200
      %3581 = vmatmul.mubr.bf16.gmra.mrb[0].mxu0 %v3199
      %v3582 = vpop.f32.mrb[0].mxu0
      %v3583 = vadd.f32 %v3390, %v3582
      %v3584 = vpop.f32.mrb[0].mxu0
      %v3585 = vadd.f32 %v3392, %v3584
      %v3586 = vpop.f32.mrb[0].mxu0
      %v3587 = vadd.f32 %v3394, %v3586
      %v3588 = vpop.f32.mrb[0].mxu0
      %v3589 = vadd.f32 %v3396, %v3588
      %3590 = vmatprep.mubr.bf16.mxu0 %v3204
      %3591 = vmatmul.mubr.bf16.gmra.mrb[0].mxu0 %v3203
      %v3592 = vpop.f32.mrb[0].mxu0
      %v3593 = vadd.f32 %v3400, %v3592
      %v3594 = vpop.f32.mrb[0].mxu0
      %v3595 = vadd.f32 %v3402, %v3594
      %v3596 = vpop.f32.mrb[0].mxu0
      %v3597 = vadd.f32 %v3404, %v3596
      %v3598 = vpop.f32.mrb[0].mxu0
      %v3599 = vadd.f32 %v3406, %v3598
      %3600 = vmatprep.mubr.bf16.mxu0 %v3208
      %3601 = vmatmul.mubr.bf16.gmra.mrb[0].mxu0 %v3207
      %v3602 = vpop.f32.mrb[0].mxu0
      %v3603 = vadd.f32 %v3410, %v3602
      %v3604 = vpop.f32.mrb[0].mxu0
      %v3605 = vadd.f32 %v3412, %v3604
      %v3606 = vpop.f32.mrb[0].mxu0
      %v3607 = vadd.f32 %v3414, %v3606
      %v3608 = vpop.f32.mrb[0].mxu0
      %v3609 = vadd.f32 %v3416, %v3608
      %3610 = vmatprep.mubr.bf16.mxu0 %v3212
      %3611 = vmatmul.mubr.bf16.gmra.mrb[0].mxu0 %v3211
      %v3612 = vpop.f32.mrb[0].mxu0
      %v3613 = vadd.f32 %v3420, %v3612
      %v3614 = vpop.f32.mrb[0].mxu0
      %v3615 = vadd.f32 %v3422, %v3614
      %v3616 = vpop.f32.mrb[0].mxu0
      %v3617 = vadd.f32 %v3424, %v3616
      %v3618 = vpop.f32.mrb[0].mxu0
      %v3619 = vadd.f32 %v3426, %v3618
      %3620 = vmatprep.mubr.bf16.mxu0 %v3216
      %3621 = vmatmul.mubr.bf16.gmra.mrb[0].mxu0 %v3215
      %v3622 = vpop.f32.mrb[0].mxu0
      %v3623 = vadd.f32 %v3430, %v3622
      %v3624 = vpop.f32.mrb[0].mxu0
      %v3625 = vadd.f32 %v3432, %v3624
      %v3626 = vpop.f32.mrb[0].mxu0
      %v3627 = vadd.f32 %v3434, %v3626
      %v3628 = vpop.f32.mrb[0].mxu0
      %v3629 = vadd.f32 %v3436, %v3628
      %3630 = vmatprep.mubr.bf16.mxu0 %v3220
      %3631 = vmatmul.mubr.bf16.gmra.mrb[0].mxu0 %v3219
      %v3632 = vpop.f32.mrb[0].mxu0
      %v3633 = vadd.f32 %v3440, %v3632
      %v3634 = vpop.f32.mrb[0].mxu0
      %v3635 = vadd.f32 %v3442, %v3634
      %v3636 = vpop.f32.mrb[0].mxu0
      %v3637 = vadd.f32 %v3444, %v3636
      %v3638 = vpop.f32.mrb[0].mxu0
      %v3639 = vadd.f32 %v3446, %v3638
      %3640 = vmatprep.mubr.bf16.mxu0 %v3224
      %3641 = vmatmul.mubr.bf16.gmra.mrb[0].mxu0 %v3223
      %v3642 = vpop.f32.mrb[0].mxu0
      %v3643 = vadd.f32 %v3450, %v3642
      %v3644 = vpop.f32.mrb[0].mxu0
      %v3645 = vadd.f32 %v3452, %v3644
      %v3646 = vpop.f32.mrb[0].mxu0
      %v3647 = vadd.f32 %v3454, %v3646
      %v3648 = vpop.f32.mrb[0].mxu0
      %v3649 = vadd.f32 %v3456, %v3648
      %3650 = vmatprep.mubr.bf16.mxu0 %v3228
      %3651 = vmatmul.mubr.bf16.gmra.mrb[0].mxu0 %v3227
      %v3652 = vpop.f32.mrb[0].mxu0
      %v3653 = vadd.f32 %v3460, %v3652
      %v3654 = vpop.f32.mrb[0].mxu0
      %v3655 = vadd.f32 %v3462, %v3654
      %v3656 = vpop.f32.mrb[0].mxu0
      %v3657 = vadd.f32 %v3464, %v3656
      %v3658 = vpop.f32.mrb[0].mxu0
      %v3659 = vadd.f32 %v3466, %v3658
      %3660 = vmatprep.mubr.bf16.mxu0 %v3232
      %3661 = vmatmul.mubr.bf16.gmra.mrb[0].mxu0 %v3231
      %v3662 = vpop.f32.mrb[0].mxu0
      %v3663 = vadd.f32 %v3470, %v3662
      %v3664 = vpop.f32.mrb[0].mxu0
      %v3665 = vadd.f32 %v3472, %v3664
      %v3666 = vpop.f32.mrb[0].mxu0
      %v3667 = vadd.f32 %v3474, %v3666
      %v3668 = vpop.f32.mrb[0].mxu0
      %v3669 = vadd.f32 %v3476, %v3668
      %3670 = vmatprep.mubr.bf16.mxu0 %v3236
      %3671 = vmatmul.mubr.bf16.gmra.mrb[0].mxu0 %v3235
      %v3672 = vpop.f32.mrb[0].mxu0
      %v3673 = vadd.f32 %v3480, %v3672
      %v3674 = vpop.f32.mrb[0].mxu0
      %v3675 = vadd.f32 %v3482, %v3674
      %v3676 = vpop.f32.mrb[0].mxu0
      %v3677 = vadd.f32 %v3484, %v3676
      %v3678 = vpop.f32.mrb[0].mxu0
      %v3679 = vadd.f32 %v3486, %v3678
      %3680 = vmatprep.mubr.bf16.mxu0 %v3240
      %3681 = vmatmul.mubr.bf16.gmra.mrb[0].mxu0 %v3239
      %v3682 = vpop.f32.mrb[0].mxu0
      %v3683 = vadd.f32 %v3490, %v3682
      %v3684 = vpop.f32.mrb[0].mxu0
      %v3685 = vadd.f32 %v3492, %v3684
      %v3686 = vpop.f32.mrb[0].mxu0
      %v3687 = vadd.f32 %v3494, %v3686
      %v3688 = vpop.f32.mrb[0].mxu0
      %v3689 = vadd.f32 %v3496, %v3688
      %3690 = vdwg.mxu0
      %3691 = vst [vmem:[%s231] sm:$0xff] %v3533
      %3692 = vst [vmem:[%s231 + $0x8] sm:$0xff] %v3535
      %3693 = vst [vmem:[%s231 + $0x10] sm:$0xff] %v3537
      %3694 = vst [vmem:[%s231 + $0x18] sm:$0xff] %v3539
      %3695 = vst [vmem:[%s231 + $0x20] sm:$0xff] %v3543
      %3696 = vst [vmem:[%s231 + $0x28] sm:$0xff] %v3545
      %3697 = vst [vmem:[%s231 + $0x30] sm:$0xff] %v3547
      %3698 = vst [vmem:[%s231 + $0x38] sm:$0xff] %v3549
      %3699 = vst [vmem:[%s231 + $0x40] sm:$0xff] %v3553
      %3700 = vst [vmem:[%s231 + $0x48] sm:$0xff] %v3555
      %3701 = vst [vmem:[%s231 + $0x50] sm:$0xff] %v3557
      %3702 = vst [vmem:[%s231 + $0x58] sm:$0xff] %v3559
      %3703 = vst [vmem:[%s231 + $0x60] sm:$0xff] %v3563
      %3704 = vst [vmem:[%s231 + $0x68] sm:$0xff] %v3565
      %3705 = vst [vmem:[%s231 + $0x70] sm:$0xff] %v3567
      %3706 = vst [vmem:[%s231 + $0x78] sm:$0xff] %v3569
      %3707 = vst [vmem:[%s231 + $0x80] sm:$0xff] %v3573
      %3708 = vst [vmem:[%s231 + $0x88] sm:$0xff] %v3575
      %3709 = vst [vmem:[%s231 + $0x90] sm:$0xff] %v3577
      %3710 = vst [vmem:[%s231 + $0x98] sm:$0xff] %v3579
      %3711 = vst [vmem:[%s231 + $0xa0] sm:$0xff] %v3583
      %3712 = vst [vmem:[%s231 + $0xa8] sm:$0xff] %v3585
      %3713 = vst [vmem:[%s231 + $0xb0] sm:$0xff] %v3587
      %3714 = vst [vmem:[%s231 + $0xb8] sm:$0xff] %v3589
      %3715 = vst [vmem:[%s231 + $0xc0] sm:$0xff] %v3593
      %3716 = vst [vmem:[%s231 + $0xc8] sm:$0xff] %v3595
      %3717 = vst [vmem:[%s231 + $0xd0] sm:$0xff] %v3597
      %3718 = vst [vmem:[%s231 + $0xd8] sm:$0xff] %v3599
      %3719 = vst [vmem:[%s231 + $0xe0] sm:$0xff] %v3603
      %3720 = vst [vmem:[%s231 + $0xe8] sm:$0xff] %v3605
      %3721 = vst [vmem:[%s231 + $0xf0] sm:$0xff] %v3607
      %3722 = vst [vmem:[%s231 + $0xf8] sm:$0xff] %v3609
      %3723 = vst [vmem:[%s231 + $0x100] sm:$0xff] %v3613
      %3724 = vst [vmem:[%s231 + $0x108] sm:$0xff] %v3615
      %3725 = vst [vmem:[%s231 + $0x110] sm:$0xff] %v3617
      %3726 = vst [vmem:[%s231 + $0x118] sm:$0xff] %v3619
      %3727 = vst [vmem:[%s231 + $0x120] sm:$0xff] %v3623
      %3728 = vst [vmem:[%s231 + $0x128] sm:$0xff] %v3625
      %3729 = vst [vmem:[%s231 + $0x130] sm:$0xff] %v3627
      %3730 = vst [vmem:[%s231 + $0x138] sm:$0xff] %v3629
      %3731 = vst [vmem:[%s231 + $0x140] sm:$0xff] %v3633
      %3732 = vst [vmem:[%s231 + $0x148] sm:$0xff] %v3635
      %3733 = vst [vmem:[%s231 + $0x150] sm:$0xff] %v3637
      %3734 = vst [vmem:[%s231 + $0x158] sm:$0xff] %v3639
      %3735 = vst [vmem:[%s231 + $0x160] sm:$0xff] %v3643
      %3736 = vst [vmem:[%s231 + $0x168] sm:$0xff] %v3645
      %3737 = vst [vmem:[%s231 + $0x170] sm:$0xff] %v3647
      %3738 = vst [vmem:[%s231 + $0x178] sm:$0xff] %v3649
      %3739 = vst [vmem:[%s231 + $0x180] sm:$0xff] %v3653
      %3740 = vst [vmem:[%s231 + $0x188] sm:$0xff] %v3655
      %3741 = vst [vmem:[%s231 + $0x190] sm:$0xff] %v3657
      %3742 = vst [vmem:[%s231 + $0x198] sm:$0xff] %v3659
      %3743 = vst [vmem:[%s231 + $0x1a0] sm:$0xff] %v3663
      %3744 = vst [vmem:[%s231 + $0x1a8] sm:$0xff] %v3665
      %3745 = vst [vmem:[%s231 + $0x1b0] sm:$0xff] %v3667
      %3746 = vst [vmem:[%s231 + $0x1b8] sm:$0xff] %v3669
      %3747 = vst [vmem:[%s231 + $0x1c0] sm:$0xff] %v3673
      %3748 = vst [vmem:[%s231 + $0x1c8] sm:$0xff] %v3675
      %3749 = vst [vmem:[%s231 + $0x1d0] sm:$0xff] %v3677
      %3750 = vst [vmem:[%s231 + $0x1d8] sm:$0xff] %v3679
      %3751 = vst [vmem:[%s231 + $0x1e0] sm:$0xff] %v3683
      %3752 = vst [vmem:[%s231 + $0x1e8] sm:$0xff] %v3685
      %3753 = vst [vmem:[%s231 + $0x1f0] sm:$0xff] %v3687
      %3754 = vst [vmem:[%s231 + $0x1f8] sm:$0xff] %v3689
      %s3755 = smul.u32 32, %s16
      %p3756 = scmp.lt.s32.totalorder %s3755, 63
      %s3757 = scalar_select %p3756, %s3755, 63
      %s3758 = smul.addr %s3757, 2
      %s3759 = smul.addr %s3758, 8
      %s3760 = scalar_lea.vmem %s5, %s3759
      // Predicated region
      $region41: #{bn_add_relu_conv.1} parent=39 // pred_check
        %p3761 = pneg %p144
      $region42: #{bn_add_relu_conv.1} parent=39 // pred_check_branch
        %3763 = sbr.rel (%p3761) target = $region44
      $region43: #{bn_add_relu_conv.1} parent=39 // pred_region
        %s3764 = smul.u32 32, %s16
      $region44: #{bn_add_relu_conv.1} parent=39 // pred_fallthru
        _
    $region40: #{bn_add_relu_conv.1} parent=5 // pred_fallthru
      _
    %p3765 = scmp.le.s32.totalorder 2, %s11
    // Predicated region
    $region45: #{bn_add_relu_conv.1} parent=5 // pred_check
      %p3766 = pneg %p3765
    $region46: #{bn_add_relu_conv.1} parent=5 // pred_check_branch
      %3768 = sbr.rel (%p3766) target = $region48
    $region47: #{bn_add_relu_conv.1} parent=5 // pred_region
      %s3769 = ssub.s32 %s11, 2
      // Predicated region
      $region49: #{bn_add_relu_conv.1} parent=47 // pred_check
        %p3770 = pneg %p150
      $region50: #{bn_add_relu_conv.1} parent=47 // pred_check_branch
        %3772 = sbr.rel (%p3770) target = $region52
      $region51: #{bn_add_relu_conv.1} parent=47 // pred_region
        %s3773 = smul.u32 32, %s17
        %p3774 = scmp.lt.s32.totalorder %s3773, 63
        %s3775 = scalar_select %p3774, %s3773, 63
        %s3776 = smul.addr %s3775, 2
        %s3777 = smul.addr %s3776, 8
        %s3778 = scalar_lea.vmem %s5, %s3777
      $region52: #{bn_add_relu_conv.1} parent=47 // pred_fallthru
        _
    $region48: #{bn_add_relu_conv.1} parent=5 // pred_fallthru
      _
  $region6: #{bn_add_relu_conv.1} parent=0 // loop_footer
    %s15 = sadd.s32 1, %s11
  $region7: #{bn_add_relu_conv.1} parent=0 // loop_footer_branch
    %10 = sbr.rel target = $region3
  $region8: #{bn_add_relu_conv.1} parent=0 // loop_exit
    _

</llo_original>
